<compile_context>
chip_gen: v5e
topology: v5e:2x2
jax: 0.10.0
libtpu: 0.0.40
codegen_flags: <defaults>
</compile_context>

<pallas_src>
import jax
import jax.numpy as jnp
from jax import lax
from jax.experimental import pallas as pl
from jax.experimental.pallas import tpu as pltpu

EPS = 1e-5   # PyTorch InstanceNorm1d default eps
K = 31       # kernel_size
PAD = 15     # padding


def residual_block_kernel(x_ref, w1_ref, w2_ref, p_ref, o_ref,
                          xpad_ref, col_ref):
    # x_ref   : (Bt, C, L)   f32  unpadded inputs for Bt batch elements
    # w*_ref  : (C, KCp)     matmul dtype; w2d[co, k*C + ci] = W[co, ci, k],
    #                        columns KC..KCp-1 are zero padding
    # p_ref   : (C, 8)       f32  packed per-channel params [g1, bt1, g2, bt2, 0..]
    # o_ref   : (Bt, C, L)   f32
    # xpad_ref: VMEM (Bt, C, L + 2*PAD)  padded-activation scratch (matmul dtype)
    # col_ref : VMEM (KCp, Bt*L)         im2col scratch (matmul dtype)
    Bt, C, L = o_ref.shape
    KC = K * C
    KCp, NL = col_ref.shape
    cdt = col_ref.dtype          # matmul operand dtype (bf16 or f32)
    inv_l = 1.0 / L

    # Zero only the PAD-wide edge strips of the padded scratch and the padded
    # contraction rows of the im2col scratch.  Done every grid step so the
    # kernel stays correct when the "parallel" batch axis is split across
    # TensorCores (each core owns an uninitialized scratch instance).
    zeros_edge = jnp.zeros((Bt, C, PAD), cdt)
    xpad_ref[:, :, pl.ds(0, PAD)] = zeros_edge
    xpad_ref[:, :, pl.ds(PAD + L, PAD)] = zeros_edge
    if KCp > KC:
        col_ref[pl.ds(KC, KCp - KC), :] = jnp.zeros((KCp - KC, NL), cdt)

    # Load the packed per-channel affine params once, slice the value.
    p = p_ref[...]
    g1, bt1 = p[:, 0:1], p[:, 1:2]
    g2, bt2 = p[:, 2:3], p[:, 3:4]

    def build_col():
        # col[k*C:(k+1)*C, b*L:(b+1)*L] = xpad[b, :, k:k+L]   (static unroll)
        for b in range(Bt):
            for k in range(K):
                col_ref[k * C:(k + 1) * C, b * L:(b + 1) * L] = \
                    xpad_ref[b, :, k:k + L]

    def conv(w_ref):
        # PyTorch Conv1d (cross-correlation), all Bt elements in one matmul:
        #   out[co, b*L + l] = sum_{ci,k} W[co,ci,k] * xpad[b, ci, l + k]
        # (conv bias omitted: exactly cancelled by the following InstanceNorm)
        build_col()
        return jnp.dot(w_ref[...], col_ref[...],
                       preferred_element_type=jnp.float32)    # (C, Bt*L) f32

    def instance_norm(hb, gamma, beta):
        # hb: (C, L) f32; per-(batch, channel) stats over L, biased variance,
        # single pass: var = E[h^2] - mean^2 (both reductions issue together).
        s = jnp.sum(hb, axis=1, keepdims=True)
        ss = jnp.sum(hb * hb, axis=1, keepdims=True)
        mean = s * inv_l
        var = ss * inv_l - mean * mean
        return (hb - mean) * lax.rsqrt(var + EPS) * gamma + beta

    x = x_ref[...]                                            # (Bt, C, L) f32

    # ---- conv1 (stage inputs into the padded scratch, cast at MXU boundary) ----
    xpad_ref[:, :, pl.ds(PAD, L)] = x.astype(cdt)
    h1 = conv(w1_ref)

    # ---- IN1 + ReLU per batch element, restage for conv2 ----
    for b in range(Bt):
        hb = jnp.maximum(instance_norm(h1[:, b * L:(b + 1) * L], g1, bt1), 0.0)
        xpad_ref[b, :, pl.ds(PAD, L)] = hb.astype(cdt)

    # ---- conv2 ----
    h2 = conv(w2_ref)

    # ---- IN2 + residual (residual read lane-aligned from the f32 input) ----
    for b in range(Bt):
        hb = instance_norm(h2[:, b * L:(b + 1) * L], g2, bt2)
        o_ref[b] = (hb + x[b]).astype(o_ref.dtype)


def _pick_bt(B, max_bt=8):
    """Largest divisor of B (<= max_bt) that keeps >= 2 grid steps if possible."""
    for cand in range(min(B, max_bt), 0, -1):
        if B % cand == 0 and B // cand >= 2:
            return cand
    for cand in range(min(B, max_bt), 0, -1):
        if B % cand == 0:
            return cand
    return 1


def _vmem_cap_bytes():
    # 75% of the chip's VMEM (64 MiB/TC on v7x, 128 MiB on v5e/v6e); 48 MiB fallback.
    try:
        return int(0.75 * pltpu.get_tpu_info().vmem_capacity_bytes)
    except Exception:
        return 48 * 2**20


def residual_block(x, params, *, bt=None, compute_dtype=jnp.bfloat16):
    """x: (B, C, L) float32 -> (B, C, L) float32."""
    B, C, L = x.shape
    KC = K * C
    KCp = ((KC + 127) // 128) * 128       # lane-tile aligned contraction depth
    Lp = L + 2 * PAD
    if bt is None:
        bt = _pick_bt(B)
    assert B % bt == 0
    NL = bt * L
    cbytes = jnp.dtype(compute_dtype).itemsize

    # (C_out, C_in, K) -> (C_out, K, C_in) -> (C_out, K*C_in) -> zero-pad to KCp
    def reshape_w(w):
        w2d = jnp.transpose(w, (0, 2, 1)).reshape(C, KC)
        w2d = jnp.pad(w2d, ((0, 0), (0, KCp - KC)))
        return w2d.astype(compute_dtype)

    w1 = reshape_w(params["w1"])
    w2 = reshape_w(params["w2"])

    # Pack the four per-channel affine vectors into one (C, 8) block (one DMA).
    # Conv biases b1/b2 are intentionally dropped (cancelled by InstanceNorm).
    zero_c = jnp.zeros((C,), jnp.float32)
    p = jnp.stack([params["g1"], params["bt1"], params["g2"], params["bt2"],
                   zero_c, zero_c, zero_c, zero_c], axis=1)   # (C, 8)

    # VMEM budget: double-buffered x/out blocks + resident weights/params
    # + the two single-instance scratches, 2x headroom for layout padding.
    est = (2 * (bt * C * L * 4) * 2        # x + out blocks, 2 buffers each
           + 2 * (C * KCp * cbytes) * 2    # w1 + w2
           + (C * 8 * 4) * 2               # packed params
           + bt * C * Lp * cbytes          # padded-activation scratch
           + KCp * NL * cbytes)            # im2col scratch
    vmem_limit = int(min(_vmem_cap_bytes(), max(16 * 2**20, 2 * est)))

    return pl.pallas_call(
        residual_block_kernel,
        out_shape=jax.ShapeDtypeStruct((B, C, L), jnp.float32),
        grid_spec=pltpu.PrefetchScalarGridSpec(
            num_scalar_prefetch=0,
            grid=(B // bt,),
            in_specs=[
                pl.BlockSpec((bt, C, L), lambda i: (i, 0, 0)),   # x (unpadded)
                pl.BlockSpec((C, KCp), lambda i: (0, 0)),        # w1 (resident)
                pl.BlockSpec((C, KCp), lambda i: (0, 0)),        # w2 (resident)
                pl.BlockSpec((C, 8), lambda i: (0, 0)),          # packed params
            ],
            out_specs=pl.BlockSpec((bt, C, L), lambda i: (i, 0, 0)),
            scratch_shapes=[
                pltpu.VMEM((bt, C, Lp), compute_dtype),   # padded activation
                pltpu.VMEM((KCp, NL), compute_dtype),     # im2col
            ],
        ),
        compiler_params=pltpu.CompilerParams(
            # batch tiles are independent -> shard across v7x's 2 TensorCores
            dimension_semantics=("parallel",),
            vmem_limit_bytes=vmem_limit,
        ),
    )(x, w1, w2, p)


def reference_forward(x, p):
    """Plain-JAX reference mirroring the PyTorch module (biases included)."""
    def conv1d(h, w, b):
        y = lax.conv_general_dilated(
            h, w, window_strides=(1,), padding=[(PAD, PAD)],
            dimension_numbers=("NCH", "OIH", "NCH"))
        return y + b[None, :, None]

    def instance_norm(h, g, bt):
        mean = h.mean(axis=2, keepdims=True)
        var = ((h - mean) ** 2).mean(axis=2, keepdims=True)
        return (h - mean) / jnp.sqrt(var + EPS) * g[None, :, None] + bt[None, :, None]

    out = jax.nn.relu(instance_norm(conv1d(x, p["w1"], p["b1"]), p["g1"], p["bt1"]))
    out = instance_norm(conv1d(out, p["w2"], p["b2"]), p["g2"], p["bt2"])
    return out + x


if __name__ == "__main__":
    # C=8, L=128 keep compute/output tiles (8,128)-dense; B=4 with Bt=2 gives a
    # 2-step "parallel" grid so both v7x TensorCores get work.
    B, C, L = 4, 8, 128
    key = jax.random.PRNGKey(0)
    ks = jax.random.split(key, 9)

    params = {
        "w1": 0.1 * jax.random.normal(ks[0], (C, C, K), jnp.float32),
        "b1": 0.1 * jax.random.normal(ks[1], (C,), jnp.float32),
        "g1": 1.0 + 0.1 * jax.random.normal(ks[2], (C,), jnp.float32),
        "bt1": 0.1 * jax.random.normal(ks[3], (C,), jnp.float32),
        "w2": 0.1 * jax.random.normal(ks[4], (C, C, K), jnp.float32),
        "b2": 0.1 * jax.random.normal(ks[5], (C,), jnp.float32),
        "g2": 1.0 + 0.1 * jax.random.normal(ks[6], (C,), jnp.float32),
        "bt2": 0.1 * jax.random.normal(ks[7], (C,), jnp.float32),
    }
    x = jax.random.normal(ks[8], (B, C, L), jnp.float32)

    ref = jax.block_until_ready(reference_forward(x, params))

    # f32-operand path: tight numerical check of the fused kernel logic.
    out_f32 = jax.block_until_ready(
        residual_block(x, params, compute_dtype=jnp.float32))
    assert out_f32.shape == (B, C, L)
    err32 = jnp.max(jnp.abs(out_f32 - ref))
    assert jnp.allclose(out_f32, ref, rtol=1e-3, atol=1e-3), f"f32 max abs err {err32}"

    # bf16-operand path (default / production): bf16 MXU operands with f32
    # accumulation and f32 norm stats -> error floor ~1e-2 at these magnitudes.
    out_bf16 = jax.block_until_ready(residual_block(x, params))
    errbf = jnp.max(jnp.abs(out_bf16 - ref))
    assert jnp.allclose(out_bf16, ref, rtol=2e-2, atol=2e-2), f"bf16 max abs err {errbf}"

    print("KERNEL_OK")
</pallas_src>

<mosaic_0001>
module attributes {stable_mosaic.version = 11 : i64} {
  func.func @residual_block_kernel(%arg0: i32, %arg1: memref<2x8x128xf32, #tpu.memory_space<vmem>>, %arg2: memref<8x256xf32, #tpu.memory_space<vmem>>, %arg3: memref<8x256xf32, #tpu.memory_space<vmem>>, %arg4: memref<8x8xf32, #tpu.memory_space<vmem>>, %arg5: memref<2x8x128xf32, #tpu.memory_space<vmem>>, %arg6: memref<2x8x158xf32, #tpu.memory_space<vmem>>, %arg7: memref<256x256xf32, #tpu.memory_space<vmem>>) attributes {dimension_semantics = [#tpu.dimension_semantics<parallel>], iteration_bounds = array<i64: 2>, scalar_prefetch = 0 : i64, scratch_operands = 2 : i64, tpu.core_type = #tpu.core_type<tc>, window_params = [{transform_indices = @transform_0, window_bounds = array<i64: 2, 8, 128>}, {pipeline_mode = #tpu.pipeline_mode<synchronous>, transform_indices = @transform_1, window_bounds = array<i64: 8, 256>}, {pipeline_mode = #tpu.pipeline_mode<synchronous>, transform_indices = @transform_2, window_bounds = array<i64: 8, 256>}, {pipeline_mode = #tpu.pipeline_mode<synchronous>, transform_indices = @transform_3, window_bounds = array<i64: 8, 8>}, {transform_indices = @transform_4, window_bounds = array<i64: 2, 8, 128>}]} {
    %cst = arith.constant 0.000000e+00 : f32
    %0 = vector.broadcast %cst : f32 to vector<2x8x15xf32>
    %c0 = arith.constant 0 : index
    %c0_0 = arith.constant 0 : index
    %c0_1 = arith.constant 0 : index
    %1 = vector.load %arg6[%c0, %c0_0, %c0_1] : memref<2x8x158xf32, #tpu.memory_space<vmem>>, vector<2x8x15xf32>
    tpu.vector_store %arg6[%c0, %c0_0, %c0_1], %0 {strides = array<i32>} : memref<2x8x158xf32, #tpu.memory_space<vmem>>, vector<2x8x15xf32>,
    %c0_2 = arith.constant 0 : index
    %c0_3 = arith.constant 0 : index
    %c143 = arith.constant 143 : index
    %2 = vector.load %arg6[%c0_2, %c0_3, %c143] : memref<2x8x158xf32, #tpu.memory_space<vmem>>, vector<2x8x15xf32>
    tpu.vector_store %arg6[%c0_2, %c0_3, %c143], %0 {strides = array<i32>} : memref<2x8x158xf32, #tpu.memory_space<vmem>>, vector<2x8x15xf32>,
    %cst_4 = arith.constant 0.000000e+00 : f32
    %3 = vector.broadcast %cst_4 : f32 to vector<8x256xf32>
    %c248 = arith.constant 248 : index
    %c0_5 = arith.constant 0 : index
    %4 = vector.load %arg7[%c248, %c0_5] : memref<256x256xf32, #tpu.memory_space<vmem>>, vector<8x256xf32>
    tpu.vector_store %arg7[%c248, %c0_5], %3 {strides = array<i32>} : memref<256x256xf32, #tpu.memory_space<vmem>>, vector<8x256xf32>,
    %c0_6 = arith.constant 0 : index
    %c0_7 = arith.constant 0 : index
    %5 = vector.load %arg4[%c0_6, %c0_7] : memref<8x8xf32, #tpu.memory_space<vmem>>, vector<8x8xf32>
    %6 = vector.extract_strided_slice %5 {offsets = [0, 0], sizes = [8, 1], strides = [1, 1]} : vector<8x8xf32> to vector<8x1xf32>
    %7 = vector.extract_strided_slice %5 {offsets = [0, 1], sizes = [8, 1], strides = [1, 1]} : vector<8x8xf32> to vector<8x1xf32>
    %8 = vector.extract_strided_slice %5 {offsets = [0, 2], sizes = [8, 1], strides = [1, 1]} : vector<8x8xf32> to vector<8x1xf32>
    %9 = vector.extract_strided_slice %5 {offsets = [0, 3], sizes = [8, 1], strides = [1, 1]} : vector<8x8xf32> to vector<8x1xf32>
    %c0_8 = arith.constant 0 : index
    %c0_9 = arith.constant 0 : index
    %c0_10 = arith.constant 0 : index
    %10 = vector.load %arg1[%c0_8, %c0_9, %c0_10] : memref<2x8x128xf32, #tpu.memory_space<vmem>>, vector<2x8x128xf32>
    %c0_11 = arith.constant 0 : index
    %c0_12 = arith.constant 0 : index
    %c15 = arith.constant 15 : index
    %11 = vector.load %arg6[%c0_11, %c0_12, %c15] : memref<2x8x158xf32, #tpu.memory_space<vmem>>, vector<2x8x128xf32>
    tpu.vector_store %arg6[%c0_11, %c0_12, %c15], %10 {strides = array<i32>} : memref<2x8x158xf32, #tpu.memory_space<vmem>>, vector<2x8x128xf32>,
    %c0_13 = arith.constant 0 : index
    %c0_14 = arith.constant 0 : index
    %c0_15 = arith.constant 0 : index
    %12 = vector.load %arg6[%c0_13, %c0_14, %c0_15] : memref<2x8x158xf32, #tpu.memory_space<vmem>>, vector<1x8x128xf32>
    %13 = vector.shape_cast %12 : vector<1x8x128xf32> to vector<8x128xf32>
    %c0_16 = arith.constant 0 : index
    %c0_17 = arith.constant 0 : index
    %14 = vector.load %arg7[%c0_16, %c0_17] : memref<256x256xf32, #tpu.memory_space<vmem>>, vector<8x128xf32>
    tpu.vector_store %arg7[%c0_16, %c0_17], %13 {strides = array<i32>} : memref<256x256xf32, #tpu.memory_space<vmem>>, vector<8x128xf32>,
    %c0_18 = arith.constant 0 : index
    %c0_19 = arith.constant 0 : index
    %c1 = arith.constant 1 : index
    %15 = vector.load %arg6[%c0_18, %c0_19, %c1] : memref<2x8x158xf32, #tpu.memory_space<vmem>>, vector<1x8x128xf32>
    %16 = vector.shape_cast %15 : vector<1x8x128xf32> to vector<8x128xf32>
    %c8 = arith.constant 8 : index
    %c0_20 = arith.constant 0 : index
    %17 = vector.load %arg7[%c8, %c0_20] : memref<256x256xf32, #tpu.memory_space<vmem>>, vector<8x128xf32>
    tpu.vector_store %arg7[%c8, %c0_20], %16 {strides = array<i32>} : memref<256x256xf32, #tpu.memory_space<vmem>>, vector<8x128xf32>,
    %c0_21 = arith.constant 0 : index
    %c0_22 = arith.constant 0 : index
    %c2 = arith.constant 2 : index
    %18 = vector.load %arg6[%c0_21, %c0_22, %c2] : memref<2x8x158xf32, #tpu.memory_space<vmem>>, vector<1x8x128xf32>
    %19 = vector.shape_cast %18 : vector<1x8x128xf32> to vector<8x128xf32>
    %c16 = arith.constant 16 : index
    %c0_23 = arith.constant 0 : index
    %20 = vector.load %arg7[%c16, %c0_23] : memref<256x256xf32, #tpu.memory_space<vmem>>, vector<8x128xf32>
    tpu.vector_store %arg7[%c16, %c0_23], %19 {strides = array<i32>} : memref<256x256xf32, #tpu.memory_space<vmem>>, vector<8x128xf32>,
    %c0_24 = arith.constant 0 : index
    %c0_25 = arith.constant 0 : index
    %c3 = arith.constant 3 : index
    %21 = vector.load %arg6[%c0_24, %c0_25, %c3] : memref<2x8x158xf32, #tpu.memory_space<vmem>>, vector<1x8x128xf32>
    %22 = vector.shape_cast %21 : vector<1x8x128xf32> to vector<8x128xf32>
    %c24 = arith.constant 24 : index
    %c0_26 = arith.constant 0 : index
    %23 = vector.load %arg7[%c24, %c0_26] : memref<256x256xf32, #tpu.memory_space<vmem>>, vector<8x128xf32>
    tpu.vector_store %arg7[%c24, %c0_26], %22 {strides = array<i32>} : memref<256x256xf32, #tpu.memory_space<vmem>>, vector<8x128xf32>,
    %c0_27 = arith.constant 0 : index
    %c0_28 = arith.constant 0 : index
    %c4 = arith.constant 4 : index
    %24 = vector.load %arg6[%c0_27, %c0_28, %c4] : memref<2x8x158xf32, #tpu.memory_space<vmem>>, vector<1x8x128xf32>
    %25 = vector.shape_cast %24 : vector<1x8x128xf32> to vector<8x128xf32>
    %c32 = arith.constant 32 : index
    %c0_29 = arith.constant 0 : index
    %26 = vector.load %arg7[%c32, %c0_29] : memref<256x256xf32, #tpu.memory_space<vmem>>, vector<8x128xf32>
    tpu.vector_store %arg7[%c32, %c0_29], %25 {strides = array<i32>} : memref<256x256xf32, #tpu.memory_space<vmem>>, vector<8x128xf32>,
    %c0_30 = arith.constant 0 : index
    %c0_31 = arith.constant 0 : index
    %c5 = arith.constant 5 : index
    %27 = vector.load %arg6[%c0_30, %c0_31, %c5] : memref<2x8x158xf32, #tpu.memory_space<vmem>>, vector<1x8x128xf32>
    %28 = vector.shape_cast %27 : vector<1x8x128xf32> to vector<8x128xf32>
    %c40 = arith.constant 40 : index
    %c0_32 = arith.constant 0 : index
    %29 = vector.load %arg7[%c40, %c0_32] : memref<256x256xf32, #tpu.memory_space<vmem>>, vector<8x128xf32>
    tpu.vector_store %arg7[%c40, %c0_32], %28 {strides = array<i32>} : memref<256x256xf32, #tpu.memory_space<vmem>>, vector<8x128xf32>,
    %c0_33 = arith.constant 0 : index
    %c0_34 = arith.constant 0 : index
    %c6 = arith.constant 6 : index
    %30 = vector.load %arg6[%c0_33, %c0_34, %c6] : memref<2x8x158xf32, #tpu.memory_space<vmem>>, vector<1x8x128xf32>
    %31 = vector.shape_cast %30 : vector<1x8x128xf32> to vector<8x128xf32>
    %c48 = arith.constant 48 : index
    %c0_35 = arith.constant 0 : index
    %32 = vector.load %arg7[%c48, %c0_35] : memref<256x256xf32, #tpu.memory_space<vmem>>, vector<8x128xf32>
    tpu.vector_store %arg7[%c48, %c0_35], %31 {strides = array<i32>} : memref<256x256xf32, #tpu.memory_space<vmem>>, vector<8x128xf32>,
    %c0_36 = arith.constant 0 : index
    %c0_37 = arith.constant 0 : index
    %c7 = arith.constant 7 : index
    %33 = vector.load %arg6[%c0_36, %c0_37, %c7] : memref<2x8x158xf32, #tpu.memory_space<vmem>>, vector<1x8x128xf32>
    %34 = vector.shape_cast %33 : vector<1x8x128xf32> to vector<8x128xf32>
    %c56 = arith.constant 56 : index
    %c0_38 = arith.constant 0 : index
    %35 = vector.load %arg7[%c56, %c0_38] : memref<256x256xf32, #tpu.memory_space<vmem>>, vector<8x128xf32>
    tpu.vector_store %arg7[%c56, %c0_38], %34 {strides = array<i32>} : memref<256x256xf32, #tpu.memory_space<vmem>>, vector<8x128xf32>,
    %c0_39 = arith.constant 0 : index
    %c0_40 = arith.constant 0 : index
    %c8_41 = arith.constant 8 : index
    %36 = vector.load %arg6[%c0_39, %c0_40, %c8_41] : memref<2x8x158xf32, #tpu.memory_space<vmem>>, vector<1x8x128xf32>
    %37 = vector.shape_cast %36 : vector<1x8x128xf32> to vector<8x128xf32>
    %c64 = arith.constant 64 : index
    %c0_42 = arith.constant 0 : index
    %38 = vector.load %arg7[%c64, %c0_42] : memref<256x256xf32, #tpu.memory_space<vmem>>, vector<8x128xf32>
    tpu.vector_store %arg7[%c64, %c0_42], %37 {strides = array<i32>} : memref<256x256xf32, #tpu.memory_space<vmem>>, vector<8x128xf32>,
    %c0_43 = arith.constant 0 : index
    %c0_44 = arith.constant 0 : index
    %c9 = arith.constant 9 : index
    %39 = vector.load %arg6[%c0_43, %c0_44, %c9] : memref<2x8x158xf32, #tpu.memory_space<vmem>>, vector<1x8x128xf32>
    %40 = vector.shape_cast %39 : vector<1x8x128xf32> to vector<8x128xf32>
    %c72 = arith.constant 72 : index
    %c0_45 = arith.constant 0 : index
    %41 = vector.load %arg7[%c72, %c0_45] : memref<256x256xf32, #tpu.memory_space<vmem>>, vector<8x128xf32>
    tpu.vector_store %arg7[%c72, %c0_45], %40 {strides = array<i32>} : memref<256x256xf32, #tpu.memory_space<vmem>>, vector<8x128xf32>,
    %c0_46 = arith.constant 0 : index
    %c0_47 = arith.constant 0 : index
    %c10 = arith.constant 10 : index
    %42 = vector.load %arg6[%c0_46, %c0_47, %c10] : memref<2x8x158xf32, #tpu.memory_space<vmem>>, vector<1x8x128xf32>
    %43 = vector.shape_cast %42 : vector<1x8x128xf32> to vector<8x128xf32>
    %c80 = arith.constant 80 : index
    %c0_48 = arith.constant 0 : index
    %44 = vector.load %arg7[%c80, %c0_48] : memref<256x256xf32, #tpu.memory_space<vmem>>, vector<8x128xf32>
    tpu.vector_store %arg7[%c80, %c0_48], %43 {strides = array<i32>} : memref<256x256xf32, #tpu.memory_space<vmem>>, vector<8x128xf32>,
    %c0_49 = arith.constant 0 : index
    %c0_50 = arith.constant 0 : index
    %c11 = arith.constant 11 : index
    %45 = vector.load %arg6[%c0_49, %c0_50, %c11] : memref<2x8x158xf32, #tpu.memory_space<vmem>>, vector<1x8x128xf32>
    %46 = vector.shape_cast %45 : vector<1x8x128xf32> to vector<8x128xf32>
    %c88 = arith.constant 88 : index
    %c0_51 = arith.constant 0 : index
    %47 = vector.load %arg7[%c88, %c0_51] : memref<256x256xf32, #tpu.memory_space<vmem>>, vector<8x128xf32>
    tpu.vector_store %arg7[%c88, %c0_51], %46 {strides = array<i32>} : memref<256x256xf32, #tpu.memory_space<vmem>>, vector<8x128xf32>,
    %c0_52 = arith.constant 0 : index
    %c0_53 = arith.constant 0 : index
    %c12 = arith.constant 12 : index
    %48 = vector.load %arg6[%c0_52, %c0_53, %c12] : memref<2x8x158xf32, #tpu.memory_space<vmem>>, vector<1x8x128xf32>
    %49 = vector.shape_cast %48 : vector<1x8x128xf32> to vector<8x128xf32>
    %c96 = arith.constant 96 : index
    %c0_54 = arith.constant 0 : index
    %50 = vector.load %arg7[%c96, %c0_54] : memref<256x256xf32, #tpu.memory_space<vmem>>, vector<8x128xf32>
    tpu.vector_store %arg7[%c96, %c0_54], %49 {strides = array<i32>} : memref<256x256xf32, #tpu.memory_space<vmem>>, vector<8x128xf32>,
    %c0_55 = arith.constant 0 : index
    %c0_56 = arith.constant 0 : index
    %c13 = arith.constant 13 : index
    %51 = vector.load %arg6[%c0_55, %c0_56, %c13] : memref<2x8x158xf32, #tpu.memory_space<vmem>>, vector<1x8x128xf32>
    %52 = vector.shape_cast %51 : vector<1x8x128xf32> to vector<8x128xf32>
    %c104 = arith.constant 104 : index
    %c0_57 = arith.constant 0 : index
    %53 = vector.load %arg7[%c104, %c0_57] : memref<256x256xf32, #tpu.memory_space<vmem>>, vector<8x128xf32>
    tpu.vector_store %arg7[%c104, %c0_57], %52 {strides = array<i32>} : memref<256x256xf32, #tpu.memory_space<vmem>>, vector<8x128xf32>,
    %c0_58 = arith.constant 0 : index
    %c0_59 = arith.constant 0 : index
    %c14 = arith.constant 14 : index
    %54 = vector.load %arg6[%c0_58, %c0_59, %c14] : memref<2x8x158xf32, #tpu.memory_space<vmem>>, vector<1x8x128xf32>
    %55 = vector.shape_cast %54 : vector<1x8x128xf32> to vector<8x128xf32>
    %c112 = arith.constant 112 : index
    %c0_60 = arith.constant 0 : index
    %56 = vector.load %arg7[%c112, %c0_60] : memref<256x256xf32, #tpu.memory_space<vmem>>, vector<8x128xf32>
    tpu.vector_store %arg7[%c112, %c0_60], %55 {strides = array<i32>} : memref<256x256xf32, #tpu.memory_space<vmem>>, vector<8x128xf32>,
    %c0_61 = arith.constant 0 : index
    %c0_62 = arith.constant 0 : index
    %c15_63 = arith.constant 15 : index
    %57 = vector.load %arg6[%c0_61, %c0_62, %c15_63] : memref<2x8x158xf32, #tpu.memory_space<vmem>>, vector<1x8x128xf32>
    %58 = vector.shape_cast %57 : vector<1x8x128xf32> to vector<8x128xf32>
    %c120 = arith.constant 120 : index
    %c0_64 = arith.constant 0 : index
    %59 = vector.load %arg7[%c120, %c0_64] : memref<256x256xf32, #tpu.memory_space<vmem>>, vector<8x128xf32>
    tpu.vector_store %arg7[%c120, %c0_64], %58 {strides = array<i32>} : memref<256x256xf32, #tpu.memory_space<vmem>>, vector<8x128xf32>,
    %c0_65 = arith.constant 0 : index
    %c0_66 = arith.constant 0 : index
    %c16_67 = arith.constant 16 : index
    %60 = vector.load %arg6[%c0_65, %c0_66, %c16_67] : memref<2x8x158xf32, #tpu.memory_space<vmem>>, vector<1x8x128xf32>
    %61 = vector.shape_cast %60 : vector<1x8x128xf32> to vector<8x128xf32>
    %c128 = arith.constant 128 : index
    %c0_68 = arith.constant 0 : index
    %62 = vector.load %arg7[%c128, %c0_68] : memref<256x256xf32, #tpu.memory_space<vmem>>, vector<8x128xf32>
    tpu.vector_store %arg7[%c128, %c0_68], %61 {strides = array<i32>} : memref<256x256xf32, #tpu.memory_space<vmem>>, vector<8x128xf32>,
    %c0_69 = arith.constant 0 : index
    %c0_70 = arith.constant 0 : index
    %c17 = arith.constant 17 : index
    %63 = vector.load %arg6[%c0_69, %c0_70, %c17] : memref<2x8x158xf32, #tpu.memory_space<vmem>>, vector<1x8x128xf32>
    %64 = vector.shape_cast %63 : vector<1x8x128xf32> to vector<8x128xf32>
    %c136 = arith.constant 136 : index
    %c0_71 = arith.constant 0 : index
    %65 = vector.load %arg7[%c136, %c0_71] : memref<256x256xf32, #tpu.memory_space<vmem>>, vector<8x128xf32>
    tpu.vector_store %arg7[%c136, %c0_71], %64 {strides = array<i32>} : memref<256x256xf32, #tpu.memory_space<vmem>>, vector<8x128xf32>,
    %c0_72 = arith.constant 0 : index
    %c0_73 = arith.constant 0 : index
    %c18 = arith.constant 18 : index
    %66 = vector.load %arg6[%c0_72, %c0_73, %c18] : memref<2x8x158xf32, #tpu.memory_space<vmem>>, vector<1x8x128xf32>
    %67 = vector.shape_cast %66 : vector<1x8x128xf32> to vector<8x128xf32>
    %c144 = arith.constant 144 : index
    %c0_74 = arith.constant 0 : index
    %68 = vector.load %arg7[%c144, %c0_74] : memref<256x256xf32, #tpu.memory_space<vmem>>, vector<8x128xf32>
    tpu.vector_store %arg7[%c144, %c0_74], %67 {strides = array<i32>} : memref<256x256xf32, #tpu.memory_space<vmem>>, vector<8x128xf32>,
    %c0_75 = arith.constant 0 : index
    %c0_76 = arith.constant 0 : index
    %c19 = arith.constant 19 : index
    %69 = vector.load %arg6[%c0_75, %c0_76, %c19] : memref<2x8x158xf32, #tpu.memory_space<vmem>>, vector<1x8x128xf32>
    %70 = vector.shape_cast %69 : vector<1x8x128xf32> to vector<8x128xf32>
    %c152 = arith.constant 152 : index
    %c0_77 = arith.constant 0 : index
    %71 = vector.load %arg7[%c152, %c0_77] : memref<256x256xf32, #tpu.memory_space<vmem>>, vector<8x128xf32>
    tpu.vector_store %arg7[%c152, %c0_77], %70 {strides = array<i32>} : memref<256x256xf32, #tpu.memory_space<vmem>>, vector<8x128xf32>,
    %c0_78 = arith.constant 0 : index
    %c0_79 = arith.constant 0 : index
    %c20 = arith.constant 20 : index
    %72 = vector.load %arg6[%c0_78, %c0_79, %c20] : memref<2x8x158xf32, #tpu.memory_space<vmem>>, vector<1x8x128xf32>
    %73 = vector.shape_cast %72 : vector<1x8x128xf32> to vector<8x128xf32>
    %c160 = arith.constant 160 : index
    %c0_80 = arith.constant 0 : index
    %74 = vector.load %arg7[%c160, %c0_80] : memref<256x256xf32, #tpu.memory_space<vmem>>, vector<8x128xf32>
    tpu.vector_store %arg7[%c160, %c0_80], %73 {strides = array<i32>} : memref<256x256xf32, #tpu.memory_space<vmem>>, vector<8x128xf32>,
    %c0_81 = arith.constant 0 : index
    %c0_82 = arith.constant 0 : index
    %c21 = arith.constant 21 : index
    %75 = vector.load %arg6[%c0_81, %c0_82, %c21] : memref<2x8x158xf32, #tpu.memory_space<vmem>>, vector<1x8x128xf32>
    %76 = vector.shape_cast %75 : vector<1x8x128xf32> to vector<8x128xf32>
    %c168 = arith.constant 168 : index
    %c0_83 = arith.constant 0 : index
    %77 = vector.load %arg7[%c168, %c0_83] : memref<256x256xf32, #tpu.memory_space<vmem>>, vector<8x128xf32>
    tpu.vector_store %arg7[%c168, %c0_83], %76 {strides = array<i32>} : memref<256x256xf32, #tpu.memory_space<vmem>>, vector<8x128xf32>,
    %c0_84 = arith.constant 0 : index
    %c0_85 = arith.constant 0 : index
    %c22 = arith.constant 22 : index
    %78 = vector.load %arg6[%c0_84, %c0_85, %c22] : memref<2x8x158xf32, #tpu.memory_space<vmem>>, vector<1x8x128xf32>
    %79 = vector.shape_cast %78 : vector<1x8x128xf32> to vector<8x128xf32>
    %c176 = arith.constant 176 : index
    %c0_86 = arith.constant 0 : index
    %80 = vector.load %arg7[%c176, %c0_86] : memref<256x256xf32, #tpu.memory_space<vmem>>, vector<8x128xf32>
    tpu.vector_store %arg7[%c176, %c0_86], %79 {strides = array<i32>} : memref<256x256xf32, #tpu.memory_space<vmem>>, vector<8x128xf32>,
    %c0_87 = arith.constant 0 : index
    %c0_88 = arith.constant 0 : index
    %c23 = arith.constant 23 : index
    %81 = vector.load %arg6[%c0_87, %c0_88, %c23] : memref<2x8x158xf32, #tpu.memory_space<vmem>>, vector<1x8x128xf32>
    %82 = vector.shape_cast %81 : vector<1x8x128xf32> to vector<8x128xf32>
    %c184 = arith.constant 184 : index
    %c0_89 = arith.constant 0 : index
    %83 = vector.load %arg7[%c184, %c0_89] : memref<256x256xf32, #tpu.memory_space<vmem>>, vector<8x128xf32>
    tpu.vector_store %arg7[%c184, %c0_89], %82 {strides = array<i32>} : memref<256x256xf32, #tpu.memory_space<vmem>>, vector<8x128xf32>,
    %c0_90 = arith.constant 0 : index
    %c0_91 = arith.constant 0 : index
    %c24_92 = arith.constant 24 : index
    %84 = vector.load %arg6[%c0_90, %c0_91, %c24_92] : memref<2x8x158xf32, #tpu.memory_space<vmem>>, vector<1x8x128xf32>
    %85 = vector.shape_cast %84 : vector<1x8x128xf32> to vector<8x128xf32>
    %c192 = arith.constant 192 : index
    %c0_93 = arith.constant 0 : index
    %86 = vector.load %arg7[%c192, %c0_93] : memref<256x256xf32, #tpu.memory_space<vmem>>, vector<8x128xf32>
    tpu.vector_store %arg7[%c192, %c0_93], %85 {strides = array<i32>} : memref<256x256xf32, #tpu.memory_space<vmem>>, vector<8x128xf32>,
    %c0_94 = arith.constant 0 : index
    %c0_95 = arith.constant 0 : index
    %c25 = arith.constant 25 : index
    %87 = vector.load %arg6[%c0_94, %c0_95, %c25] : memref<2x8x158xf32, #tpu.memory_space<vmem>>, vector<1x8x128xf32>
    %88 = vector.shape_cast %87 : vector<1x8x128xf32> to vector<8x128xf32>
    %c200 = arith.constant 200 : index
    %c0_96 = arith.constant 0 : index
    %89 = vector.load %arg7[%c200, %c0_96] : memref<256x256xf32, #tpu.memory_space<vmem>>, vector<8x128xf32>
    tpu.vector_store %arg7[%c200, %c0_96], %88 {strides = array<i32>} : memref<256x256xf32, #tpu.memory_space<vmem>>, vector<8x128xf32>,
    %c0_97 = arith.constant 0 : index
    %c0_98 = arith.constant 0 : index
    %c26 = arith.constant 26 : index
    %90 = vector.load %arg6[%c0_97, %c0_98, %c26] : memref<2x8x158xf32, #tpu.memory_space<vmem>>, vector<1x8x128xf32>
    %91 = vector.shape_cast %90 : vector<1x8x128xf32> to vector<8x128xf32>
    %c208 = arith.constant 208 : index
    %c0_99 = arith.constant 0 : index
    %92 = vector.load %arg7[%c208, %c0_99] : memref<256x256xf32, #tpu.memory_space<vmem>>, vector<8x128xf32>
    tpu.vector_store %arg7[%c208, %c0_99], %91 {strides = array<i32>} : memref<256x256xf32, #tpu.memory_space<vmem>>, vector<8x128xf32>,
    %c0_100 = arith.constant 0 : index
    %c0_101 = arith.constant 0 : index
    %c27 = arith.constant 27 : index
    %93 = vector.load %arg6[%c0_100, %c0_101, %c27] : memref<2x8x158xf32, #tpu.memory_space<vmem>>, vector<1x8x128xf32>
    %94 = vector.shape_cast %93 : vector<1x8x128xf32> to vector<8x128xf32>
    %c216 = arith.constant 216 : index
    %c0_102 = arith.constant 0 : index
    %95 = vector.load %arg7[%c216, %c0_102] : memref<256x256xf32, #tpu.memory_space<vmem>>, vector<8x128xf32>
    tpu.vector_store %arg7[%c216, %c0_102], %94 {strides = array<i32>} : memref<256x256xf32, #tpu.memory_space<vmem>>, vector<8x128xf32>,
    %c0_103 = arith.constant 0 : index
    %c0_104 = arith.constant 0 : index
    %c28 = arith.constant 28 : index
    %96 = vector.load %arg6[%c0_103, %c0_104, %c28] : memref<2x8x158xf32, #tpu.memory_space<vmem>>, vector<1x8x128xf32>
    %97 = vector.shape_cast %96 : vector<1x8x128xf32> to vector<8x128xf32>
    %c224 = arith.constant 224 : index
    %c0_105 = arith.constant 0 : index
    %98 = vector.load %arg7[%c224, %c0_105] : memref<256x256xf32, #tpu.memory_space<vmem>>, vector<8x128xf32>
    tpu.vector_store %arg7[%c224, %c0_105], %97 {strides = array<i32>} : memref<256x256xf32, #tpu.memory_space<vmem>>, vector<8x128xf32>,
    %c0_106 = arith.constant 0 : index
    %c0_107 = arith.constant 0 : index
    %c29 = arith.constant 29 : index
    %99 = vector.load %arg6[%c0_106, %c0_107, %c29] : memref<2x8x158xf32, #tpu.memory_space<vmem>>, vector<1x8x128xf32>
    %100 = vector.shape_cast %99 : vector<1x8x128xf32> to vector<8x128xf32>
    %c232 = arith.constant 232 : index
    %c0_108 = arith.constant 0 : index
    %101 = vector.load %arg7[%c232, %c0_108] : memref<256x256xf32, #tpu.memory_space<vmem>>, vector<8x128xf32>
    tpu.vector_store %arg7[%c232, %c0_108], %100 {strides = array<i32>} : memref<256x256xf32, #tpu.memory_space<vmem>>, vector<8x128xf32>,
    %c0_109 = arith.constant 0 : index
    %c0_110 = arith.constant 0 : index
    %c30 = arith.constant 30 : index
    %102 = vector.load %arg6[%c0_109, %c0_110, %c30] : memref<2x8x158xf32, #tpu.memory_space<vmem>>, vector<1x8x128xf32>
    %103 = vector.shape_cast %102 : vector<1x8x128xf32> to vector<8x128xf32>
    %c240 = arith.constant 240 : index
    %c0_111 = arith.constant 0 : index
    %104 = vector.load %arg7[%c240, %c0_111] : memref<256x256xf32, #tpu.memory_space<vmem>>, vector<8x128xf32>
    tpu.vector_store %arg7[%c240, %c0_111], %103 {strides = array<i32>} : memref<256x256xf32, #tpu.memory_space<vmem>>, vector<8x128xf32>,
    %c1_112 = arith.constant 1 : index
    %c0_113 = arith.constant 0 : index
    %c0_114 = arith.constant 0 : index
    %105 = vector.load %arg6[%c1_112, %c0_113, %c0_114] : memref<2x8x158xf32, #tpu.memory_space<vmem>>, vector<1x8x128xf32>
    %106 = vector.shape_cast %105 : vector<1x8x128xf32> to vector<8x128xf32>
    %c0_115 = arith.constant 0 : index
    %c128_116 = arith.constant 128 : index
    %107 = vector.load %arg7[%c0_115, %c128_116] : memref<256x256xf32, #tpu.memory_space<vmem>>, vector<8x128xf32>
    tpu.vector_store %arg7[%c0_115, %c128_116], %106 {strides = array<i32>} : memref<256x256xf32, #tpu.memory_space<vmem>>, vector<8x128xf32>,
    %c1_117 = arith.constant 1 : index
    %c0_118 = arith.constant 0 : index
    %c1_119 = arith.constant 1 : index
    %108 = vector.load %arg6[%c1_117, %c0_118, %c1_119] : memref<2x8x158xf32, #tpu.memory_space<vmem>>, vector<1x8x128xf32>
    %109 = vector.shape_cast %108 : vector<1x8x128xf32> to vector<8x128xf32>
    %c8_120 = arith.constant 8 : index
    %c128_121 = arith.constant 128 : index
    %110 = vector.load %arg7[%c8_120, %c128_121] : memref<256x256xf32, #tpu.memory_space<vmem>>, vector<8x128xf32>
    tpu.vector_store %arg7[%c8_120, %c128_121], %109 {strides = array<i32>} : memref<256x256xf32, #tpu.memory_space<vmem>>, vector<8x128xf32>,
    %c1_122 = arith.constant 1 : index
    %c0_123 = arith.constant 0 : index
    %c2_124 = arith.constant 2 : index
    %111 = vector.load %arg6[%c1_122, %c0_123, %c2_124] : memref<2x8x158xf32, #tpu.memory_space<vmem>>, vector<1x8x128xf32>
    %112 = vector.shape_cast %111 : vector<1x8x128xf32> to vector<8x128xf32>
    %c16_125 = arith.constant 16 : index
    %c128_126 = arith.constant 128 : index
    %113 = vector.load %arg7[%c16_125, %c128_126] : memref<256x256xf32, #tpu.memory_space<vmem>>, vector<8x128xf32>
    tpu.vector_store %arg7[%c16_125, %c128_126], %112 {strides = array<i32>} : memref<256x256xf32, #tpu.memory_space<vmem>>, vector<8x128xf32>,
    %c1_127 = arith.constant 1 : index
    %c0_128 = arith.constant 0 : index
    %c3_129 = arith.constant 3 : index
    %114 = vector.load %arg6[%c1_127, %c0_128, %c3_129] : memref<2x8x158xf32, #tpu.memory_space<vmem>>, vector<1x8x128xf32>
    %115 = vector.shape_cast %114 : vector<1x8x128xf32> to vector<8x128xf32>
    %c24_130 = arith.constant 24 : index
    %c128_131 = arith.constant 128 : index
    %116 = vector.load %arg7[%c24_130, %c128_131] : memref<256x256xf32, #tpu.memory_space<vmem>>, vector<8x128xf32>
    tpu.vector_store %arg7[%c24_130, %c128_131], %115 {strides = array<i32>} : memref<256x256xf32, #tpu.memory_space<vmem>>, vector<8x128xf32>,
    %c1_132 = arith.constant 1 : index
    %c0_133 = arith.constant 0 : index
    %c4_134 = arith.constant 4 : index
    %117 = vector.load %arg6[%c1_132, %c0_133, %c4_134] : memref<2x8x158xf32, #tpu.memory_space<vmem>>, vector<1x8x128xf32>
    %118 = vector.shape_cast %117 : vector<1x8x128xf32> to vector<8x128xf32>
    %c32_135 = arith.constant 32 : index
    %c128_136 = arith.constant 128 : index
    %119 = vector.load %arg7[%c32_135, %c128_136] : memref<256x256xf32, #tpu.memory_space<vmem>>, vector<8x128xf32>
    tpu.vector_store %arg7[%c32_135, %c128_136], %118 {strides = array<i32>} : memref<256x256xf32, #tpu.memory_space<vmem>>, vector<8x128xf32>,
    %c1_137 = arith.constant 1 : index
    %c0_138 = arith.constant 0 : index
    %c5_139 = arith.constant 5 : index
    %120 = vector.load %arg6[%c1_137, %c0_138, %c5_139] : memref<2x8x158xf32, #tpu.memory_space<vmem>>, vector<1x8x128xf32>
    %121 = vector.shape_cast %120 : vector<1x8x128xf32> to vector<8x128xf32>
    %c40_140 = arith.constant 40 : index
    %c128_141 = arith.constant 128 : index
    %122 = vector.load %arg7[%c40_140, %c128_141] : memref<256x256xf32, #tpu.memory_space<vmem>>, vector<8x128xf32>
    tpu.vector_store %arg7[%c40_140, %c128_141], %121 {strides = array<i32>} : memref<256x256xf32, #tpu.memory_space<vmem>>, vector<8x128xf32>,
    %c1_142 = arith.constant 1 : index
    %c0_143 = arith.constant 0 : index
    %c6_144 = arith.constant 6 : index
    %123 = vector.load %arg6[%c1_142, %c0_143, %c6_144] : memref<2x8x158xf32, #tpu.memory_space<vmem>>, vector<1x8x128xf32>
    %124 = vector.shape_cast %123 : vector<1x8x128xf32> to vector<8x128xf32>
    %c48_145 = arith.constant 48 : index
    %c128_146 = arith.constant 128 : index
    %125 = vector.load %arg7[%c48_145, %c128_146] : memref<256x256xf32, #tpu.memory_space<vmem>>, vector<8x128xf32>
    tpu.vector_store %arg7[%c48_145, %c128_146], %124 {strides = array<i32>} : memref<256x256xf32, #tpu.memory_space<vmem>>, vector<8x128xf32>,
    %c1_147 = arith.constant 1 : index
    %c0_148 = arith.constant 0 : index
    %c7_149 = arith.constant 7 : index
    %126 = vector.load %arg6[%c1_147, %c0_148, %c7_149] : memref<2x8x158xf32, #tpu.memory_space<vmem>>, vector<1x8x128xf32>
    %127 = vector.shape_cast %126 : vector<1x8x128xf32> to vector<8x128xf32>
    %c56_150 = arith.constant 56 : index
    %c128_151 = arith.constant 128 : index
    %128 = vector.load %arg7[%c56_150, %c128_151] : memref<256x256xf32, #tpu.memory_space<vmem>>, vector<8x128xf32>
    tpu.vector_store %arg7[%c56_150, %c128_151], %127 {strides = array<i32>} : memref<256x256xf32, #tpu.memory_space<vmem>>, vector<8x128xf32>,
    %c1_152 = arith.constant 1 : index
    %c0_153 = arith.constant 0 : index
    %c8_154 = arith.constant 8 : index
    %129 = vector.load %arg6[%c1_152, %c0_153, %c8_154] : memref<2x8x158xf32, #tpu.memory_space<vmem>>, vector<1x8x128xf32>
    %130 = vector.shape_cast %129 : vector<1x8x128xf32> to vector<8x128xf32>
    %c64_155 = arith.constant 64 : index
    %c128_156 = arith.constant 128 : index
    %131 = vector.load %arg7[%c64_155, %c128_156] : memref<256x256xf32, #tpu.memory_space<vmem>>, vector<8x128xf32>
    tpu.vector_store %arg7[%c64_155, %c128_156], %130 {strides = array<i32>} : memref<256x256xf32, #tpu.memory_space<vmem>>, vector<8x128xf32>,
    %c1_157 = arith.constant 1 : index
    %c0_158 = arith.constant 0 : index
    %c9_159 = arith.constant 9 : index
    %132 = vector.load %arg6[%c1_157, %c0_158, %c9_159] : memref<2x8x158xf32, #tpu.memory_space<vmem>>, vector<1x8x128xf32>
    %133 = vector.shape_cast %132 : vector<1x8x128xf32> to vector<8x128xf32>
    %c72_160 = arith.constant 72 : index
    %c128_161 = arith.constant 128 : index
    %134 = vector.load %arg7[%c72_160, %c128_161] : memref<256x256xf32, #tpu.memory_space<vmem>>, vector<8x128xf32>
    tpu.vector_store %arg7[%c72_160, %c128_161], %133 {strides = array<i32>} : memref<256x256xf32, #tpu.memory_space<vmem>>, vector<8x128xf32>,
    %c1_162 = arith.constant 1 : index
    %c0_163 = arith.constant 0 : index
    %c10_164 = arith.constant 10 : index
    %135 = vector.load %arg6[%c1_162, %c0_163, %c10_164] : memref<2x8x158xf32, #tpu.memory_space<vmem>>, vector<1x8x128xf32>
    %136 = vector.shape_cast %135 : vector<1x8x128xf32> to vector<8x128xf32>
    %c80_165 = arith.constant 80 : index
    %c128_166 = arith.constant 128 : index
    %137 = vector.load %arg7[%c80_165, %c128_166] : memref<256x256xf32, #tpu.memory_space<vmem>>, vector<8x128xf32>
    tpu.vector_store %arg7[%c80_165, %c128_166], %136 {strides = array<i32>} : memref<256x256xf32, #tpu.memory_space<vmem>>, vector<8x128xf32>,
    %c1_167 = arith.constant 1 : index
    %c0_168 = arith.constant 0 : index
    %c11_169 = arith.constant 11 : index
    %138 = vector.load %arg6[%c1_167, %c0_168, %c11_169] : memref<2x8x158xf32, #tpu.memory_space<vmem>>, vector<1x8x128xf32>
    %139 = vector.shape_cast %138 : vector<1x8x128xf32> to vector<8x128xf32>
    %c88_170 = arith.constant 88 : index
    %c128_171 = arith.constant 128 : index
    %140 = vector.load %arg7[%c88_170, %c128_171] : memref<256x256xf32, #tpu.memory_space<vmem>>, vector<8x128xf32>
    tpu.vector_store %arg7[%c88_170, %c128_171], %139 {strides = array<i32>} : memref<256x256xf32, #tpu.memory_space<vmem>>, vector<8x128xf32>,
    %c1_172 = arith.constant 1 : index
    %c0_173 = arith.constant 0 : index
    %c12_174 = arith.constant 12 : index
    %141 = vector.load %arg6[%c1_172, %c0_173, %c12_174] : memref<2x8x158xf32, #tpu.memory_space<vmem>>, vector<1x8x128xf32>
    %142 = vector.shape_cast %141 : vector<1x8x128xf32> to vector<8x128xf32>
    %c96_175 = arith.constant 96 : index
    %c128_176 = arith.constant 128 : index
    %143 = vector.load %arg7[%c96_175, %c128_176] : memref<256x256xf32, #tpu.memory_space<vmem>>, vector<8x128xf32>
    tpu.vector_store %arg7[%c96_175, %c128_176], %142 {strides = array<i32>} : memref<256x256xf32, #tpu.memory_space<vmem>>, vector<8x128xf32>,
    %c1_177 = arith.constant 1 : index
    %c0_178 = arith.constant 0 : index
    %c13_179 = arith.constant 13 : index
    %144 = vector.load %arg6[%c1_177, %c0_178, %c13_179] : memref<2x8x158xf32, #tpu.memory_space<vmem>>, vector<1x8x128xf32>
    %145 = vector.shape_cast %144 : vector<1x8x128xf32> to vector<8x128xf32>
    %c104_180 = arith.constant 104 : index
    %c128_181 = arith.constant 128 : index
    %146 = vector.load %arg7[%c104_180, %c128_181] : memref<256x256xf32, #tpu.memory_space<vmem>>, vector<8x128xf32>
    tpu.vector_store %arg7[%c104_180, %c128_181], %145 {strides = array<i32>} : memref<256x256xf32, #tpu.memory_space<vmem>>, vector<8x128xf32>,
    %c1_182 = arith.constant 1 : index
    %c0_183 = arith.constant 0 : index
    %c14_184 = arith.constant 14 : index
    %147 = vector.load %arg6[%c1_182, %c0_183, %c14_184] : memref<2x8x158xf32, #tpu.memory_space<vmem>>, vector<1x8x128xf32>
    %148 = vector.shape_cast %147 : vector<1x8x128xf32> to vector<8x128xf32>
    %c112_185 = arith.constant 112 : index
    %c128_186 = arith.constant 128 : index
    %149 = vector.load %arg7[%c112_185, %c128_186] : memref<256x256xf32, #tpu.memory_space<vmem>>, vector<8x128xf32>
    tpu.vector_store %arg7[%c112_185, %c128_186], %148 {strides = array<i32>} : memref<256x256xf32, #tpu.memory_space<vmem>>, vector<8x128xf32>,
    %c1_187 = arith.constant 1 : index
    %c0_188 = arith.constant 0 : index
    %c15_189 = arith.constant 15 : index
    %150 = vector.load %arg6[%c1_187, %c0_188, %c15_189] : memref<2x8x158xf32, #tpu.memory_space<vmem>>, vector<1x8x128xf32>
    %151 = vector.shape_cast %150 : vector<1x8x128xf32> to vector<8x128xf32>
    %c120_190 = arith.constant 120 : index
    %c128_191 = arith.constant 128 : index
    %152 = vector.load %arg7[%c120_190, %c128_191] : memref<256x256xf32, #tpu.memory_space<vmem>>, vector<8x128xf32>
    tpu.vector_store %arg7[%c120_190, %c128_191], %151 {strides = array<i32>} : memref<256x256xf32, #tpu.memory_space<vmem>>, vector<8x128xf32>,
    %c1_192 = arith.constant 1 : index
    %c0_193 = arith.constant 0 : index
    %c16_194 = arith.constant 16 : index
    %153 = vector.load %arg6[%c1_192, %c0_193, %c16_194] : memref<2x8x158xf32, #tpu.memory_space<vmem>>, vector<1x8x128xf32>
    %154 = vector.shape_cast %153 : vector<1x8x128xf32> to vector<8x128xf32>
    %c128_195 = arith.constant 128 : index
    %c128_196 = arith.constant 128 : index
    %155 = vector.load %arg7[%c128_195, %c128_196] : memref<256x256xf32, #tpu.memory_space<vmem>>, vector<8x128xf32>
    tpu.vector_store %arg7[%c128_195, %c128_196], %154 {strides = array<i32>} : memref<256x256xf32, #tpu.memory_space<vmem>>, vector<8x128xf32>,
    %c1_197 = arith.constant 1 : index
    %c0_198 = arith.constant 0 : index
    %c17_199 = arith.constant 17 : index
    %156 = vector.load %arg6[%c1_197, %c0_198, %c17_199] : memref<2x8x158xf32, #tpu.memory_space<vmem>>, vector<1x8x128xf32>
    %157 = vector.shape_cast %156 : vector<1x8x128xf32> to vector<8x128xf32>
    %c136_200 = arith.constant 136 : index
    %c128_201 = arith.constant 128 : index
    %158 = vector.load %arg7[%c136_200, %c128_201] : memref<256x256xf32, #tpu.memory_space<vmem>>, vector<8x128xf32>
    tpu.vector_store %arg7[%c136_200, %c128_201], %157 {strides = array<i32>} : memref<256x256xf32, #tpu.memory_space<vmem>>, vector<8x128xf32>,
    %c1_202 = arith.constant 1 : index
    %c0_203 = arith.constant 0 : index
    %c18_204 = arith.constant 18 : index
    %159 = vector.load %arg6[%c1_202, %c0_203, %c18_204] : memref<2x8x158xf32, #tpu.memory_space<vmem>>, vector<1x8x128xf32>
    %160 = vector.shape_cast %159 : vector<1x8x128xf32> to vector<8x128xf32>
    %c144_205 = arith.constant 144 : index
    %c128_206 = arith.constant 128 : index
    %161 = vector.load %arg7[%c144_205, %c128_206] : memref<256x256xf32, #tpu.memory_space<vmem>>, vector<8x128xf32>
    tpu.vector_store %arg7[%c144_205, %c128_206], %160 {strides = array<i32>} : memref<256x256xf32, #tpu.memory_space<vmem>>, vector<8x128xf32>,
    %c1_207 = arith.constant 1 : index
    %c0_208 = arith.constant 0 : index
    %c19_209 = arith.constant 19 : index
    %162 = vector.load %arg6[%c1_207, %c0_208, %c19_209] : memref<2x8x158xf32, #tpu.memory_space<vmem>>, vector<1x8x128xf32>
    %163 = vector.shape_cast %162 : vector<1x8x128xf32> to vector<8x128xf32>
    %c152_210 = arith.constant 152 : index
    %c128_211 = arith.constant 128 : index
    %164 = vector.load %arg7[%c152_210, %c128_211] : memref<256x256xf32, #tpu.memory_space<vmem>>, vector<8x128xf32>
    tpu.vector_store %arg7[%c152_210, %c128_211], %163 {strides = array<i32>} : memref<256x256xf32, #tpu.memory_space<vmem>>, vector<8x128xf32>,
    %c1_212 = arith.constant 1 : index
    %c0_213 = arith.constant 0 : index
    %c20_214 = arith.constant 20 : index
    %165 = vector.load %arg6[%c1_212, %c0_213, %c20_214] : memref<2x8x158xf32, #tpu.memory_space<vmem>>, vector<1x8x128xf32>
    %166 = vector.shape_cast %165 : vector<1x8x128xf32> to vector<8x128xf32>
    %c160_215 = arith.constant 160 : index
    %c128_216 = arith.constant 128 : index
    %167 = vector.load %arg7[%c160_215, %c128_216] : memref<256x256xf32, #tpu.memory_space<vmem>>, vector<8x128xf32>
    tpu.vector_store %arg7[%c160_215, %c128_216], %166 {strides = array<i32>} : memref<256x256xf32, #tpu.memory_space<vmem>>, vector<8x128xf32>,
    %c1_217 = arith.constant 1 : index
    %c0_218 = arith.constant 0 : index
    %c21_219 = arith.constant 21 : index
    %168 = vector.load %arg6[%c1_217, %c0_218, %c21_219] : memref<2x8x158xf32, #tpu.memory_space<vmem>>, vector<1x8x128xf32>
    %169 = vector.shape_cast %168 : vector<1x8x128xf32> to vector<8x128xf32>
    %c168_220 = arith.constant 168 : index
    %c128_221 = arith.constant 128 : index
    %170 = vector.load %arg7[%c168_220, %c128_221] : memref<256x256xf32, #tpu.memory_space<vmem>>, vector<8x128xf32>
    tpu.vector_store %arg7[%c168_220, %c128_221], %169 {strides = array<i32>} : memref<256x256xf32, #tpu.memory_space<vmem>>, vector<8x128xf32>,
    %c1_222 = arith.constant 1 : index
    %c0_223 = arith.constant 0 : index
    %c22_224 = arith.constant 22 : index
    %171 = vector.load %arg6[%c1_222, %c0_223, %c22_224] : memref<2x8x158xf32, #tpu.memory_space<vmem>>, vector<1x8x128xf32>
    %172 = vector.shape_cast %171 : vector<1x8x128xf32> to vector<8x128xf32>
    %c176_225 = arith.constant 176 : index
    %c128_226 = arith.constant 128 : index
    %173 = vector.load %arg7[%c176_225, %c128_226] : memref<256x256xf32, #tpu.memory_space<vmem>>, vector<8x128xf32>
    tpu.vector_store %arg7[%c176_225, %c128_226], %172 {strides = array<i32>} : memref<256x256xf32, #tpu.memory_space<vmem>>, vector<8x128xf32>,
    %c1_227 = arith.constant 1 : index
    %c0_228 = arith.constant 0 : index
    %c23_229 = arith.constant 23 : index
    %174 = vector.load %arg6[%c1_227, %c0_228, %c23_229] : memref<2x8x158xf32, #tpu.memory_space<vmem>>, vector<1x8x128xf32>
    %175 = vector.shape_cast %174 : vector<1x8x128xf32> to vector<8x128xf32>
    %c184_230 = arith.constant 184 : index
    %c128_231 = arith.constant 128 : index
    %176 = vector.load %arg7[%c184_230, %c128_231] : memref<256x256xf32, #tpu.memory_space<vmem>>, vector<8x128xf32>
    tpu.vector_store %arg7[%c184_230, %c128_231], %175 {strides = array<i32>} : memref<256x256xf32, #tpu.memory_space<vmem>>, vector<8x128xf32>,
    %c1_232 = arith.constant 1 : index
    %c0_233 = arith.constant 0 : index
    %c24_234 = arith.constant 24 : index
    %177 = vector.load %arg6[%c1_232, %c0_233, %c24_234] : memref<2x8x158xf32, #tpu.memory_space<vmem>>, vector<1x8x128xf32>
    %178 = vector.shape_cast %177 : vector<1x8x128xf32> to vector<8x128xf32>
    %c192_235 = arith.constant 192 : index
    %c128_236 = arith.constant 128 : index
    %179 = vector.load %arg7[%c192_235, %c128_236] : memref<256x256xf32, #tpu.memory_space<vmem>>, vector<8x128xf32>
    tpu.vector_store %arg7[%c192_235, %c128_236], %178 {strides = array<i32>} : memref<256x256xf32, #tpu.memory_space<vmem>>, vector<8x128xf32>,
    %c1_237 = arith.constant 1 : index
    %c0_238 = arith.constant 0 : index
    %c25_239 = arith.constant 25 : index
    %180 = vector.load %arg6[%c1_237, %c0_238, %c25_239] : memref<2x8x158xf32, #tpu.memory_space<vmem>>, vector<1x8x128xf32>
    %181 = vector.shape_cast %180 : vector<1x8x128xf32> to vector<8x128xf32>
    %c200_240 = arith.constant 200 : index
    %c128_241 = arith.constant 128 : index
    %182 = vector.load %arg7[%c200_240, %c128_241] : memref<256x256xf32, #tpu.memory_space<vmem>>, vector<8x128xf32>
    tpu.vector_store %arg7[%c200_240, %c128_241], %181 {strides = array<i32>} : memref<256x256xf32, #tpu.memory_space<vmem>>, vector<8x128xf32>,
    %c1_242 = arith.constant 1 : index
    %c0_243 = arith.constant 0 : index
    %c26_244 = arith.constant 26 : index
    %183 = vector.load %arg6[%c1_242, %c0_243, %c26_244] : memref<2x8x158xf32, #tpu.memory_space<vmem>>, vector<1x8x128xf32>
    %184 = vector.shape_cast %183 : vector<1x8x128xf32> to vector<8x128xf32>
    %c208_245 = arith.constant 208 : index
    %c128_246 = arith.constant 128 : index
    %185 = vector.load %arg7[%c208_245, %c128_246] : memref<256x256xf32, #tpu.memory_space<vmem>>, vector<8x128xf32>
    tpu.vector_store %arg7[%c208_245, %c128_246], %184 {strides = array<i32>} : memref<256x256xf32, #tpu.memory_space<vmem>>, vector<8x128xf32>,
    %c1_247 = arith.constant 1 : index
    %c0_248 = arith.constant 0 : index
    %c27_249 = arith.constant 27 : index
    %186 = vector.load %arg6[%c1_247, %c0_248, %c27_249] : memref<2x8x158xf32, #tpu.memory_space<vmem>>, vector<1x8x128xf32>
    %187 = vector.shape_cast %186 : vector<1x8x128xf32> to vector<8x128xf32>
    %c216_250 = arith.constant 216 : index
    %c128_251 = arith.constant 128 : index
    %188 = vector.load %arg7[%c216_250, %c128_251] : memref<256x256xf32, #tpu.memory_space<vmem>>, vector<8x128xf32>
    tpu.vector_store %arg7[%c216_250, %c128_251], %187 {strides = array<i32>} : memref<256x256xf32, #tpu.memory_space<vmem>>, vector<8x128xf32>,
    %c1_252 = arith.constant 1 : index
    %c0_253 = arith.constant 0 : index
    %c28_254 = arith.constant 28 : index
    %189 = vector.load %arg6[%c1_252, %c0_253, %c28_254] : memref<2x8x158xf32, #tpu.memory_space<vmem>>, vector<1x8x128xf32>
    %190 = vector.shape_cast %189 : vector<1x8x128xf32> to vector<8x128xf32>
    %c224_255 = arith.constant 224 : index
    %c128_256 = arith.constant 128 : index
    %191 = vector.load %arg7[%c224_255, %c128_256] : memref<256x256xf32, #tpu.memory_space<vmem>>, vector<8x128xf32>
    tpu.vector_store %arg7[%c224_255, %c128_256], %190 {strides = array<i32>} : memref<256x256xf32, #tpu.memory_space<vmem>>, vector<8x128xf32>,
    %c1_257 = arith.constant 1 : index
    %c0_258 = arith.constant 0 : index
    %c29_259 = arith.constant 29 : index
    %192 = vector.load %arg6[%c1_257, %c0_258, %c29_259] : memref<2x8x158xf32, #tpu.memory_space<vmem>>, vector<1x8x128xf32>
    %193 = vector.shape_cast %192 : vector<1x8x128xf32> to vector<8x128xf32>
    %c232_260 = arith.constant 232 : index
    %c128_261 = arith.constant 128 : index
    %194 = vector.load %arg7[%c232_260, %c128_261] : memref<256x256xf32, #tpu.memory_space<vmem>>, vector<8x128xf32>
    tpu.vector_store %arg7[%c232_260, %c128_261], %193 {strides = array<i32>} : memref<256x256xf32, #tpu.memory_space<vmem>>, vector<8x128xf32>,
    %c1_262 = arith.constant 1 : index
    %c0_263 = arith.constant 0 : index
    %c30_264 = arith.constant 30 : index
    %195 = vector.load %arg6[%c1_262, %c0_263, %c30_264] : memref<2x8x158xf32, #tpu.memory_space<vmem>>, vector<1x8x128xf32>
    %196 = vector.shape_cast %195 : vector<1x8x128xf32> to vector<8x128xf32>
    %c240_265 = arith.constant 240 : index
    %c128_266 = arith.constant 128 : index
    %197 = vector.load %arg7[%c240_265, %c128_266] : memref<256x256xf32, #tpu.memory_space<vmem>>, vector<8x128xf32>
    tpu.vector_store %arg7[%c240_265, %c128_266], %196 {strides = array<i32>} : memref<256x256xf32, #tpu.memory_space<vmem>>, vector<8x128xf32>,
    %c0_267 = arith.constant 0 : index
    %c0_268 = arith.constant 0 : index
    %198 = vector.load %arg2[%c0_267, %c0_268] : memref<8x256xf32, #tpu.memory_space<vmem>>, vector<8x256xf32>
    %c0_269 = arith.constant 0 : index
    %c0_270 = arith.constant 0 : index
    %199 = vector.load %arg7[%c0_269, %c0_270] : memref<256x256xf32, #tpu.memory_space<vmem>>, vector<256x256xf32>
    %cst_271 = arith.constant dense<0.000000e+00> : vector<8x256xf32>
    %200 = tpu.matmul %198, %199, %cst_271 {dimension_numbers = #tpu.dot_dimension_numbers<[1], [0], [0], [1], [0, 0, 1, 1], [], []>} : vector<8x256xf32>, vector<256x256xf32>, vector<8x256xf32> -> vector<8x256xf32>
    %201 = vector.extract_strided_slice %200 {offsets = [0, 0], sizes = [8, 128], strides = [1, 1]} : vector<8x256xf32> to vector<8x128xf32>
    %cst_272 = arith.constant dense<0.000000e+00> : vector<8xf32>
    %202 = vector.multi_reduction <add>, %201, %cst_272 [1] : vector<8x128xf32> to vector<8xf32>
    %203 = vector.shape_cast %202 : vector<8xf32> to vector<8x1xf32>
    %204 = arith.mulf %201, %201 : vector<8x128xf32>
    %cst_273 = arith.constant dense<0.000000e+00> : vector<8xf32>
    %205 = vector.multi_reduction <add>, %204, %cst_273 [1] : vector<8x128xf32> to vector<8xf32>
    %206 = vector.shape_cast %205 : vector<8xf32> to vector<8x1xf32>
    %cst_274 = arith.constant 7.812500e-03 : f32
    %207 = vector.broadcast %cst_274 : f32 to vector<8x1xf32>
    %208 = arith.mulf %203, %207 : vector<8x1xf32>
    %cst_275 = arith.constant 7.812500e-03 : f32
    %209 = vector.broadcast %cst_275 : f32 to vector<8x1xf32>
    %210 = arith.mulf %206, %209 : vector<8x1xf32>
    %211 = arith.mulf %208, %208 : vector<8x1xf32>
    %212 = arith.subf %210, %211 : vector<8x1xf32>
    %213 = vector.broadcast %208 : vector<8x1xf32> to vector<8x128xf32>
    %214 = arith.subf %201, %213 : vector<8x128xf32>
    %cst_276 = arith.constant 9.99999974E-6 : f32
    %215 = vector.broadcast %cst_276 : f32 to vector<8x1xf32>
    %216 = arith.addf %212, %215 : vector<8x1xf32>
    %217 = math.rsqrt %216 : vector<8x1xf32>
    %218 = vector.broadcast %217 : vector<8x1xf32> to vector<8x128xf32>
    %219 = arith.mulf %214, %218 : vector<8x128xf32>
    %220 = vector.broadcast %6 : vector<8x1xf32> to vector<8x128xf32>
    %221 = arith.mulf %219, %220 : vector<8x128xf32>
    %222 = vector.broadcast %7 : vector<8x1xf32> to vector<8x128xf32>
    %223 = arith.addf %221, %222 : vector<8x128xf32>
    %cst_277 = arith.constant 0.000000e+00 : f32
    %224 = vector.broadcast %cst_277 : f32 to vector<8x128xf32>
    %225 = arith.maximumf %223, %224 : vector<8x128xf32>
    %c0_278 = arith.constant 0 : index
    %c0_279 = arith.constant 0 : index
    %c15_280 = arith.constant 15 : index
    %226 = vector.load %arg6[%c0_278, %c0_279, %c15_280] : memref<2x8x158xf32, #tpu.memory_space<vmem>>, vector<1x8x128xf32>
    %227 = vector.shape_cast %226 : vector<1x8x128xf32> to vector<8x128xf32>
    %228 = vector.shape_cast %225 : vector<8x128xf32> to vector<1x8x128xf32>
    tpu.vector_store %arg6[%c0_278, %c0_279, %c15_280], %228 {strides = array<i32>} : memref<2x8x158xf32, #tpu.memory_space<vmem>>, vector<1x8x128xf32>,
    %229 = vector.extract_strided_slice %200 {offsets = [0, 128], sizes = [8, 128], strides = [1, 1]} : vector<8x256xf32> to vector<8x128xf32>
    %cst_281 = arith.constant dense<0.000000e+00> : vector<8xf32>
    %230 = vector.multi_reduction <add>, %229, %cst_281 [1] : vector<8x128xf32> to vector<8xf32>
    %231 = vector.shape_cast %230 : vector<8xf32> to vector<8x1xf32>
    %232 = arith.mulf %229, %229 : vector<8x128xf32>
    %cst_282 = arith.constant dense<0.000000e+00> : vector<8xf32>
    %233 = vector.multi_reduction <add>, %232, %cst_282 [1] : vector<8x128xf32> to vector<8xf32>
    %234 = vector.shape_cast %233 : vector<8xf32> to vector<8x1xf32>
    %cst_283 = arith.constant 7.812500e-03 : f32
    %235 = vector.broadcast %cst_283 : f32 to vector<8x1xf32>
    %236 = arith.mulf %231, %235 : vector<8x1xf32>
    %cst_284 = arith.constant 7.812500e-03 : f32
    %237 = vector.broadcast %cst_284 : f32 to vector<8x1xf32>
    %238 = arith.mulf %234, %237 : vector<8x1xf32>
    %239 = arith.mulf %236, %236 : vector<8x1xf32>
    %240 = arith.subf %238, %239 : vector<8x1xf32>
    %241 = vector.broadcast %236 : vector<8x1xf32> to vector<8x128xf32>
    %242 = arith.subf %229, %241 : vector<8x128xf32>
    %cst_285 = arith.constant 9.99999974E-6 : f32
    %243 = vector.broadcast %cst_285 : f32 to vector<8x1xf32>
    %244 = arith.addf %240, %243 : vector<8x1xf32>
    %245 = math.rsqrt %244 : vector<8x1xf32>
    %246 = vector.broadcast %245 : vector<8x1xf32> to vector<8x128xf32>
    %247 = arith.mulf %242, %246 : vector<8x128xf32>
    %248 = vector.broadcast %6 : vector<8x1xf32> to vector<8x128xf32>
    %249 = arith.mulf %247, %248 : vector<8x128xf32>
    %250 = vector.broadcast %7 : vector<8x1xf32> to vector<8x128xf32>
    %251 = arith.addf %249, %250 : vector<8x128xf32>
    %cst_286 = arith.constant 0.000000e+00 : f32
    %252 = vector.broadcast %cst_286 : f32 to vector<8x128xf32>
    %253 = arith.maximumf %251, %252 : vector<8x128xf32>
    %c1_287 = arith.constant 1 : index
    %c0_288 = arith.constant 0 : index
    %c15_289 = arith.constant 15 : index
    %254 = vector.load %arg6[%c1_287, %c0_288, %c15_289] : memref<2x8x158xf32, #tpu.memory_space<vmem>>, vector<1x8x128xf32>
    %255 = vector.shape_cast %254 : vector<1x8x128xf32> to vector<8x128xf32>
    %256 = vector.shape_cast %253 : vector<8x128xf32> to vector<1x8x128xf32>
    tpu.vector_store %arg6[%c1_287, %c0_288, %c15_289], %256 {strides = array<i32>} : memref<2x8x158xf32, #tpu.memory_space<vmem>>, vector<1x8x128xf32>,
    %c0_290 = arith.constant 0 : index
    %c0_291 = arith.constant 0 : index
    %c0_292 = arith.constant 0 : index
    %257 = vector.load %arg6[%c0_290, %c0_291, %c0_292] : memref<2x8x158xf32, #tpu.memory_space<vmem>>, vector<1x8x128xf32>
    %258 = vector.shape_cast %257 : vector<1x8x128xf32> to vector<8x128xf32>
    %c0_293 = arith.constant 0 : index
    %c0_294 = arith.constant 0 : index
    %259 = vector.load %arg7[%c0_293, %c0_294] : memref<256x256xf32, #tpu.memory_space<vmem>>, vector<8x128xf32>
    tpu.vector_store %arg7[%c0_293, %c0_294], %258 {strides = array<i32>} : memref<256x256xf32, #tpu.memory_space<vmem>>, vector<8x128xf32>,
    %c0_295 = arith.constant 0 : index
    %c0_296 = arith.constant 0 : index
    %c1_297 = arith.constant 1 : index
    %260 = vector.load %arg6[%c0_295, %c0_296, %c1_297] : memref<2x8x158xf32, #tpu.memory_space<vmem>>, vector<1x8x128xf32>
    %261 = vector.shape_cast %260 : vector<1x8x128xf32> to vector<8x128xf32>
    %c8_298 = arith.constant 8 : index
    %c0_299 = arith.constant 0 : index
    %262 = vector.load %arg7[%c8_298, %c0_299] : memref<256x256xf32, #tpu.memory_space<vmem>>, vector<8x128xf32>
    tpu.vector_store %arg7[%c8_298, %c0_299], %261 {strides = array<i32>} : memref<256x256xf32, #tpu.memory_space<vmem>>, vector<8x128xf32>,
    %c0_300 = arith.constant 0 : index
    %c0_301 = arith.constant 0 : index
    %c2_302 = arith.constant 2 : index
    %263 = vector.load %arg6[%c0_300, %c0_301, %c2_302] : memref<2x8x158xf32, #tpu.memory_space<vmem>>, vector<1x8x128xf32>
    %264 = vector.shape_cast %263 : vector<1x8x128xf32> to vector<8x128xf32>
    %c16_303 = arith.constant 16 : index
    %c0_304 = arith.constant 0 : index
    %265 = vector.load %arg7[%c16_303, %c0_304] : memref<256x256xf32, #tpu.memory_space<vmem>>, vector<8x128xf32>
    tpu.vector_store %arg7[%c16_303, %c0_304], %264 {strides = array<i32>} : memref<256x256xf32, #tpu.memory_space<vmem>>, vector<8x128xf32>,
    %c0_305 = arith.constant 0 : index
    %c0_306 = arith.constant 0 : index
    %c3_307 = arith.constant 3 : index
    %266 = vector.load %arg6[%c0_305, %c0_306, %c3_307] : memref<2x8x158xf32, #tpu.memory_space<vmem>>, vector<1x8x128xf32>
    %267 = vector.shape_cast %266 : vector<1x8x128xf32> to vector<8x128xf32>
    %c24_308 = arith.constant 24 : index
    %c0_309 = arith.constant 0 : index
    %268 = vector.load %arg7[%c24_308, %c0_309] : memref<256x256xf32, #tpu.memory_space<vmem>>, vector<8x128xf32>
    tpu.vector_store %arg7[%c24_308, %c0_309], %267 {strides = array<i32>} : memref<256x256xf32, #tpu.memory_space<vmem>>, vector<8x128xf32>,
    %c0_310 = arith.constant 0 : index
    %c0_311 = arith.constant 0 : index
    %c4_312 = arith.constant 4 : index
    %269 = vector.load %arg6[%c0_310, %c0_311, %c4_312] : memref<2x8x158xf32, #tpu.memory_space<vmem>>, vector<1x8x128xf32>
    %270 = vector.shape_cast %269 : vector<1x8x128xf32> to vector<8x128xf32>
    %c32_313 = arith.constant 32 : index
    %c0_314 = arith.constant 0 : index
    %271 = vector.load %arg7[%c32_313, %c0_314] : memref<256x256xf32, #tpu.memory_space<vmem>>, vector<8x128xf32>
    tpu.vector_store %arg7[%c32_313, %c0_314], %270 {strides = array<i32>} : memref<256x256xf32, #tpu.memory_space<vmem>>, vector<8x128xf32>,
    %c0_315 = arith.constant 0 : index
    %c0_316 = arith.constant 0 : index
    %c5_317 = arith.constant 5 : index
    %272 = vector.load %arg6[%c0_315, %c0_316, %c5_317] : memref<2x8x158xf32, #tpu.memory_space<vmem>>, vector<1x8x128xf32>
    %273 = vector.shape_cast %272 : vector<1x8x128xf32> to vector<8x128xf32>
    %c40_318 = arith.constant 40 : index
    %c0_319 = arith.constant 0 : index
    %274 = vector.load %arg7[%c40_318, %c0_319] : memref<256x256xf32, #tpu.memory_space<vmem>>, vector<8x128xf32>
    tpu.vector_store %arg7[%c40_318, %c0_319], %273 {strides = array<i32>} : memref<256x256xf32, #tpu.memory_space<vmem>>, vector<8x128xf32>,
    %c0_320 = arith.constant 0 : index
    %c0_321 = arith.constant 0 : index
    %c6_322 = arith.constant 6 : index
    %275 = vector.load %arg6[%c0_320, %c0_321, %c6_322] : memref<2x8x158xf32, #tpu.memory_space<vmem>>, vector<1x8x128xf32>
    %276 = vector.shape_cast %275 : vector<1x8x128xf32> to vector<8x128xf32>
    %c48_323 = arith.constant 48 : index
    %c0_324 = arith.constant 0 : index
    %277 = vector.load %arg7[%c48_323, %c0_324] : memref<256x256xf32, #tpu.memory_space<vmem>>, vector<8x128xf32>
    tpu.vector_store %arg7[%c48_323, %c0_324], %276 {strides = array<i32>} : memref<256x256xf32, #tpu.memory_space<vmem>>, vector<8x128xf32>,
    %c0_325 = arith.constant 0 : index
    %c0_326 = arith.constant 0 : index
    %c7_327 = arith.constant 7 : index
    %278 = vector.load %arg6[%c0_325, %c0_326, %c7_327] : memref<2x8x158xf32, #tpu.memory_space<vmem>>, vector<1x8x128xf32>
    %279 = vector.shape_cast %278 : vector<1x8x128xf32> to vector<8x128xf32>
    %c56_328 = arith.constant 56 : index
    %c0_329 = arith.constant 0 : index
    %280 = vector.load %arg7[%c56_328, %c0_329] : memref<256x256xf32, #tpu.memory_space<vmem>>, vector<8x128xf32>
    tpu.vector_store %arg7[%c56_328, %c0_329], %279 {strides = array<i32>} : memref<256x256xf32, #tpu.memory_space<vmem>>, vector<8x128xf32>,
    %c0_330 = arith.constant 0 : index
    %c0_331 = arith.constant 0 : index
    %c8_332 = arith.constant 8 : index
    %281 = vector.load %arg6[%c0_330, %c0_331, %c8_332] : memref<2x8x158xf32, #tpu.memory_space<vmem>>, vector<1x8x128xf32>
    %282 = vector.shape_cast %281 : vector<1x8x128xf32> to vector<8x128xf32>
    %c64_333 = arith.constant 64 : index
    %c0_334 = arith.constant 0 : index
    %283 = vector.load %arg7[%c64_333, %c0_334] : memref<256x256xf32, #tpu.memory_space<vmem>>, vector<8x128xf32>
    tpu.vector_store %arg7[%c64_333, %c0_334], %282 {strides = array<i32>} : memref<256x256xf32, #tpu.memory_space<vmem>>, vector<8x128xf32>,
    %c0_335 = arith.constant 0 : index
    %c0_336 = arith.constant 0 : index
    %c9_337 = arith.constant 9 : index
    %284 = vector.load %arg6[%c0_335, %c0_336, %c9_337] : memref<2x8x158xf32, #tpu.memory_space<vmem>>, vector<1x8x128xf32>
    %285 = vector.shape_cast %284 : vector<1x8x128xf32> to vector<8x128xf32>
    %c72_338 = arith.constant 72 : index
    %c0_339 = arith.constant 0 : index
    %286 = vector.load %arg7[%c72_338, %c0_339] : memref<256x256xf32, #tpu.memory_space<vmem>>, vector<8x128xf32>
    tpu.vector_store %arg7[%c72_338, %c0_339], %285 {strides = array<i32>} : memref<256x256xf32, #tpu.memory_space<vmem>>, vector<8x128xf32>,
    %c0_340 = arith.constant 0 : index
    %c0_341 = arith.constant 0 : index
    %c10_342 = arith.constant 10 : index
    %287 = vector.load %arg6[%c0_340, %c0_341, %c10_342] : memref<2x8x158xf32, #tpu.memory_space<vmem>>, vector<1x8x128xf32>
    %288 = vector.shape_cast %287 : vector<1x8x128xf32> to vector<8x128xf32>
    %c80_343 = arith.constant 80 : index
    %c0_344 = arith.constant 0 : index
    %289 = vector.load %arg7[%c80_343, %c0_344] : memref<256x256xf32, #tpu.memory_space<vmem>>, vector<8x128xf32>
    tpu.vector_store %arg7[%c80_343, %c0_344], %288 {strides = array<i32>} : memref<256x256xf32, #tpu.memory_space<vmem>>, vector<8x128xf32>,
    %c0_345 = arith.constant 0 : index
    %c0_346 = arith.constant 0 : index
    %c11_347 = arith.constant 11 : index
    %290 = vector.load %arg6[%c0_345, %c0_346, %c11_347] : memref<2x8x158xf32, #tpu.memory_space<vmem>>, vector<1x8x128xf32>
    %291 = vector.shape_cast %290 : vector<1x8x128xf32> to vector<8x128xf32>
    %c88_348 = arith.constant 88 : index
    %c0_349 = arith.constant 0 : index
    %292 = vector.load %arg7[%c88_348, %c0_349] : memref<256x256xf32, #tpu.memory_space<vmem>>, vector<8x128xf32>
    tpu.vector_store %arg7[%c88_348, %c0_349], %291 {strides = array<i32>} : memref<256x256xf32, #tpu.memory_space<vmem>>, vector<8x128xf32>,
    %c0_350 = arith.constant 0 : index
    %c0_351 = arith.constant 0 : index
    %c12_352 = arith.constant 12 : index
    %293 = vector.load %arg6[%c0_350, %c0_351, %c12_352] : memref<2x8x158xf32, #tpu.memory_space<vmem>>, vector<1x8x128xf32>
    %294 = vector.shape_cast %293 : vector<1x8x128xf32> to vector<8x128xf32>
    %c96_353 = arith.constant 96 : index
    %c0_354 = arith.constant 0 : index
    %295 = vector.load %arg7[%c96_353, %c0_354] : memref<256x256xf32, #tpu.memory_space<vmem>>, vector<8x128xf32>
    tpu.vector_store %arg7[%c96_353, %c0_354], %294 {strides = array<i32>} : memref<256x256xf32, #tpu.memory_space<vmem>>, vector<8x128xf32>,
    %c0_355 = arith.constant 0 : index
    %c0_356 = arith.constant 0 : index
    %c13_357 = arith.constant 13 : index
    %296 = vector.load %arg6[%c0_355, %c0_356, %c13_357] : memref<2x8x158xf32, #tpu.memory_space<vmem>>, vector<1x8x128xf32>
    %297 = vector.shape_cast %296 : vector<1x8x128xf32> to vector<8x128xf32>
    %c104_358 = arith.constant 104 : index
    %c0_359 = arith.constant 0 : index
    %298 = vector.load %arg7[%c104_358, %c0_359] : memref<256x256xf32, #tpu.memory_space<vmem>>, vector<8x128xf32>
    tpu.vector_store %arg7[%c104_358, %c0_359], %297 {strides = array<i32>} : memref<256x256xf32, #tpu.memory_space<vmem>>, vector<8x128xf32>,
    %c0_360 = arith.constant 0 : index
    %c0_361 = arith.constant 0 : index
    %c14_362 = arith.constant 14 : index
    %299 = vector.load %arg6[%c0_360, %c0_361, %c14_362] : memref<2x8x158xf32, #tpu.memory_space<vmem>>, vector<1x8x128xf32>
    %300 = vector.shape_cast %299 : vector<1x8x128xf32> to vector<8x128xf32>
    %c112_363 = arith.constant 112 : index
    %c0_364 = arith.constant 0 : index
    %301 = vector.load %arg7[%c112_363, %c0_364] : memref<256x256xf32, #tpu.memory_space<vmem>>, vector<8x128xf32>
    tpu.vector_store %arg7[%c112_363, %c0_364], %300 {strides = array<i32>} : memref<256x256xf32, #tpu.memory_space<vmem>>, vector<8x128xf32>,
    %c0_365 = arith.constant 0 : index
    %c0_366 = arith.constant 0 : index
    %c15_367 = arith.constant 15 : index
    %302 = vector.load %arg6[%c0_365, %c0_366, %c15_367] : memref<2x8x158xf32, #tpu.memory_space<vmem>>, vector<1x8x128xf32>
    %303 = vector.shape_cast %302 : vector<1x8x128xf32> to vector<8x128xf32>
    %c120_368 = arith.constant 120 : index
    %c0_369 = arith.constant 0 : index
    %304 = vector.load %arg7[%c120_368, %c0_369] : memref<256x256xf32, #tpu.memory_space<vmem>>, vector<8x128xf32>
    tpu.vector_store %arg7[%c120_368, %c0_369], %303 {strides = array<i32>} : memref<256x256xf32, #tpu.memory_space<vmem>>, vector<8x128xf32>,
    %c0_370 = arith.constant 0 : index
    %c0_371 = arith.constant 0 : index
    %c16_372 = arith.constant 16 : index
    %305 = vector.load %arg6[%c0_370, %c0_371, %c16_372] : memref<2x8x158xf32, #tpu.memory_space<vmem>>, vector<1x8x128xf32>
    %306 = vector.shape_cast %305 : vector<1x8x128xf32> to vector<8x128xf32>
    %c128_373 = arith.constant 128 : index
    %c0_374 = arith.constant 0 : index
    %307 = vector.load %arg7[%c128_373, %c0_374] : memref<256x256xf32, #tpu.memory_space<vmem>>, vector<8x128xf32>
    tpu.vector_store %arg7[%c128_373, %c0_374], %306 {strides = array<i32>} : memref<256x256xf32, #tpu.memory_space<vmem>>, vector<8x128xf32>,
    %c0_375 = arith.constant 0 : index
    %c0_376 = arith.constant 0 : index
    %c17_377 = arith.constant 17 : index
    %308 = vector.load %arg6[%c0_375, %c0_376, %c17_377] : memref<2x8x158xf32, #tpu.memory_space<vmem>>, vector<1x8x128xf32>
    %309 = vector.shape_cast %308 : vector<1x8x128xf32> to vector<8x128xf32>
    %c136_378 = arith.constant 136 : index
    %c0_379 = arith.constant 0 : index
    %310 = vector.load %arg7[%c136_378, %c0_379] : memref<256x256xf32, #tpu.memory_space<vmem>>, vector<8x128xf32>
    tpu.vector_store %arg7[%c136_378, %c0_379], %309 {strides = array<i32>} : memref<256x256xf32, #tpu.memory_space<vmem>>, vector<8x128xf32>,
    %c0_380 = arith.constant 0 : index
    %c0_381 = arith.constant 0 : index
    %c18_382 = arith.constant 18 : index
    %311 = vector.load %arg6[%c0_380, %c0_381, %c18_382] : memref<2x8x158xf32, #tpu.memory_space<vmem>>, vector<1x8x128xf32>
    %312 = vector.shape_cast %311 : vector<1x8x128xf32> to vector<8x128xf32>
    %c144_383 = arith.constant 144 : index
    %c0_384 = arith.constant 0 : index
    %313 = vector.load %arg7[%c144_383, %c0_384] : memref<256x256xf32, #tpu.memory_space<vmem>>, vector<8x128xf32>
    tpu.vector_store %arg7[%c144_383, %c0_384], %312 {strides = array<i32>} : memref<256x256xf32, #tpu.memory_space<vmem>>, vector<8x128xf32>,
    %c0_385 = arith.constant 0 : index
    %c0_386 = arith.constant 0 : index
    %c19_387 = arith.constant 19 : index
    %314 = vector.load %arg6[%c0_385, %c0_386, %c19_387] : memref<2x8x158xf32, #tpu.memory_space<vmem>>, vector<1x8x128xf32>
    %315 = vector.shape_cast %314 : vector<1x8x128xf32> to vector<8x128xf32>
    %c152_388 = arith.constant 152 : index
    %c0_389 = arith.constant 0 : index
    %316 = vector.load %arg7[%c152_388, %c0_389] : memref<256x256xf32, #tpu.memory_space<vmem>>, vector<8x128xf32>
    tpu.vector_store %arg7[%c152_388, %c0_389], %315 {strides = array<i32>} : memref<256x256xf32, #tpu.memory_space<vmem>>, vector<8x128xf32>,
    %c0_390 = arith.constant 0 : index
    %c0_391 = arith.constant 0 : index
    %c20_392 = arith.constant 20 : index
    %317 = vector.load %arg6[%c0_390, %c0_391, %c20_392] : memref<2x8x158xf32, #tpu.memory_space<vmem>>, vector<1x8x128xf32>
    %318 = vector.shape_cast %317 : vector<1x8x128xf32> to vector<8x128xf32>
    %c160_393 = arith.constant 160 : index
    %c0_394 = arith.constant 0 : index
    %319 = vector.load %arg7[%c160_393, %c0_394] : memref<256x256xf32, #tpu.memory_space<vmem>>, vector<8x128xf32>
    tpu.vector_store %arg7[%c160_393, %c0_394], %318 {strides = array<i32>} : memref<256x256xf32, #tpu.memory_space<vmem>>, vector<8x128xf32>,
    %c0_395 = arith.constant 0 : index
    %c0_396 = arith.constant 0 : index
    %c21_397 = arith.constant 21 : index
    %320 = vector.load %arg6[%c0_395, %c0_396, %c21_397] : memref<2x8x158xf32, #tpu.memory_space<vmem>>, vector<1x8x128xf32>
    %321 = vector.shape_cast %320 : vector<1x8x128xf32> to vector<8x128xf32>
    %c168_398 = arith.constant 168 : index
    %c0_399 = arith.constant 0 : index
    %322 = vector.load %arg7[%c168_398, %c0_399] : memref<256x256xf32, #tpu.memory_space<vmem>>, vector<8x128xf32>
    tpu.vector_store %arg7[%c168_398, %c0_399], %321 {strides = array<i32>} : memref<256x256xf32, #tpu.memory_space<vmem>>, vector<8x128xf32>,
    %c0_400 = arith.constant 0 : index
    %c0_401 = arith.constant 0 : index
    %c22_402 = arith.constant 22 : index
    %323 = vector.load %arg6[%c0_400, %c0_401, %c22_402] : memref<2x8x158xf32, #tpu.memory_space<vmem>>, vector<1x8x128xf32>
    %324 = vector.shape_cast %323 : vector<1x8x128xf32> to vector<8x128xf32>
    %c176_403 = arith.constant 176 : index
    %c0_404 = arith.constant 0 : index
    %325 = vector.load %arg7[%c176_403, %c0_404] : memref<256x256xf32, #tpu.memory_space<vmem>>, vector<8x128xf32>
    tpu.vector_store %arg7[%c176_403, %c0_404], %324 {strides = array<i32>} : memref<256x256xf32, #tpu.memory_space<vmem>>, vector<8x128xf32>,
    %c0_405 = arith.constant 0 : index
    %c0_406 = arith.constant 0 : index
    %c23_407 = arith.constant 23 : index
    %326 = vector.load %arg6[%c0_405, %c0_406, %c23_407] : memref<2x8x158xf32, #tpu.memory_space<vmem>>, vector<1x8x128xf32>
    %327 = vector.shape_cast %326 : vector<1x8x128xf32> to vector<8x128xf32>
    %c184_408 = arith.constant 184 : index
    %c0_409 = arith.constant 0 : index
    %328 = vector.load %arg7[%c184_408, %c0_409] : memref<256x256xf32, #tpu.memory_space<vmem>>, vector<8x128xf32>
    tpu.vector_store %arg7[%c184_408, %c0_409], %327 {strides = array<i32>} : memref<256x256xf32, #tpu.memory_space<vmem>>, vector<8x128xf32>,
    %c0_410 = arith.constant 0 : index
    %c0_411 = arith.constant 0 : index
    %c24_412 = arith.constant 24 : index
    %329 = vector.load %arg6[%c0_410, %c0_411, %c24_412] : memref<2x8x158xf32, #tpu.memory_space<vmem>>, vector<1x8x128xf32>
    %330 = vector.shape_cast %329 : vector<1x8x128xf32> to vector<8x128xf32>
    %c192_413 = arith.constant 192 : index
    %c0_414 = arith.constant 0 : index
    %331 = vector.load %arg7[%c192_413, %c0_414] : memref<256x256xf32, #tpu.memory_space<vmem>>, vector<8x128xf32>
    tpu.vector_store %arg7[%c192_413, %c0_414], %330 {strides = array<i32>} : memref<256x256xf32, #tpu.memory_space<vmem>>, vector<8x128xf32>,
    %c0_415 = arith.constant 0 : index
    %c0_416 = arith.constant 0 : index
    %c25_417 = arith.constant 25 : index
    %332 = vector.load %arg6[%c0_415, %c0_416, %c25_417] : memref<2x8x158xf32, #tpu.memory_space<vmem>>, vector<1x8x128xf32>
    %333 = vector.shape_cast %332 : vector<1x8x128xf32> to vector<8x128xf32>
    %c200_418 = arith.constant 200 : index
    %c0_419 = arith.constant 0 : index
    %334 = vector.load %arg7[%c200_418, %c0_419] : memref<256x256xf32, #tpu.memory_space<vmem>>, vector<8x128xf32>
    tpu.vector_store %arg7[%c200_418, %c0_419], %333 {strides = array<i32>} : memref<256x256xf32, #tpu.memory_space<vmem>>, vector<8x128xf32>,
    %c0_420 = arith.constant 0 : index
    %c0_421 = arith.constant 0 : index
    %c26_422 = arith.constant 26 : index
    %335 = vector.load %arg6[%c0_420, %c0_421, %c26_422] : memref<2x8x158xf32, #tpu.memory_space<vmem>>, vector<1x8x128xf32>
    %336 = vector.shape_cast %335 : vector<1x8x128xf32> to vector<8x128xf32>
    %c208_423 = arith.constant 208 : index
    %c0_424 = arith.constant 0 : index
    %337 = vector.load %arg7[%c208_423, %c0_424] : memref<256x256xf32, #tpu.memory_space<vmem>>, vector<8x128xf32>
    tpu.vector_store %arg7[%c208_423, %c0_424], %336 {strides = array<i32>} : memref<256x256xf32, #tpu.memory_space<vmem>>, vector<8x128xf32>,
    %c0_425 = arith.constant 0 : index
    %c0_426 = arith.constant 0 : index
    %c27_427 = arith.constant 27 : index
    %338 = vector.load %arg6[%c0_425, %c0_426, %c27_427] : memref<2x8x158xf32, #tpu.memory_space<vmem>>, vector<1x8x128xf32>
    %339 = vector.shape_cast %338 : vector<1x8x128xf32> to vector<8x128xf32>
    %c216_428 = arith.constant 216 : index
    %c0_429 = arith.constant 0 : index
    %340 = vector.load %arg7[%c216_428, %c0_429] : memref<256x256xf32, #tpu.memory_space<vmem>>, vector<8x128xf32>
    tpu.vector_store %arg7[%c216_428, %c0_429], %339 {strides = array<i32>} : memref<256x256xf32, #tpu.memory_space<vmem>>, vector<8x128xf32>,
    %c0_430 = arith.constant 0 : index
    %c0_431 = arith.constant 0 : index
    %c28_432 = arith.constant 28 : index
    %341 = vector.load %arg6[%c0_430, %c0_431, %c28_432] : memref<2x8x158xf32, #tpu.memory_space<vmem>>, vector<1x8x128xf32>
    %342 = vector.shape_cast %341 : vector<1x8x128xf32> to vector<8x128xf32>
    %c224_433 = arith.constant 224 : index
    %c0_434 = arith.constant 0 : index
    %343 = vector.load %arg7[%c224_433, %c0_434] : memref<256x256xf32, #tpu.memory_space<vmem>>, vector<8x128xf32>
    tpu.vector_store %arg7[%c224_433, %c0_434], %342 {strides = array<i32>} : memref<256x256xf32, #tpu.memory_space<vmem>>, vector<8x128xf32>,
    %c0_435 = arith.constant 0 : index
    %c0_436 = arith.constant 0 : index
    %c29_437 = arith.constant 29 : index
    %344 = vector.load %arg6[%c0_435, %c0_436, %c29_437] : memref<2x8x158xf32, #tpu.memory_space<vmem>>, vector<1x8x128xf32>
    %345 = vector.shape_cast %344 : vector<1x8x128xf32> to vector<8x128xf32>
    %c232_438 = arith.constant 232 : index
    %c0_439 = arith.constant 0 : index
    %346 = vector.load %arg7[%c232_438, %c0_439] : memref<256x256xf32, #tpu.memory_space<vmem>>, vector<8x128xf32>
    tpu.vector_store %arg7[%c232_438, %c0_439], %345 {strides = array<i32>} : memref<256x256xf32, #tpu.memory_space<vmem>>, vector<8x128xf32>,
    %c0_440 = arith.constant 0 : index
    %c0_441 = arith.constant 0 : index
    %c30_442 = arith.constant 30 : index
    %347 = vector.load %arg6[%c0_440, %c0_441, %c30_442] : memref<2x8x158xf32, #tpu.memory_space<vmem>>, vector<1x8x128xf32>
    %348 = vector.shape_cast %347 : vector<1x8x128xf32> to vector<8x128xf32>
    %c240_443 = arith.constant 240 : index
    %c0_444 = arith.constant 0 : index
    %349 = vector.load %arg7[%c240_443, %c0_444] : memref<256x256xf32, #tpu.memory_space<vmem>>, vector<8x128xf32>
    tpu.vector_store %arg7[%c240_443, %c0_444], %348 {strides = array<i32>} : memref<256x256xf32, #tpu.memory_space<vmem>>, vector<8x128xf32>,
    %c1_445 = arith.constant 1 : index
    %c0_446 = arith.constant 0 : index
    %c0_447 = arith.constant 0 : index
    %350 = vector.load %arg6[%c1_445, %c0_446, %c0_447] : memref<2x8x158xf32, #tpu.memory_space<vmem>>, vector<1x8x128xf32>
    %351 = vector.shape_cast %350 : vector<1x8x128xf32> to vector<8x128xf32>
    %c0_448 = arith.constant 0 : index
    %c128_449 = arith.constant 128 : index
    %352 = vector.load %arg7[%c0_448, %c128_449] : memref<256x256xf32, #tpu.memory_space<vmem>>, vector<8x128xf32>
    tpu.vector_store %arg7[%c0_448, %c128_449], %351 {strides = array<i32>} : memref<256x256xf32, #tpu.memory_space<vmem>>, vector<8x128xf32>,
    %c1_450 = arith.constant 1 : index
    %c0_451 = arith.constant 0 : index
    %c1_452 = arith.constant 1 : index
    %353 = vector.load %arg6[%c1_450, %c0_451, %c1_452] : memref<2x8x158xf32, #tpu.memory_space<vmem>>, vector<1x8x128xf32>
    %354 = vector.shape_cast %353 : vector<1x8x128xf32> to vector<8x128xf32>
    %c8_453 = arith.constant 8 : index
    %c128_454 = arith.constant 128 : index
    %355 = vector.load %arg7[%c8_453, %c128_454] : memref<256x256xf32, #tpu.memory_space<vmem>>, vector<8x128xf32>
    tpu.vector_store %arg7[%c8_453, %c128_454], %354 {strides = array<i32>} : memref<256x256xf32, #tpu.memory_space<vmem>>, vector<8x128xf32>,
    %c1_455 = arith.constant 1 : index
    %c0_456 = arith.constant 0 : index
    %c2_457 = arith.constant 2 : index
    %356 = vector.load %arg6[%c1_455, %c0_456, %c2_457] : memref<2x8x158xf32, #tpu.memory_space<vmem>>, vector<1x8x128xf32>
    %357 = vector.shape_cast %356 : vector<1x8x128xf32> to vector<8x128xf32>
    %c16_458 = arith.constant 16 : index
    %c128_459 = arith.constant 128 : index
    %358 = vector.load %arg7[%c16_458, %c128_459] : memref<256x256xf32, #tpu.memory_space<vmem>>, vector<8x128xf32>
    tpu.vector_store %arg7[%c16_458, %c128_459], %357 {strides = array<i32>} : memref<256x256xf32, #tpu.memory_space<vmem>>, vector<8x128xf32>,
    %c1_460 = arith.constant 1 : index
    %c0_461 = arith.constant 0 : index
    %c3_462 = arith.constant 3 : index
    %359 = vector.load %arg6[%c1_460, %c0_461, %c3_462] : memref<2x8x158xf32, #tpu.memory_space<vmem>>, vector<1x8x128xf32>
    %360 = vector.shape_cast %359 : vector<1x8x128xf32> to vector<8x128xf32>
    %c24_463 = arith.constant 24 : index
    %c128_464 = arith.constant 128 : index
    %361 = vector.load %arg7[%c24_463, %c128_464] : memref<256x256xf32, #tpu.memory_space<vmem>>, vector<8x128xf32>
    tpu.vector_store %arg7[%c24_463, %c128_464], %360 {strides = array<i32>} : memref<256x256xf32, #tpu.memory_space<vmem>>, vector<8x128xf32>,
    %c1_465 = arith.constant 1 : index
    %c0_466 = arith.constant 0 : index
    %c4_467 = arith.constant 4 : index
    %362 = vector.load %arg6[%c1_465, %c0_466, %c4_467] : memref<2x8x158xf32, #tpu.memory_space<vmem>>, vector<1x8x128xf32>
    %363 = vector.shape_cast %362 : vector<1x8x128xf32> to vector<8x128xf32>
    %c32_468 = arith.constant 32 : index
    %c128_469 = arith.constant 128 : index
    %364 = vector.load %arg7[%c32_468, %c128_469] : memref<256x256xf32, #tpu.memory_space<vmem>>, vector<8x128xf32>
    tpu.vector_store %arg7[%c32_468, %c128_469], %363 {strides = array<i32>} : memref<256x256xf32, #tpu.memory_space<vmem>>, vector<8x128xf32>,
    %c1_470 = arith.constant 1 : index
    %c0_471 = arith.constant 0 : index
    %c5_472 = arith.constant 5 : index
    %365 = vector.load %arg6[%c1_470, %c0_471, %c5_472] : memref<2x8x158xf32, #tpu.memory_space<vmem>>, vector<1x8x128xf32>
    %366 = vector.shape_cast %365 : vector<1x8x128xf32> to vector<8x128xf32>
    %c40_473 = arith.constant 40 : index
    %c128_474 = arith.constant 128 : index
    %367 = vector.load %arg7[%c40_473, %c128_474] : memref<256x256xf32, #tpu.memory_space<vmem>>, vector<8x128xf32>
    tpu.vector_store %arg7[%c40_473, %c128_474], %366 {strides = array<i32>} : memref<256x256xf32, #tpu.memory_space<vmem>>, vector<8x128xf32>,
    %c1_475 = arith.constant 1 : index
    %c0_476 = arith.constant 0 : index
    %c6_477 = arith.constant 6 : index
    %368 = vector.load %arg6[%c1_475, %c0_476, %c6_477] : memref<2x8x158xf32, #tpu.memory_space<vmem>>, vector<1x8x128xf32>
    %369 = vector.shape_cast %368 : vector<1x8x128xf32> to vector<8x128xf32>
    %c48_478 = arith.constant 48 : index
    %c128_479 = arith.constant 128 : index
    %370 = vector.load %arg7[%c48_478, %c128_479] : memref<256x256xf32, #tpu.memory_space<vmem>>, vector<8x128xf32>
    tpu.vector_store %arg7[%c48_478, %c128_479], %369 {strides = array<i32>} : memref<256x256xf32, #tpu.memory_space<vmem>>, vector<8x128xf32>,
    %c1_480 = arith.constant 1 : index
    %c0_481 = arith.constant 0 : index
    %c7_482 = arith.constant 7 : index
    %371 = vector.load %arg6[%c1_480, %c0_481, %c7_482] : memref<2x8x158xf32, #tpu.memory_space<vmem>>, vector<1x8x128xf32>
    %372 = vector.shape_cast %371 : vector<1x8x128xf32> to vector<8x128xf32>
    %c56_483 = arith.constant 56 : index
    %c128_484 = arith.constant 128 : index
    %373 = vector.load %arg7[%c56_483, %c128_484] : memref<256x256xf32, #tpu.memory_space<vmem>>, vector<8x128xf32>
    tpu.vector_store %arg7[%c56_483, %c128_484], %372 {strides = array<i32>} : memref<256x256xf32, #tpu.memory_space<vmem>>, vector<8x128xf32>,
    %c1_485 = arith.constant 1 : index
    %c0_486 = arith.constant 0 : index
    %c8_487 = arith.constant 8 : index
    %374 = vector.load %arg6[%c1_485, %c0_486, %c8_487] : memref<2x8x158xf32, #tpu.memory_space<vmem>>, vector<1x8x128xf32>
    %375 = vector.shape_cast %374 : vector<1x8x128xf32> to vector<8x128xf32>
    %c64_488 = arith.constant 64 : index
    %c128_489 = arith.constant 128 : index
    %376 = vector.load %arg7[%c64_488, %c128_489] : memref<256x256xf32, #tpu.memory_space<vmem>>, vector<8x128xf32>
    tpu.vector_store %arg7[%c64_488, %c128_489], %375 {strides = array<i32>} : memref<256x256xf32, #tpu.memory_space<vmem>>, vector<8x128xf32>,
    %c1_490 = arith.constant 1 : index
    %c0_491 = arith.constant 0 : index
    %c9_492 = arith.constant 9 : index
    %377 = vector.load %arg6[%c1_490, %c0_491, %c9_492] : memref<2x8x158xf32, #tpu.memory_space<vmem>>, vector<1x8x128xf32>
    %378 = vector.shape_cast %377 : vector<1x8x128xf32> to vector<8x128xf32>
    %c72_493 = arith.constant 72 : index
    %c128_494 = arith.constant 128 : index
    %379 = vector.load %arg7[%c72_493, %c128_494] : memref<256x256xf32, #tpu.memory_space<vmem>>, vector<8x128xf32>
    tpu.vector_store %arg7[%c72_493, %c128_494], %378 {strides = array<i32>} : memref<256x256xf32, #tpu.memory_space<vmem>>, vector<8x128xf32>,
    %c1_495 = arith.constant 1 : index
    %c0_496 = arith.constant 0 : index
    %c10_497 = arith.constant 10 : index
    %380 = vector.load %arg6[%c1_495, %c0_496, %c10_497] : memref<2x8x158xf32, #tpu.memory_space<vmem>>, vector<1x8x128xf32>
    %381 = vector.shape_cast %380 : vector<1x8x128xf32> to vector<8x128xf32>
    %c80_498 = arith.constant 80 : index
    %c128_499 = arith.constant 128 : index
    %382 = vector.load %arg7[%c80_498, %c128_499] : memref<256x256xf32, #tpu.memory_space<vmem>>, vector<8x128xf32>
    tpu.vector_store %arg7[%c80_498, %c128_499], %381 {strides = array<i32>} : memref<256x256xf32, #tpu.memory_space<vmem>>, vector<8x128xf32>,
    %c1_500 = arith.constant 1 : index
    %c0_501 = arith.constant 0 : index
    %c11_502 = arith.constant 11 : index
    %383 = vector.load %arg6[%c1_500, %c0_501, %c11_502] : memref<2x8x158xf32, #tpu.memory_space<vmem>>, vector<1x8x128xf32>
    %384 = vector.shape_cast %383 : vector<1x8x128xf32> to vector<8x128xf32>
    %c88_503 = arith.constant 88 : index
    %c128_504 = arith.constant 128 : index
    %385 = vector.load %arg7[%c88_503, %c128_504] : memref<256x256xf32, #tpu.memory_space<vmem>>, vector<8x128xf32>
    tpu.vector_store %arg7[%c88_503, %c128_504], %384 {strides = array<i32>} : memref<256x256xf32, #tpu.memory_space<vmem>>, vector<8x128xf32>,
    %c1_505 = arith.constant 1 : index
    %c0_506 = arith.constant 0 : index
    %c12_507 = arith.constant 12 : index
    %386 = vector.load %arg6[%c1_505, %c0_506, %c12_507] : memref<2x8x158xf32, #tpu.memory_space<vmem>>, vector<1x8x128xf32>
    %387 = vector.shape_cast %386 : vector<1x8x128xf32> to vector<8x128xf32>
    %c96_508 = arith.constant 96 : index
    %c128_509 = arith.constant 128 : index
    %388 = vector.load %arg7[%c96_508, %c128_509] : memref<256x256xf32, #tpu.memory_space<vmem>>, vector<8x128xf32>
    tpu.vector_store %arg7[%c96_508, %c128_509], %387 {strides = array<i32>} : memref<256x256xf32, #tpu.memory_space<vmem>>, vector<8x128xf32>,
    %c1_510 = arith.constant 1 : index
    %c0_511 = arith.constant 0 : index
    %c13_512 = arith.constant 13 : index
    %389 = vector.load %arg6[%c1_510, %c0_511, %c13_512] : memref<2x8x158xf32, #tpu.memory_space<vmem>>, vector<1x8x128xf32>
    %390 = vector.shape_cast %389 : vector<1x8x128xf32> to vector<8x128xf32>
    %c104_513 = arith.constant 104 : index
    %c128_514 = arith.constant 128 : index
    %391 = vector.load %arg7[%c104_513, %c128_514] : memref<256x256xf32, #tpu.memory_space<vmem>>, vector<8x128xf32>
    tpu.vector_store %arg7[%c104_513, %c128_514], %390 {strides = array<i32>} : memref<256x256xf32, #tpu.memory_space<vmem>>, vector<8x128xf32>,
    %c1_515 = arith.constant 1 : index
    %c0_516 = arith.constant 0 : index
    %c14_517 = arith.constant 14 : index
    %392 = vector.load %arg6[%c1_515, %c0_516, %c14_517] : memref<2x8x158xf32, #tpu.memory_space<vmem>>, vector<1x8x128xf32>
    %393 = vector.shape_cast %392 : vector<1x8x128xf32> to vector<8x128xf32>
    %c112_518 = arith.constant 112 : index
    %c128_519 = arith.constant 128 : index
    %394 = vector.load %arg7[%c112_518, %c128_519] : memref<256x256xf32, #tpu.memory_space<vmem>>, vector<8x128xf32>
    tpu.vector_store %arg7[%c112_518, %c128_519], %393 {strides = array<i32>} : memref<256x256xf32, #tpu.memory_space<vmem>>, vector<8x128xf32>,
    %c1_520 = arith.constant 1 : index
    %c0_521 = arith.constant 0 : index
    %c15_522 = arith.constant 15 : index
    %395 = vector.load %arg6[%c1_520, %c0_521, %c15_522] : memref<2x8x158xf32, #tpu.memory_space<vmem>>, vector<1x8x128xf32>
    %396 = vector.shape_cast %395 : vector<1x8x128xf32> to vector<8x128xf32>
    %c120_523 = arith.constant 120 : index
    %c128_524 = arith.constant 128 : index
    %397 = vector.load %arg7[%c120_523, %c128_524] : memref<256x256xf32, #tpu.memory_space<vmem>>, vector<8x128xf32>
    tpu.vector_store %arg7[%c120_523, %c128_524], %396 {strides = array<i32>} : memref<256x256xf32, #tpu.memory_space<vmem>>, vector<8x128xf32>,
    %c1_525 = arith.constant 1 : index
    %c0_526 = arith.constant 0 : index
    %c16_527 = arith.constant 16 : index
    %398 = vector.load %arg6[%c1_525, %c0_526, %c16_527] : memref<2x8x158xf32, #tpu.memory_space<vmem>>, vector<1x8x128xf32>
    %399 = vector.shape_cast %398 : vector<1x8x128xf32> to vector<8x128xf32>
    %c128_528 = arith.constant 128 : index
    %c128_529 = arith.constant 128 : index
    %400 = vector.load %arg7[%c128_528, %c128_529] : memref<256x256xf32, #tpu.memory_space<vmem>>, vector<8x128xf32>
    tpu.vector_store %arg7[%c128_528, %c128_529], %399 {strides = array<i32>} : memref<256x256xf32, #tpu.memory_space<vmem>>, vector<8x128xf32>,
    %c1_530 = arith.constant 1 : index
    %c0_531 = arith.constant 0 : index
    %c17_532 = arith.constant 17 : index
    %401 = vector.load %arg6[%c1_530, %c0_531, %c17_532] : memref<2x8x158xf32, #tpu.memory_space<vmem>>, vector<1x8x128xf32>
    %402 = vector.shape_cast %401 : vector<1x8x128xf32> to vector<8x128xf32>
    %c136_533 = arith.constant 136 : index
    %c128_534 = arith.constant 128 : index
    %403 = vector.load %arg7[%c136_533, %c128_534] : memref<256x256xf32, #tpu.memory_space<vmem>>, vector<8x128xf32>
    tpu.vector_store %arg7[%c136_533, %c128_534], %402 {strides = array<i32>} : memref<256x256xf32, #tpu.memory_space<vmem>>, vector<8x128xf32>,
    %c1_535 = arith.constant 1 : index
    %c0_536 = arith.constant 0 : index
    %c18_537 = arith.constant 18 : index
    %404 = vector.load %arg6[%c1_535, %c0_536, %c18_537] : memref<2x8x158xf32, #tpu.memory_space<vmem>>, vector<1x8x128xf32>
    %405 = vector.shape_cast %404 : vector<1x8x128xf32> to vector<8x128xf32>
    %c144_538 = arith.constant 144 : index
    %c128_539 = arith.constant 128 : index
    %406 = vector.load %arg7[%c144_538, %c128_539] : memref<256x256xf32, #tpu.memory_space<vmem>>, vector<8x128xf32>
    tpu.vector_store %arg7[%c144_538, %c128_539], %405 {strides = array<i32>} : memref<256x256xf32, #tpu.memory_space<vmem>>, vector<8x128xf32>,
    %c1_540 = arith.constant 1 : index
    %c0_541 = arith.constant 0 : index
    %c19_542 = arith.constant 19 : index
    %407 = vector.load %arg6[%c1_540, %c0_541, %c19_542] : memref<2x8x158xf32, #tpu.memory_space<vmem>>, vector<1x8x128xf32>
    %408 = vector.shape_cast %407 : vector<1x8x128xf32> to vector<8x128xf32>
    %c152_543 = arith.constant 152 : index
    %c128_544 = arith.constant 128 : index
    %409 = vector.load %arg7[%c152_543, %c128_544] : memref<256x256xf32, #tpu.memory_space<vmem>>, vector<8x128xf32>
    tpu.vector_store %arg7[%c152_543, %c128_544], %408 {strides = array<i32>} : memref<256x256xf32, #tpu.memory_space<vmem>>, vector<8x128xf32>,
    %c1_545 = arith.constant 1 : index
    %c0_546 = arith.constant 0 : index
    %c20_547 = arith.constant 20 : index
    %410 = vector.load %arg6[%c1_545, %c0_546, %c20_547] : memref<2x8x158xf32, #tpu.memory_space<vmem>>, vector<1x8x128xf32>
    %411 = vector.shape_cast %410 : vector<1x8x128xf32> to vector<8x128xf32>
    %c160_548 = arith.constant 160 : index
    %c128_549 = arith.constant 128 : index
    %412 = vector.load %arg7[%c160_548, %c128_549] : memref<256x256xf32, #tpu.memory_space<vmem>>, vector<8x128xf32>
    tpu.vector_store %arg7[%c160_548, %c128_549], %411 {strides = array<i32>} : memref<256x256xf32, #tpu.memory_space<vmem>>, vector<8x128xf32>,
    %c1_550 = arith.constant 1 : index
    %c0_551 = arith.constant 0 : index
    %c21_552 = arith.constant 21 : index
    %413 = vector.load %arg6[%c1_550, %c0_551, %c21_552] : memref<2x8x158xf32, #tpu.memory_space<vmem>>, vector<1x8x128xf32>
    %414 = vector.shape_cast %413 : vector<1x8x128xf32> to vector<8x128xf32>
    %c168_553 = arith.constant 168 : index
    %c128_554 = arith.constant 128 : index
    %415 = vector.load %arg7[%c168_553, %c128_554] : memref<256x256xf32, #tpu.memory_space<vmem>>, vector<8x128xf32>
    tpu.vector_store %arg7[%c168_553, %c128_554], %414 {strides = array<i32>} : memref<256x256xf32, #tpu.memory_space<vmem>>, vector<8x128xf32>,
    %c1_555 = arith.constant 1 : index
    %c0_556 = arith.constant 0 : index
    %c22_557 = arith.constant 22 : index
    %416 = vector.load %arg6[%c1_555, %c0_556, %c22_557] : memref<2x8x158xf32, #tpu.memory_space<vmem>>, vector<1x8x128xf32>
    %417 = vector.shape_cast %416 : vector<1x8x128xf32> to vector<8x128xf32>
    %c176_558 = arith.constant 176 : index
    %c128_559 = arith.constant 128 : index
    %418 = vector.load %arg7[%c176_558, %c128_559] : memref<256x256xf32, #tpu.memory_space<vmem>>, vector<8x128xf32>
    tpu.vector_store %arg7[%c176_558, %c128_559], %417 {strides = array<i32>} : memref<256x256xf32, #tpu.memory_space<vmem>>, vector<8x128xf32>,
    %c1_560 = arith.constant 1 : index
    %c0_561 = arith.constant 0 : index
    %c23_562 = arith.constant 23 : index
    %419 = vector.load %arg6[%c1_560, %c0_561, %c23_562] : memref<2x8x158xf32, #tpu.memory_space<vmem>>, vector<1x8x128xf32>
    %420 = vector.shape_cast %419 : vector<1x8x128xf32> to vector<8x128xf32>
    %c184_563 = arith.constant 184 : index
    %c128_564 = arith.constant 128 : index
    %421 = vector.load %arg7[%c184_563, %c128_564] : memref<256x256xf32, #tpu.memory_space<vmem>>, vector<8x128xf32>
    tpu.vector_store %arg7[%c184_563, %c128_564], %420 {strides = array<i32>} : memref<256x256xf32, #tpu.memory_space<vmem>>, vector<8x128xf32>,
    %c1_565 = arith.constant 1 : index
    %c0_566 = arith.constant 0 : index
    %c24_567 = arith.constant 24 : index
    %422 = vector.load %arg6[%c1_565, %c0_566, %c24_567] : memref<2x8x158xf32, #tpu.memory_space<vmem>>, vector<1x8x128xf32>
    %423 = vector.shape_cast %422 : vector<1x8x128xf32> to vector<8x128xf32>
    %c192_568 = arith.constant 192 : index
    %c128_569 = arith.constant 128 : index
    %424 = vector.load %arg7[%c192_568, %c128_569] : memref<256x256xf32, #tpu.memory_space<vmem>>, vector<8x128xf32>
    tpu.vector_store %arg7[%c192_568, %c128_569], %423 {strides = array<i32>} : memref<256x256xf32, #tpu.memory_space<vmem>>, vector<8x128xf32>,
    %c1_570 = arith.constant 1 : index
    %c0_571 = arith.constant 0 : index
    %c25_572 = arith.constant 25 : index
    %425 = vector.load %arg6[%c1_570, %c0_571, %c25_572] : memref<2x8x158xf32, #tpu.memory_space<vmem>>, vector<1x8x128xf32>
    %426 = vector.shape_cast %425 : vector<1x8x128xf32> to vector<8x128xf32>
    %c200_573 = arith.constant 200 : index
    %c128_574 = arith.constant 128 : index
    %427 = vector.load %arg7[%c200_573, %c128_574] : memref<256x256xf32, #tpu.memory_space<vmem>>, vector<8x128xf32>
    tpu.vector_store %arg7[%c200_573, %c128_574], %426 {strides = array<i32>} : memref<256x256xf32, #tpu.memory_space<vmem>>, vector<8x128xf32>,
    %c1_575 = arith.constant 1 : index
    %c0_576 = arith.constant 0 : index
    %c26_577 = arith.constant 26 : index
    %428 = vector.load %arg6[%c1_575, %c0_576, %c26_577] : memref<2x8x158xf32, #tpu.memory_space<vmem>>, vector<1x8x128xf32>
    %429 = vector.shape_cast %428 : vector<1x8x128xf32> to vector<8x128xf32>
    %c208_578 = arith.constant 208 : index
    %c128_579 = arith.constant 128 : index
    %430 = vector.load %arg7[%c208_578, %c128_579] : memref<256x256xf32, #tpu.memory_space<vmem>>, vector<8x128xf32>
    tpu.vector_store %arg7[%c208_578, %c128_579], %429 {strides = array<i32>} : memref<256x256xf32, #tpu.memory_space<vmem>>, vector<8x128xf32>,
    %c1_580 = arith.constant 1 : index
    %c0_581 = arith.constant 0 : index
    %c27_582 = arith.constant 27 : index
    %431 = vector.load %arg6[%c1_580, %c0_581, %c27_582] : memref<2x8x158xf32, #tpu.memory_space<vmem>>, vector<1x8x128xf32>
    %432 = vector.shape_cast %431 : vector<1x8x128xf32> to vector<8x128xf32>
    %c216_583 = arith.constant 216 : index
    %c128_584 = arith.constant 128 : index
    %433 = vector.load %arg7[%c216_583, %c128_584] : memref<256x256xf32, #tpu.memory_space<vmem>>, vector<8x128xf32>
    tpu.vector_store %arg7[%c216_583, %c128_584], %432 {strides = array<i32>} : memref<256x256xf32, #tpu.memory_space<vmem>>, vector<8x128xf32>,
    %c1_585 = arith.constant 1 : index
    %c0_586 = arith.constant 0 : index
    %c28_587 = arith.constant 28 : index
    %434 = vector.load %arg6[%c1_585, %c0_586, %c28_587] : memref<2x8x158xf32, #tpu.memory_space<vmem>>, vector<1x8x128xf32>
    %435 = vector.shape_cast %434 : vector<1x8x128xf32> to vector<8x128xf32>
    %c224_588 = arith.constant 224 : index
    %c128_589 = arith.constant 128 : index
    %436 = vector.load %arg7[%c224_588, %c128_589] : memref<256x256xf32, #tpu.memory_space<vmem>>, vector<8x128xf32>
    tpu.vector_store %arg7[%c224_588, %c128_589], %435 {strides = array<i32>} : memref<256x256xf32, #tpu.memory_space<vmem>>, vector<8x128xf32>,
    %c1_590 = arith.constant 1 : index
    %c0_591 = arith.constant 0 : index
    %c29_592 = arith.constant 29 : index
    %437 = vector.load %arg6[%c1_590, %c0_591, %c29_592] : memref<2x8x158xf32, #tpu.memory_space<vmem>>, vector<1x8x128xf32>
    %438 = vector.shape_cast %437 : vector<1x8x128xf32> to vector<8x128xf32>
    %c232_593 = arith.constant 232 : index
    %c128_594 = arith.constant 128 : index
    %439 = vector.load %arg7[%c232_593, %c128_594] : memref<256x256xf32, #tpu.memory_space<vmem>>, vector<8x128xf32>
    tpu.vector_store %arg7[%c232_593, %c128_594], %438 {strides = array<i32>} : memref<256x256xf32, #tpu.memory_space<vmem>>, vector<8x128xf32>,
    %c1_595 = arith.constant 1 : index
    %c0_596 = arith.constant 0 : index
    %c30_597 = arith.constant 30 : index
    %440 = vector.load %arg6[%c1_595, %c0_596, %c30_597] : memref<2x8x158xf32, #tpu.memory_space<vmem>>, vector<1x8x128xf32>
    %441 = vector.shape_cast %440 : vector<1x8x128xf32> to vector<8x128xf32>
    %c240_598 = arith.constant 240 : index
    %c128_599 = arith.constant 128 : index
    %442 = vector.load %arg7[%c240_598, %c128_599] : memref<256x256xf32, #tpu.memory_space<vmem>>, vector<8x128xf32>
    tpu.vector_store %arg7[%c240_598, %c128_599], %441 {strides = array<i32>} : memref<256x256xf32, #tpu.memory_space<vmem>>, vector<8x128xf32>,
    %c0_600 = arith.constant 0 : index
    %c0_601 = arith.constant 0 : index
    %443 = vector.load %arg3[%c0_600, %c0_601] : memref<8x256xf32, #tpu.memory_space<vmem>>, vector<8x256xf32>
    %c0_602 = arith.constant 0 : index
    %c0_603 = arith.constant 0 : index
    %444 = vector.load %arg7[%c0_602, %c0_603] : memref<256x256xf32, #tpu.memory_space<vmem>>, vector<256x256xf32>
    %cst_604 = arith.constant dense<0.000000e+00> : vector<8x256xf32>
    %445 = tpu.matmul %443, %444, %cst_604 {dimension_numbers = #tpu.dot_dimension_numbers<[1], [0], [0], [1], [0, 0, 1, 1], [], []>} : vector<8x256xf32>, vector<256x256xf32>, vector<8x256xf32> -> vector<8x256xf32>
    %446 = vector.extract_strided_slice %445 {offsets = [0, 0], sizes = [8, 128], strides = [1, 1]} : vector<8x256xf32> to vector<8x128xf32>
    %cst_605 = arith.constant dense<0.000000e+00> : vector<8xf32>
    %447 = vector.multi_reduction <add>, %446, %cst_605 [1] : vector<8x128xf32> to vector<8xf32>
    %448 = vector.shape_cast %447 : vector<8xf32> to vector<8x1xf32>
    %449 = arith.mulf %446, %446 : vector<8x128xf32>
    %cst_606 = arith.constant dense<0.000000e+00> : vector<8xf32>
    %450 = vector.multi_reduction <add>, %449, %cst_606 [1] : vector<8x128xf32> to vector<8xf32>
    %451 = vector.shape_cast %450 : vector<8xf32> to vector<8x1xf32>
    %cst_607 = arith.constant 7.812500e-03 : f32
    %452 = vector.broadcast %cst_607 : f32 to vector<8x1xf32>
    %453 = arith.mulf %448, %452 : vector<8x1xf32>
    %cst_608 = arith.constant 7.812500e-03 : f32
    %454 = vector.broadcast %cst_608 : f32 to vector<8x1xf32>
    %455 = arith.mulf %451, %454 : vector<8x1xf32>
    %456 = arith.mulf %453, %453 : vector<8x1xf32>
    %457 = arith.subf %455, %456 : vector<8x1xf32>
    %458 = vector.broadcast %453 : vector<8x1xf32> to vector<8x128xf32>
    %459 = arith.subf %446, %458 : vector<8x128xf32>
    %cst_609 = arith.constant 9.99999974E-6 : f32
    %460 = vector.broadcast %cst_609 : f32 to vector<8x1xf32>
    %461 = arith.addf %457, %460 : vector<8x1xf32>
    %462 = math.rsqrt %461 : vector<8x1xf32>
    %463 = vector.broadcast %462 : vector<8x1xf32> to vector<8x128xf32>
    %464 = arith.mulf %459, %463 : vector<8x128xf32>
    %465 = vector.broadcast %8 : vector<8x1xf32> to vector<8x128xf32>
    %466 = arith.mulf %464, %465 : vector<8x128xf32>
    %467 = vector.broadcast %9 : vector<8x1xf32> to vector<8x128xf32>
    %468 = arith.addf %466, %467 : vector<8x128xf32>
    %469 = vector.extract_strided_slice %10 {offsets = [0, 0, 0], sizes = [1, 8, 128], strides = [1, 1, 1]} : vector<2x8x128xf32> to vector<1x8x128xf32>
    %470 = vector.shape_cast %469 : vector<1x8x128xf32> to vector<8x128xf32>
    %471 = arith.addf %468, %470 : vector<8x128xf32>
    %c0_610 = arith.constant 0 : index
    %c0_611 = arith.constant 0 : index
    %c0_612 = arith.constant 0 : index
    %472 = vector.load %arg5[%c0_610, %c0_611, %c0_612] : memref<2x8x128xf32, #tpu.memory_space<vmem>>, vector<1x8x128xf32>
    %473 = vector.shape_cast %472 : vector<1x8x128xf32> to vector<8x128xf32>
    %474 = vector.shape_cast %471 : vector<8x128xf32> to vector<1x8x128xf32>
    tpu.vector_store %arg5[%c0_610, %c0_611, %c0_612], %474 {strides = array<i32>} : memref<2x8x128xf32, #tpu.memory_space<vmem>>, vector<1x8x128xf32>,
    %475 = vector.extract_strided_slice %445 {offsets = [0, 128], sizes = [8, 128], strides = [1, 1]} : vector<8x256xf32> to vector<8x128xf32>
    %cst_613 = arith.constant dense<0.000000e+00> : vector<8xf32>
    %476 = vector.multi_reduction <add>, %475, %cst_613 [1] : vector<8x128xf32> to vector<8xf32>
    %477 = vector.shape_cast %476 : vector<8xf32> to vector<8x1xf32>
    %478 = arith.mulf %475, %475 : vector<8x128xf32>
    %cst_614 = arith.constant dense<0.000000e+00> : vector<8xf32>
    %479 = vector.multi_reduction <add>, %478, %cst_614 [1] : vector<8x128xf32> to vector<8xf32>
    %480 = vector.shape_cast %479 : vector<8xf32> to vector<8x1xf32>
    %cst_615 = arith.constant 7.812500e-03 : f32
    %481 = vector.broadcast %cst_615 : f32 to vector<8x1xf32>
    %482 = arith.mulf %477, %481 : vector<8x1xf32>
    %cst_616 = arith.constant 7.812500e-03 : f32
    %483 = vector.broadcast %cst_616 : f32 to vector<8x1xf32>
    %484 = arith.mulf %480, %483 : vector<8x1xf32>
    %485 = arith.mulf %482, %482 : vector<8x1xf32>
    %486 = arith.subf %484, %485 : vector<8x1xf32>
    %487 = vector.broadcast %482 : vector<8x1xf32> to vector<8x128xf32>
    %488 = arith.subf %475, %487 : vector<8x128xf32>
    %cst_617 = arith.constant 9.99999974E-6 : f32
    %489 = vector.broadcast %cst_617 : f32 to vector<8x1xf32>
    %490 = arith.addf %486, %489 : vector<8x1xf32>
    %491 = math.rsqrt %490 : vector<8x1xf32>
    %492 = vector.broadcast %491 : vector<8x1xf32> to vector<8x128xf32>
    %493 = arith.mulf %488, %492 : vector<8x128xf32>
    %494 = vector.broadcast %8 : vector<8x1xf32> to vector<8x128xf32>
    %495 = arith.mulf %493, %494 : vector<8x128xf32>
    %496 = vector.broadcast %9 : vector<8x1xf32> to vector<8x128xf32>
    %497 = arith.addf %495, %496 : vector<8x128xf32>
    %498 = vector.extract_strided_slice %10 {offsets = [1, 0, 0], sizes = [1, 8, 128], strides = [1, 1, 1]} : vector<2x8x128xf32> to vector<1x8x128xf32>
    %499 = vector.shape_cast %498 : vector<1x8x128xf32> to vector<8x128xf32>
    %500 = arith.addf %497, %499 : vector<8x128xf32>
    %c1_618 = arith.constant 1 : index
    %c0_619 = arith.constant 0 : index
    %c0_620 = arith.constant 0 : index
    %501 = vector.load %arg5[%c1_618, %c0_619, %c0_620] : memref<2x8x128xf32, #tpu.memory_space<vmem>>, vector<1x8x128xf32>
    %502 = vector.shape_cast %501 : vector<1x8x128xf32> to vector<8x128xf32>
    %503 = vector.shape_cast %500 : vector<8x128xf32> to vector<1x8x128xf32>
    tpu.vector_store %arg5[%c1_618, %c0_619, %c0_620], %503 {strides = array<i32>} : memref<2x8x128xf32, #tpu.memory_space<vmem>>, vector<1x8x128xf32>,
    return
  }
  func.func @transform_0(%arg0: i32) -> (i32, i32, i32) {
    %c0_i32 = arith.constant 0 : i32
    %c0_i32_0 = arith.constant 0 : i32
    %c0_i32_1 = arith.constant 0 : i32
    return %arg0, %c0_i32, %c0_i32_0 : i32, i32, i32
  }
  func.func @transform_1(%arg0: i32) -> (i32, i32) {
    %c0_i32 = arith.constant 0 : i32
    %c0_i32_0 = arith.constant 0 : i32
    %c0_i32_1 = arith.constant 0 : i32
    return %c0_i32, %c0_i32_0 : i32, i32
  }
  func.func @transform_2(%arg0: i32) -> (i32, i32) {
    %c0_i32 = arith.constant 0 : i32
    %c0_i32_0 = arith.constant 0 : i32
    %c0_i32_1 = arith.constant 0 : i32
    return %c0_i32, %c0_i32_0 : i32, i32
  }
  func.func @transform_3(%arg0: i32) -> (i32, i32) {
    %c0_i32 = arith.constant 0 : i32
    %c0_i32_0 = arith.constant 0 : i32
    %c0_i32_1 = arith.constant 0 : i32
    return %c0_i32, %c0_i32_0 : i32, i32
  }
  func.func @transform_4(%arg0: i32) -> (i32, i32, i32) {
    %c0_i32 = arith.constant 0 : i32
    %c0_i32_0 = arith.constant 0 : i32
    %c0_i32_1 = arith.constant 0 : i32
    return %arg0, %c0_i32, %c0_i32_0 : i32, i32, i32
  }
}

</mosaic_0001>

<llo_original>
// kernel: tpu_custom_call.1
$region0: #{tpu_custom_call.1}
  #allocation0 [shape = 'u32[]', space=smem, size = 0x4, offset = 0x4, fixed_abs, tag = 'smem constant byte address 0x4 - core index']
  #allocation1 [shape = 'u32[72,128]{1,0:T(1,128)}', space=vmem, size = 0x9000, scoped, tag = 'internal scratch']
  #allocation2 [shape = 'f32[2,8,158]{2,1,0:T(8,128)}', space=vmem, size = 0x4000, scoped, tag = 'scratch operand']
  #allocation3 [shape = 'f32[256,256]{1,0:T(8,128)}', space=vmem, size = 0x40000, scoped, tag = 'scratch operand']
  %s0 = inlined_call_operand.hbm [shape: f32[4,8,128], index: 0, kind: input, shape index: {}]
  %s1 = inlined_call_operand.hbm [shape: f32[8,256], index: 1, kind: input, shape index: {}]
  %s2 = inlined_call_operand.hbm [shape: f32[8,256], index: 2, kind: input, shape index: {}]
  %s3 = inlined_call_operand.hbm [shape: f32[8,8], index: 3, kind: input, shape index: {}]
  %s4 = inlined_call_operand.hbm [shape: f32[4,8,128], index: 4, kind: output, shape index: {}]
  %s5 = sld [smem:[#allocation0]]
  $region65: #{tpu_custom_call.1} parent=0
    _
  %s7 = ssub.s32 1, %s5
  %s8 = scalar_select 0, %s7, %s5
  $region1: #{tpu_custom_call.1} parent=0
    #allocation4 [shape = 'u8[16384]{0}', space=vmem, size = 0x4000, scoped, tag = 'input window, operand 0']
    #allocation5 [shape = 's32[2]{0}', space=sflag, size = 0x8, scoped, tag = 'scoped memory for tpu_custom_call.1']
    #allocation6 [shape = 's32[2]{0}', space=sflag, size = 0x8, scoped, tag = 'scoped memory for tpu_custom_call.1']
    #allocation7 [shape = 'u8[8192]{0}', space=vmem, size = 0x2000, scoped, tag = 'input window, operand 1, single buffered']
    #allocation8 [shape = 's32[1]{0}', space=sflag, size = 0x4, scoped, tag = 'scoped memory for tpu_custom_call.1']
    #allocation9 [shape = 'u8[8192]{0}', space=vmem, size = 0x2000, scoped, tag = 'input window, operand 2, single buffered']
    #allocation10 [shape = 'u8[4096]{0}', space=vmem, size = 0x1000, scoped, tag = 'input window, operand 3, single buffered']
    #allocation11 [shape = 's32[1]{0}', space=sflag, size = 0x4, scoped, tag = 'scoped memory for tpu_custom_call.1']
    #allocation12 [shape = 'u8[16384]{0}', space=vmem, size = 0x4000, scoped, tag = 'output window, operand 0']
    %9 = vsyncpa [#allocation5], 0
    %s10 = scalar_lea.sflag [#allocation5], 1
    %11 = vsyncpa %s10, 0
    %12 = vsyncpa [#allocation8], 0
    %13 = vsyncpa [#allocation11], 0
    %14 = vsyncpa [#allocation6], 0
    %s15 = scalar_lea.sflag [#allocation6], 1
    %16 = vsyncpa %s15, 0
    loop: start=0, step=1, limit=4
    $region2: #{tpu_custom_call.1} parent=1 // loop_pre_header
      _
    $region3: #{tpu_custom_call.1} parent=1 // loop_header
      %s18 = sphi 0, %s22
      %p19 = scmp.ge.s32.totalorder %s18, 4
      %s28 = sphi 0, %s30
      %s31 = sphi 0, %s28
      %s32 = sphi 0, %s31
      %s48 = sphi 0, %s32
      %s52 = sphi 0, %s52
      %s54 = sphi 0, %s52
      %s55 = sphi 0, %s54
      %s69 = sphi 0, %s55
      %s73 = sphi 0, %s73
      %s75 = sphi 0, %s73
      %s76 = sphi 0, %s75
      %s90 = sphi 0, %s76
      %s94 = sphi 0, %s94
      %s96 = sphi 0, %s94
      %s97 = sphi 0, %s96
      %s111 = sphi 0, %s97
      %s117 = sphi 0, %s119
      %s120 = sphi 0, %s117
      %s121 = sphi 0, %s120
      %s137 = sphi 0, %s121
    $region4: #{tpu_custom_call.1} parent=1 // loop_header_branch
      %21 = sbr.rel (%p19) target = $region8
    $region5: #{tpu_custom_call.1} parent=1 // loop_body
      %s23 = ssub.s32 %s18, 1
      %s24 = ssub.s32 %s18, 2
      %s25 = sadd.s32 %s18, 1
      %s26 = ssub.s32 %s18, %s25
      %p27 = scmp.eq.s32.totalorder %s26, 0
      %s29 = sadd.s32 %s28, 1
      %s30 = scalar_select %p27, %s28, %s29
      %p33 = pneg %p27
      %p34 = scmp.eq.s32.totalorder %s18, 1
      %p35 = por %p33, %p34
      %p36 = scmp.ne.s32.totalorder %s28, %s31
      %p37 = scmp.eq.s32.totalorder %s18, 0
      %p38 = por %p36, %p37
      %p39 = scmp.ne.s32.totalorder %s28, %s31
      %p40 = scmp.eq.s32.totalorder %s23, 1
      %p41 = por %p39, %p40
      %p42 = scmp.ne.s32.totalorder %s31, %s32
      %p43 = scmp.eq.s32.totalorder %s23, 0
      %p44 = por %p42, %p43
      %p45 = scmp.ne.s32.totalorder %s31, %s32
      %p46 = scmp.eq.s32.totalorder %s24, 1
      %p47 = por %p45, %p46
      %p49 = scmp.ne.s32.totalorder %s32, %s48
      %p50 = scmp.eq.s32.totalorder %s24, 0
      %p51 = por %p49, %p50
      %s53 = sadd.s32 %s52, 1
      %p56 = scmp.eq.s32.totalorder %s18, 1
      %p57 = scmp.ne.s32.totalorder %s52, %s54
      %p58 = scmp.eq.s32.totalorder %s18, 0
      %p59 = por %p57, %p58
      %p60 = scmp.ne.s32.totalorder %s52, %s54
      %p61 = scmp.eq.s32.totalorder %s23, 1
      %p62 = por %p60, %p61
      %p63 = scmp.ne.s32.totalorder %s54, %s55
      %p64 = scmp.eq.s32.totalorder %s23, 0
      %p65 = por %p63, %p64
      %p66 = scmp.ne.s32.totalorder %s54, %s55
      %p67 = scmp.eq.s32.totalorder %s24, 1
      %p68 = por %p66, %p67
      %p70 = scmp.ne.s32.totalorder %s55, %s69
      %p71 = scmp.eq.s32.totalorder %s24, 0
      %p72 = por %p70, %p71
      %s74 = sadd.s32 %s73, 1
      %p77 = scmp.eq.s32.totalorder %s18, 1
      %p78 = scmp.ne.s32.totalorder %s73, %s75
      %p79 = scmp.eq.s32.totalorder %s18, 0
      %p80 = por %p78, %p79
      %p81 = scmp.ne.s32.totalorder %s73, %s75
      %p82 = scmp.eq.s32.totalorder %s23, 1
      %p83 = por %p81, %p82
      %p84 = scmp.ne.s32.totalorder %s75, %s76
      %p85 = scmp.eq.s32.totalorder %s23, 0
      %p86 = por %p84, %p85
      %p87 = scmp.ne.s32.totalorder %s75, %s76
      %p88 = scmp.eq.s32.totalorder %s24, 1
      %p89 = por %p87, %p88
      %p91 = scmp.ne.s32.totalorder %s76, %s90
      %p92 = scmp.eq.s32.totalorder %s24, 0
      %p93 = por %p91, %p92
      %s95 = sadd.s32 %s94, 1
      %p98 = scmp.eq.s32.totalorder %s18, 1
      %p99 = scmp.ne.s32.totalorder %s94, %s96
      %p100 = scmp.eq.s32.totalorder %s18, 0
      %p101 = por %p99, %p100
      %p102 = scmp.ne.s32.totalorder %s94, %s96
      %p103 = scmp.eq.s32.totalorder %s23, 1
      %p104 = por %p102, %p103
      %p105 = scmp.ne.s32.totalorder %s96, %s97
      %p106 = scmp.eq.s32.totalorder %s23, 0
      %p107 = por %p105, %p106
      %p108 = scmp.ne.s32.totalorder %s96, %s97
      %p109 = scmp.eq.s32.totalorder %s24, 1
      %p110 = por %p108, %p109
      %p112 = scmp.ne.s32.totalorder %s97, %s111
      %p113 = scmp.eq.s32.totalorder %s24, 0
      %p114 = por %p112, %p113
      %s115 = ssub.s32 %s18, %s25
      %p116 = scmp.eq.s32.totalorder %s115, 0
      %s118 = sadd.s32 %s117, 1
      %s119 = scalar_select %p116, %s117, %s118
      %p122 = pneg %p116
      %p123 = scmp.eq.s32.totalorder %s18, 1
      %p124 = por %p122, %p123
      %p125 = scmp.ne.s32.totalorder %s117, %s120
      %p126 = scmp.eq.s32.totalorder %s18, 0
      %p127 = por %p125, %p126
      %p128 = scmp.ne.s32.totalorder %s117, %s120
      %p129 = scmp.eq.s32.totalorder %s23, 1
      %p130 = por %p128, %p129
      %p131 = scmp.ne.s32.totalorder %s120, %s121
      %p132 = scmp.eq.s32.totalorder %s23, 0
      %p133 = por %p131, %p132
      %p134 = scmp.ne.s32.totalorder %s120, %s121
      %p135 = scmp.eq.s32.totalorder %s24, 1
      %p136 = por %p134, %p135
      %p138 = scmp.ne.s32.totalorder %s121, %s137
      %p139 = scmp.eq.s32.totalorder %s24, 0
      %p140 = por %p138, %p139
      %p141 = scmp.le.s32.totalorder 1, %s18
      %p142 = scmp.lt.s32.totalorder %s18, 3
      %p143 = pnand %p141, %p142
      %p144 = pneg %p143
      // Predicated region
      $region9: #{tpu_custom_call.1} parent=5 // pred_check
        _
      $region10: #{tpu_custom_call.1} parent=5 // pred_check_branch
        %146 = sbr.rel (%p143) target = $region12
      $region11: #{tpu_custom_call.1} parent=5 // pred_region
        %s147 = ssub.s32 %s18, 1
        // Predicated region
        $region13: #{tpu_custom_call.1} parent=11 // pred_check
          %p148 = pneg %p65
        $region14: #{tpu_custom_call.1} parent=11 // pred_check_branch
          %150 = sbr.rel (%p148) target = $region16
        $region15: #{tpu_custom_call.1} parent=11 // pred_region
          %152 = vsyncadd [#allocation8], 0
          %s154 = sshll.u32 %s1, 4
          %s155 = int_to_ptr.hbm [resolvable:$true] %s154
          %s156 = sshll.u32 [#allocation7], 4
          %s157 = int_to_ptr.vmem [resolvable:$true] %s156
          %159 = dma.hbm_to_vmem [thread:$0]  %s155, 256, %s157, [#allocation8]
        $region16: #{tpu_custom_call.1} parent=11 // pred_fallthru
          _
        // Predicated region
        $region17: #{tpu_custom_call.1} parent=11 // pred_check
          %p160 = pneg %p86
        $region18: #{tpu_custom_call.1} parent=11 // pred_check_branch
          %162 = sbr.rel (%p160) target = $region20
        $region19: #{tpu_custom_call.1} parent=11 // pred_region
          %164 = vsyncadd [#allocation8], 0
          %s166 = sshll.u32 %s2, 4
          %s167 = int_to_ptr.hbm [resolvable:$true] %s166
          %s168 = sshll.u32 [#allocation9], 4
          %s169 = int_to_ptr.vmem [resolvable:$true] %s168
          %171 = dma.hbm_to_vmem [thread:$0]  %s167, 256, %s169, [#allocation8]
        $region20: #{tpu_custom_call.1} parent=11 // pred_fallthru
          _
        // Predicated region
        $region21: #{tpu_custom_call.1} parent=11 // pred_check
          %p172 = pneg %p107
        $region22: #{tpu_custom_call.1} parent=11 // pred_check_branch
          %174 = sbr.rel (%p172) target = $region24
        $region23: #{tpu_custom_call.1} parent=11 // pred_region
          %176 = vsyncadd [#allocation11], 0
          %s178 = sshll.u32 %s3, 4
          %s179 = int_to_ptr.hbm [resolvable:$true] %s178
          %s180 = sshll.u32 [#allocation10], 4
          %s181 = int_to_ptr.vmem [resolvable:$true] %s180
          %183 = dma.hbm_to_vmem [thread:$0]  %s179, 128, %s181, [#allocation11]
        $region24: #{tpu_custom_call.1} parent=11 // pred_fallthru
          _
      $region12: #{tpu_custom_call.1} parent=5 // pred_fallthru
        _
      %p184 = scmp.lt.s32.totalorder %s18, 2
      // Predicated region
      $region25: #{tpu_custom_call.1} parent=5 // pred_check
        %p185 = pneg %p184
      $region26: #{tpu_custom_call.1} parent=5 // pred_check_branch
        %187 = sbr.rel (%p185) target = $region28
      $region27: #{tpu_custom_call.1} parent=5 // pred_region
        // Predicated region
        $region29: #{tpu_custom_call.1} parent=27 // pred_check
          %p188 = pneg %p38
        $region30: #{tpu_custom_call.1} parent=27 // pred_check_branch
          %190 = sbr.rel (%p188) target = $region32
        $region31: #{tpu_custom_call.1} parent=27 // pred_region
          %s191 = sand.u32 %s28, 1
          %s192 = scalar_lea.sflag [#allocation5], %s191
          %s193 = sand.u32 %s28, 1
          %s194 = smul.addr %s193, 16
          %s195 = scalar_lea.vmem [#allocation4], %s194
          %s196 = smul.u32 2, %s18
          %198 = vsyncadd %s192, 0
          %s199 = smul.addr %s196, 8
          %s200 = scalar_lea.hbm %s0, %s199
          %s201 = sshll.u32 %s200, 4
          %s202 = int_to_ptr.hbm [resolvable:$true] %s201
          %s203 = sshll.u32 %s195, 4
          %s204 = int_to_ptr.vmem [resolvable:$true] %s203
          %209 = dma.hbm_to_vmem [thread:$0]  %s202, 256, %s204, %s192, 128, 128, 8
        $region32: #{tpu_custom_call.1} parent=27 // pred_fallthru
          _
      $region28: #{tpu_custom_call.1} parent=5 // pred_fallthru
        _
      %p210 = scmp.le.s32.totalorder 1, %s18
      %p211 = scmp.lt.s32.totalorder %s18, 3
      %p212 = pnand %p210, %p211
      %p213 = pneg %p212
      // Predicated region
      $region33: #{tpu_custom_call.1} parent=5 // pred_check
        _
      $region34: #{tpu_custom_call.1} parent=5 // pred_check_branch
        %215 = sbr.rel (%p212) target = $region36
      $region35: #{tpu_custom_call.1} parent=5 // pred_region
        %s216 = ssub.s32 %s18, 1
        %s217 = sand.u32 %s31, 1
        %s218 = scalar_lea.sflag [#allocation5], %s217
        %s219 = sand.u32 %s31, 1
        %s220 = smul.addr %s219, 16
        %s221 = scalar_lea.vmem [#allocation4], %s220
        // Predicated region
        $region37: #{tpu_custom_call.1} parent=35 // pred_check
          %p222 = pneg %p44
        $region38: #{tpu_custom_call.1} parent=35 // pred_check_branch
          %224 = sbr.rel (%p222) target = $region40
        $region39: #{tpu_custom_call.1} parent=35 // pred_region
          %226 = dma.done %s218, 256
        $region40: #{tpu_custom_call.1} parent=35 // pred_fallthru
          _
        // Predicated region
        $region41: #{tpu_custom_call.1} parent=35 // pred_check
          %p227 = pneg %p65
        $region42: #{tpu_custom_call.1} parent=35 // pred_check_branch
          %229 = sbr.rel (%p227) target = $region44
        $region43: #{tpu_custom_call.1} parent=35 // pred_region
          %231 = dma.done [#allocation8], 256
        $region44: #{tpu_custom_call.1} parent=35 // pred_fallthru
          _
        // Predicated region
        $region45: #{tpu_custom_call.1} parent=35 // pred_check
          %p232 = pneg %p86
        $region46: #{tpu_custom_call.1} parent=35 // pred_check_branch
          %234 = sbr.rel (%p232) target = $region48
        $region47: #{tpu_custom_call.1} parent=35 // pred_region
          %236 = dma.done [#allocation8], 256
        $region48: #{tpu_custom_call.1} parent=35 // pred_fallthru
          _
        // Predicated region
        $region49: #{tpu_custom_call.1} parent=35 // pred_check
          %p237 = pneg %p107
        $region50: #{tpu_custom_call.1} parent=35 // pred_check_branch
          %239 = sbr.rel (%p237) target = $region52
        $region51: #{tpu_custom_call.1} parent=35 // pred_region
          %241 = dma.done [#allocation11], 128
        $region52: #{tpu_custom_call.1} parent=35 // pred_fallthru
          _
        %s242 = sand.u32 %s31, 1
        %s243 = scalar_lea.sflag [#allocation5], %s242
        %s244 = sand.u32 %s31, 1
        %s245 = smul.addr %s244, 16
        %s246 = scalar_lea.vmem [#allocation4], %s245
        %p247 = pneg %p44
        %p248 = pneg %p41
        %p249 = pneg %p65
        %p250 = pneg %p62
        %p251 = pneg %p86
        %p252 = pneg %p83
        %p253 = pneg %p107
        %p254 = pneg %p104
        %p255 = pneg %p133
        %p256 = pneg %p130
        %s257 = sand.u32 %s120, 1
        %s258 = scalar_lea.sflag [#allocation6], %s257
        %s259 = sand.u32 %s120, 1
        %s260 = smul.addr %s259, 16
        %s261 = scalar_lea.vmem [#allocation12], %s260
        %s262 = smul.u32 2, %s23
        %s263 = smul.u32 2, %s23
        %vm264 = vcmask 121856
        %265 = vst.msk [vmem:[#allocation2] sm:$0xff] %vm264, 0.0
        %266 = vst.msk [vmem:[#allocation2 + $0x10] sm:$0xff] %vm264, 0.0
        %vm267 = vcmask 244856
        %268 = vst.msk [vmem:[#allocation2 + $0x8] sm:$0xff] %vm267, 0.0
        %269 = vst.msk [vmem:[#allocation2 + $0x18] sm:$0xff] %vm267, 0.0
        %270 = vst [vmem:[#allocation3 + $0x1f0] sm:$0xff] 0.0
        %271 = vst [vmem:[#allocation3 + $0x1f8] sm:$0xff] 0.0
        %v272 = vld [vmem:[#allocation10] sm:$0xff]
        %v273 = vld [vmem:[%s221] sm:$0xff]
        %v274 = vld [vmem:[%s221 + $0x8] sm:$0xff]
        %277 = vrot.lane.b32.xlu0 %v273, 15
        %v278 = vpop.permute.xlu0 %277
        %279 = vrot.lane.b32.xlu0 %v274, 15
        %v280 = vpop.permute.xlu0 %279
        %vm283 = vcmask 1047672
        %284 = vst.msk [vmem:[#allocation2] sm:$0xff] %vm283, %v278
        %285 = vst.msk [vmem:[#allocation2 + $0x8] sm:$0xff] %vm264, %v278
        %286 = vst.msk [vmem:[#allocation2 + $0x10] sm:$0xff] %vm283, %v280
        %287 = vst.msk [vmem:[#allocation2 + $0x18] sm:$0xff] %vm264, %v280
        %v288 = vld [vmem:[#allocation2] sm:$0xff]
        %289 = vst [vmem:[#allocation3] sm:$0xff] %v288
        %v290 = vld [vmem:[#allocation2] sm:$0xff]
        %v291 = vld [vmem:[#allocation2 + $0x8] sm:$0xff]
        %294 = vrot.lane.b32.xlu0 %v290, 127
        %v295 = vpop.permute.xlu0 %294
        %296 = vrot.lane.b32.xlu0 %v291, 127
        %v297 = vpop.permute.xlu0 %296
        %vm298 = vcmask 1039360
        %v299 = vsel %vm298, %v295, %v297
        %301 = vst [vmem:[#allocation3 + $0x10] sm:$0xff] %v299
        %v302 = vld [vmem:[#allocation2] sm:$0xff]
        %v303 = vld [vmem:[#allocation2 + $0x8] sm:$0xff]
        %306 = vrot.lane.b32.xlu0 %v302, 126
        %v307 = vpop.permute.xlu0 %306
        %308 = vrot.lane.b32.xlu0 %v303, 126
        %v309 = vpop.permute.xlu0 %308
        %vm310 = vcmask 1031168
        %v311 = vsel %vm310, %v307, %v309
        %313 = vst [vmem:[#allocation3 + $0x20] sm:$0xff] %v311
        %v314 = vld [vmem:[#allocation2] sm:$0xff]
        %v315 = vld [vmem:[#allocation2 + $0x8] sm:$0xff]
        %318 = vrot.lane.b32.xlu0 %v314, 125
        %v319 = vpop.permute.xlu0 %318
        %320 = vrot.lane.b32.xlu0 %v315, 125
        %v321 = vpop.permute.xlu0 %320
        %vm322 = vcmask 1022976
        %v323 = vsel %vm322, %v319, %v321
        %325 = vst [vmem:[#allocation3 + $0x30] sm:$0xff] %v323
        %v326 = vld [vmem:[#allocation2] sm:$0xff]
        %v327 = vld [vmem:[#allocation2 + $0x8] sm:$0xff]
        %330 = vrot.lane.b32.xlu0 %v326, 124
        %v331 = vpop.permute.xlu0 %330
        %332 = vrot.lane.b32.xlu0 %v327, 124
        %v333 = vpop.permute.xlu0 %332
        %vm334 = vcmask 1014784
        %v335 = vsel %vm334, %v331, %v333
        %337 = vst [vmem:[#allocation3 + $0x40] sm:$0xff] %v335
        %v338 = vld [vmem:[#allocation2] sm:$0xff]
        %v339 = vld [vmem:[#allocation2 + $0x8] sm:$0xff]
        %342 = vrot.lane.b32.xlu0 %v338, 123
        %v343 = vpop.permute.xlu0 %342
        %344 = vrot.lane.b32.xlu0 %v339, 123
        %v345 = vpop.permute.xlu0 %344
        %vm346 = vcmask 1006592
        %v347 = vsel %vm346, %v343, %v345
        %349 = vst [vmem:[#allocation3 + $0x50] sm:$0xff] %v347
        %v350 = vld [vmem:[#allocation2] sm:$0xff]
        %v351 = vld [vmem:[#allocation2 + $0x8] sm:$0xff]
        %354 = vrot.lane.b32.xlu0 %v350, 122
        %v355 = vpop.permute.xlu0 %354
        %356 = vrot.lane.b32.xlu0 %v351, 122
        %v357 = vpop.permute.xlu0 %356
        %vm358 = vcmask 998400
        %v359 = vsel %vm358, %v355, %v357
        %361 = vst [vmem:[#allocation3 + $0x60] sm:$0xff] %v359
        %v362 = vld [vmem:[#allocation2] sm:$0xff]
        %v363 = vld [vmem:[#allocation2 + $0x8] sm:$0xff]
        %366 = vrot.lane.b32.xlu0 %v362, 121
        %v367 = vpop.permute.xlu0 %366
        %368 = vrot.lane.b32.xlu0 %v363, 121
        %v369 = vpop.permute.xlu0 %368
        %vm370 = vcmask 990208
        %v371 = vsel %vm370, %v367, %v369
        %373 = vst [vmem:[#allocation3 + $0x70] sm:$0xff] %v371
        %v374 = vld [vmem:[#allocation2] sm:$0xff]
        %v375 = vld [vmem:[#allocation2 + $0x8] sm:$0xff]
        %378 = vrot.lane.b32.xlu0 %v374, 120
        %v379 = vpop.permute.xlu0 %378
        %380 = vrot.lane.b32.xlu0 %v375, 120
        %v381 = vpop.permute.xlu0 %380
        %vm382 = vcmask 982016
        %v383 = vsel %vm382, %v379, %v381
        %385 = vst [vmem:[#allocation3 + $0x80] sm:$0xff] %v383
        %v386 = vld [vmem:[#allocation2] sm:$0xff]
        %v387 = vld [vmem:[#allocation2 + $0x8] sm:$0xff]
        %390 = vrot.lane.b32.xlu0 %v386, 119
        %v391 = vpop.permute.xlu0 %390
        %392 = vrot.lane.b32.xlu0 %v387, 119
        %v393 = vpop.permute.xlu0 %392
        %vm394 = vcmask 973824
        %v395 = vsel %vm394, %v391, %v393
        %397 = vst [vmem:[#allocation3 + $0x90] sm:$0xff] %v395
        %v398 = vld [vmem:[#allocation2] sm:$0xff]
        %v399 = vld [vmem:[#allocation2 + $0x8] sm:$0xff]
        %402 = vrot.lane.b32.xlu0 %v398, 118
        %v403 = vpop.permute.xlu0 %402
        %404 = vrot.lane.b32.xlu0 %v399, 118
        %v405 = vpop.permute.xlu0 %404
        %vm406 = vcmask 965632
        %v407 = vsel %vm406, %v403, %v405
        %409 = vst [vmem:[#allocation3 + $0xa0] sm:$0xff] %v407
        %v410 = vld [vmem:[#allocation2] sm:$0xff]
        %v411 = vld [vmem:[#allocation2 + $0x8] sm:$0xff]
        %414 = vrot.lane.b32.xlu0 %v410, 117
        %v415 = vpop.permute.xlu0 %414
        %416 = vrot.lane.b32.xlu0 %v411, 117
        %v417 = vpop.permute.xlu0 %416
        %vm418 = vcmask 957440
        %v419 = vsel %vm418, %v415, %v417
        %421 = vst [vmem:[#allocation3 + $0xb0] sm:$0xff] %v419
        %v422 = vld [vmem:[#allocation2] sm:$0xff]
        %v423 = vld [vmem:[#allocation2 + $0x8] sm:$0xff]
        %426 = vrot.lane.b32.xlu0 %v422, 116
        %v427 = vpop.permute.xlu0 %426
        %428 = vrot.lane.b32.xlu0 %v423, 116
        %v429 = vpop.permute.xlu0 %428
        %vm430 = vcmask 949248
        %v431 = vsel %vm430, %v427, %v429
        %433 = vst [vmem:[#allocation3 + $0xc0] sm:$0xff] %v431
        %v434 = vld [vmem:[#allocation2] sm:$0xff]
        %v435 = vld [vmem:[#allocation2 + $0x8] sm:$0xff]
        %438 = vrot.lane.b32.xlu0 %v434, 115
        %v439 = vpop.permute.xlu0 %438
        %440 = vrot.lane.b32.xlu0 %v435, 115
        %v441 = vpop.permute.xlu0 %440
        %vm442 = vcmask 941056
        %v443 = vsel %vm442, %v439, %v441
        %445 = vst [vmem:[#allocation3 + $0xd0] sm:$0xff] %v443
        %v446 = vld [vmem:[#allocation2] sm:$0xff]
        %v447 = vld [vmem:[#allocation2 + $0x8] sm:$0xff]
        %450 = vrot.lane.b32.xlu0 %v446, 114
        %v451 = vpop.permute.xlu0 %450
        %452 = vrot.lane.b32.xlu0 %v447, 114
        %v453 = vpop.permute.xlu0 %452
        %vm454 = vcmask 932864
        %v455 = vsel %vm454, %v451, %v453
        %457 = vst [vmem:[#allocation3 + $0xe0] sm:$0xff] %v455
        %v458 = vld [vmem:[#allocation2] sm:$0xff]
        %v459 = vld [vmem:[#allocation2 + $0x8] sm:$0xff]
        %462 = vrot.lane.b32.xlu0 %v458, 113
        %v463 = vpop.permute.xlu0 %462
        %464 = vrot.lane.b32.xlu0 %v459, 113
        %v465 = vpop.permute.xlu0 %464
        %vm466 = vcmask 924672
        %v467 = vsel %vm466, %v463, %v465
        %469 = vst [vmem:[#allocation3 + $0xf0] sm:$0xff] %v467
        %v470 = vld [vmem:[#allocation2] sm:$0xff]
        %v471 = vld [vmem:[#allocation2 + $0x8] sm:$0xff]
        %474 = vrot.lane.b32.xlu0 %v470, 112
        %v475 = vpop.permute.xlu0 %474
        %476 = vrot.lane.b32.xlu0 %v471, 112
        %v477 = vpop.permute.xlu0 %476
        %vm478 = vcmask 916480
        %v479 = vsel %vm478, %v475, %v477
        %481 = vst [vmem:[#allocation3 + $0x100] sm:$0xff] %v479
        %v482 = vld [vmem:[#allocation2] sm:$0xff]
        %v483 = vld [vmem:[#allocation2 + $0x8] sm:$0xff]
        %486 = vrot.lane.b32.xlu0 %v482, 111
        %v487 = vpop.permute.xlu0 %486
        %488 = vrot.lane.b32.xlu0 %v483, 111
        %v489 = vpop.permute.xlu0 %488
        %vm490 = vcmask 908288
        %v491 = vsel %vm490, %v487, %v489
        %493 = vst [vmem:[#allocation3 + $0x110] sm:$0xff] %v491
        %v494 = vld [vmem:[#allocation2] sm:$0xff]
        %v495 = vld [vmem:[#allocation2 + $0x8] sm:$0xff]
        %498 = vrot.lane.b32.xlu0 %v494, 110
        %v499 = vpop.permute.xlu0 %498
        %500 = vrot.lane.b32.xlu0 %v495, 110
        %v501 = vpop.permute.xlu0 %500
        %vm502 = vcmask 900096
        %v503 = vsel %vm502, %v499, %v501
        %505 = vst [vmem:[#allocation3 + $0x120] sm:$0xff] %v503
        %v506 = vld [vmem:[#allocation2] sm:$0xff]
        %v507 = vld [vmem:[#allocation2 + $0x8] sm:$0xff]
        %510 = vrot.lane.b32.xlu0 %v506, 109
        %v511 = vpop.permute.xlu0 %510
        %512 = vrot.lane.b32.xlu0 %v507, 109
        %v513 = vpop.permute.xlu0 %512
        %vm514 = vcmask 891904
        %v515 = vsel %vm514, %v511, %v513
        %517 = vst [vmem:[#allocation3 + $0x130] sm:$0xff] %v515
        %v518 = vld [vmem:[#allocation2] sm:$0xff]
        %v519 = vld [vmem:[#allocation2 + $0x8] sm:$0xff]
        %522 = vrot.lane.b32.xlu0 %v518, 108
        %v523 = vpop.permute.xlu0 %522
        %524 = vrot.lane.b32.xlu0 %v519, 108
        %v525 = vpop.permute.xlu0 %524
        %vm526 = vcmask 883712
        %v527 = vsel %vm526, %v523, %v525
        %529 = vst [vmem:[#allocation3 + $0x140] sm:$0xff] %v527
        %v530 = vld [vmem:[#allocation2] sm:$0xff]
        %v531 = vld [vmem:[#allocation2 + $0x8] sm:$0xff]
        %534 = vrot.lane.b32.xlu0 %v530, 107
        %v535 = vpop.permute.xlu0 %534
        %536 = vrot.lane.b32.xlu0 %v531, 107
        %v537 = vpop.permute.xlu0 %536
        %vm538 = vcmask 875520
        %v539 = vsel %vm538, %v535, %v537
        %541 = vst [vmem:[#allocation3 + $0x150] sm:$0xff] %v539
        %v542 = vld [vmem:[#allocation2] sm:$0xff]
        %v543 = vld [vmem:[#allocation2 + $0x8] sm:$0xff]
        %546 = vrot.lane.b32.xlu0 %v542, 106
        %v547 = vpop.permute.xlu0 %546
        %548 = vrot.lane.b32.xlu0 %v543, 106
        %v549 = vpop.permute.xlu0 %548
        %vm550 = vcmask 867328
        %v551 = vsel %vm550, %v547, %v549
        %553 = vst [vmem:[#allocation3 + $0x160] sm:$0xff] %v551
        %v554 = vld [vmem:[#allocation2] sm:$0xff]
        %v555 = vld [vmem:[#allocation2 + $0x8] sm:$0xff]
        %558 = vrot.lane.b32.xlu0 %v554, 105
        %v559 = vpop.permute.xlu0 %558
        %560 = vrot.lane.b32.xlu0 %v555, 105
        %v561 = vpop.permute.xlu0 %560
        %vm562 = vcmask 859136
        %v563 = vsel %vm562, %v559, %v561
        %565 = vst [vmem:[#allocation3 + $0x170] sm:$0xff] %v563
        %v566 = vld [vmem:[#allocation2] sm:$0xff]
        %v567 = vld [vmem:[#allocation2 + $0x8] sm:$0xff]
        %570 = vrot.lane.b32.xlu0 %v566, 104
        %v571 = vpop.permute.xlu0 %570
        %572 = vrot.lane.b32.xlu0 %v567, 104
        %v573 = vpop.permute.xlu0 %572
        %vm574 = vcmask 850944
        %v575 = vsel %vm574, %v571, %v573
        %577 = vst [vmem:[#allocation3 + $0x180] sm:$0xff] %v575
        %v578 = vld [vmem:[#allocation2] sm:$0xff]
        %v579 = vld [vmem:[#allocation2 + $0x8] sm:$0xff]
        %582 = vrot.lane.b32.xlu0 %v578, 103
        %v583 = vpop.permute.xlu0 %582
        %584 = vrot.lane.b32.xlu0 %v579, 103
        %v585 = vpop.permute.xlu0 %584
        %vm586 = vcmask 842752
        %v587 = vsel %vm586, %v583, %v585
        %589 = vst [vmem:[#allocation3 + $0x190] sm:$0xff] %v587
        %v590 = vld [vmem:[#allocation2] sm:$0xff]
        %v591 = vld [vmem:[#allocation2 + $0x8] sm:$0xff]
        %594 = vrot.lane.b32.xlu0 %v590, 102
        %v595 = vpop.permute.xlu0 %594
        %596 = vrot.lane.b32.xlu0 %v591, 102
        %v597 = vpop.permute.xlu0 %596
        %vm598 = vcmask 834560
        %v599 = vsel %vm598, %v595, %v597
        %601 = vst [vmem:[#allocation3 + $0x1a0] sm:$0xff] %v599
        %v602 = vld [vmem:[#allocation2] sm:$0xff]
        %v603 = vld [vmem:[#allocation2 + $0x8] sm:$0xff]
        %606 = vrot.lane.b32.xlu0 %v602, 101
        %v607 = vpop.permute.xlu0 %606
        %608 = vrot.lane.b32.xlu0 %v603, 101
        %v609 = vpop.permute.xlu0 %608
        %vm610 = vcmask 826368
        %v611 = vsel %vm610, %v607, %v609
        %613 = vst [vmem:[#allocation3 + $0x1b0] sm:$0xff] %v611
        %v614 = vld [vmem:[#allocation2] sm:$0xff]
        %v615 = vld [vmem:[#allocation2 + $0x8] sm:$0xff]
        %618 = vrot.lane.b32.xlu0 %v614, 100
        %v619 = vpop.permute.xlu0 %618
        %620 = vrot.lane.b32.xlu0 %v615, 100
        %v621 = vpop.permute.xlu0 %620
        %vm622 = vcmask 818176
        %v623 = vsel %vm622, %v619, %v621
        %625 = vst [vmem:[#allocation3 + $0x1c0] sm:$0xff] %v623
        %v626 = vld [vmem:[#allocation2] sm:$0xff]
        %v627 = vld [vmem:[#allocation2 + $0x8] sm:$0xff]
        %630 = vrot.lane.b32.xlu0 %v626, 99
        %v631 = vpop.permute.xlu0 %630
        %632 = vrot.lane.b32.xlu0 %v627, 99
        %v633 = vpop.permute.xlu0 %632
        %vm634 = vcmask 809984
        %v635 = vsel %vm634, %v631, %v633
        %637 = vst [vmem:[#allocation3 + $0x1d0] sm:$0xff] %v635
        %v638 = vld [vmem:[#allocation2] sm:$0xff]
        %v639 = vld [vmem:[#allocation2 + $0x8] sm:$0xff]
        %642 = vrot.lane.b32.xlu0 %v638, 98
        %v643 = vpop.permute.xlu0 %642
        %644 = vrot.lane.b32.xlu0 %v639, 98
        %v645 = vpop.permute.xlu0 %644
        %vm646 = vcmask 801792
        %v647 = vsel %vm646, %v643, %v645
        %649 = vst [vmem:[#allocation3 + $0x1e0] sm:$0xff] %v647
        %s650 = scalar_lea.vmem [#allocation2], 16
        %v651 = vld [vmem:[%s650] sm:$0xff]
        %652 = vst [vmem:[#allocation3 + $0x8] sm:$0xff] %v651
        %v653 = vld [vmem:[%s650] sm:$0xff]
        %v654 = vld [vmem:[%s650 + $0x8] sm:$0xff]
        %657 = vrot.lane.b32.xlu0 %v653, 127
        %v658 = vpop.permute.xlu0 %657
        %659 = vrot.lane.b32.xlu0 %v654, 127
        %v660 = vpop.permute.xlu0 %659
        %v661 = vsel %vm298, %v658, %v660
        %663 = vst [vmem:[#allocation3 + $0x18] sm:$0xff] %v661
        %v664 = vld [vmem:[%s650] sm:$0xff]
        %v665 = vld [vmem:[%s650 + $0x8] sm:$0xff]
        %668 = vrot.lane.b32.xlu0 %v664, 126
        %v669 = vpop.permute.xlu0 %668
        %670 = vrot.lane.b32.xlu0 %v665, 126
        %v671 = vpop.permute.xlu0 %670
        %v672 = vsel %vm310, %v669, %v671
        %674 = vst [vmem:[#allocation3 + $0x28] sm:$0xff] %v672
        %v675 = vld [vmem:[%s650] sm:$0xff]
        %v676 = vld [vmem:[%s650 + $0x8] sm:$0xff]
        %679 = vrot.lane.b32.xlu0 %v675, 125
        %v680 = vpop.permute.xlu0 %679
        %681 = vrot.lane.b32.xlu0 %v676, 125
        %v682 = vpop.permute.xlu0 %681
        %v683 = vsel %vm322, %v680, %v682
        %685 = vst [vmem:[#allocation3 + $0x38] sm:$0xff] %v683
        %v686 = vld [vmem:[%s650] sm:$0xff]
        %v687 = vld [vmem:[%s650 + $0x8] sm:$0xff]
        %690 = vrot.lane.b32.xlu0 %v686, 124
        %v691 = vpop.permute.xlu0 %690
        %692 = vrot.lane.b32.xlu0 %v687, 124
        %v693 = vpop.permute.xlu0 %692
        %v694 = vsel %vm334, %v691, %v693
        %696 = vst [vmem:[#allocation3 + $0x48] sm:$0xff] %v694
        %v697 = vld [vmem:[%s650] sm:$0xff]
        %v698 = vld [vmem:[%s650 + $0x8] sm:$0xff]
        %701 = vrot.lane.b32.xlu0 %v697, 123
        %v702 = vpop.permute.xlu0 %701
        %703 = vrot.lane.b32.xlu0 %v698, 123
        %v704 = vpop.permute.xlu0 %703
        %v705 = vsel %vm346, %v702, %v704
        %707 = vst [vmem:[#allocation3 + $0x58] sm:$0xff] %v705
        %v708 = vld [vmem:[%s650] sm:$0xff]
        %v709 = vld [vmem:[%s650 + $0x8] sm:$0xff]
        %712 = vrot.lane.b32.xlu0 %v708, 122
        %v713 = vpop.permute.xlu0 %712
        %714 = vrot.lane.b32.xlu0 %v709, 122
        %v715 = vpop.permute.xlu0 %714
        %v716 = vsel %vm358, %v713, %v715
        %718 = vst [vmem:[#allocation3 + $0x68] sm:$0xff] %v716
        %v719 = vld [vmem:[%s650] sm:$0xff]
        %v720 = vld [vmem:[%s650 + $0x8] sm:$0xff]
        %723 = vrot.lane.b32.xlu0 %v719, 121
        %v724 = vpop.permute.xlu0 %723
        %725 = vrot.lane.b32.xlu0 %v720, 121
        %v726 = vpop.permute.xlu0 %725
        %v727 = vsel %vm370, %v724, %v726
        %729 = vst [vmem:[#allocation3 + $0x78] sm:$0xff] %v727
        %v730 = vld [vmem:[%s650] sm:$0xff]
        %v731 = vld [vmem:[%s650 + $0x8] sm:$0xff]
        %734 = vrot.lane.b32.xlu0 %v730, 120
        %v735 = vpop.permute.xlu0 %734
        %736 = vrot.lane.b32.xlu0 %v731, 120
        %v737 = vpop.permute.xlu0 %736
        %v738 = vsel %vm382, %v735, %v737
        %740 = vst [vmem:[#allocation3 + $0x88] sm:$0xff] %v738
        %v741 = vld [vmem:[%s650] sm:$0xff]
        %v742 = vld [vmem:[%s650 + $0x8] sm:$0xff]
        %745 = vrot.lane.b32.xlu0 %v741, 119
        %v746 = vpop.permute.xlu0 %745
        %747 = vrot.lane.b32.xlu0 %v742, 119
        %v748 = vpop.permute.xlu0 %747
        %v749 = vsel %vm394, %v746, %v748
        %751 = vst [vmem:[#allocation3 + $0x98] sm:$0xff] %v749
        %v752 = vld [vmem:[%s650] sm:$0xff]
        %v753 = vld [vmem:[%s650 + $0x8] sm:$0xff]
        %756 = vrot.lane.b32.xlu0 %v752, 118
        %v757 = vpop.permute.xlu0 %756
        %758 = vrot.lane.b32.xlu0 %v753, 118
        %v759 = vpop.permute.xlu0 %758
        %v760 = vsel %vm406, %v757, %v759
        %762 = vst [vmem:[#allocation3 + $0xa8] sm:$0xff] %v760
        %v763 = vld [vmem:[%s650] sm:$0xff]
        %v764 = vld [vmem:[%s650 + $0x8] sm:$0xff]
        %767 = vrot.lane.b32.xlu0 %v763, 117
        %v768 = vpop.permute.xlu0 %767
        %769 = vrot.lane.b32.xlu0 %v764, 117
        %v770 = vpop.permute.xlu0 %769
        %v771 = vsel %vm418, %v768, %v770
        %773 = vst [vmem:[#allocation3 + $0xb8] sm:$0xff] %v771
        %v774 = vld [vmem:[%s650] sm:$0xff]
        %v775 = vld [vmem:[%s650 + $0x8] sm:$0xff]
        %778 = vrot.lane.b32.xlu0 %v774, 116
        %v779 = vpop.permute.xlu0 %778
        %780 = vrot.lane.b32.xlu0 %v775, 116
        %v781 = vpop.permute.xlu0 %780
        %v782 = vsel %vm430, %v779, %v781
        %784 = vst [vmem:[#allocation3 + $0xc8] sm:$0xff] %v782
        %v785 = vld [vmem:[%s650] sm:$0xff]
        %v786 = vld [vmem:[%s650 + $0x8] sm:$0xff]
        %789 = vrot.lane.b32.xlu0 %v785, 115
        %v790 = vpop.permute.xlu0 %789
        %791 = vrot.lane.b32.xlu0 %v786, 115
        %v792 = vpop.permute.xlu0 %791
        %v793 = vsel %vm442, %v790, %v792
        %795 = vst [vmem:[#allocation3 + $0xd8] sm:$0xff] %v793
        %v796 = vld [vmem:[%s650] sm:$0xff]
        %v797 = vld [vmem:[%s650 + $0x8] sm:$0xff]
        %800 = vrot.lane.b32.xlu0 %v796, 114
        %v801 = vpop.permute.xlu0 %800
        %802 = vrot.lane.b32.xlu0 %v797, 114
        %v803 = vpop.permute.xlu0 %802
        %v804 = vsel %vm454, %v801, %v803
        %806 = vst [vmem:[#allocation3 + $0xe8] sm:$0xff] %v804
        %v807 = vld [vmem:[%s650] sm:$0xff]
        %v808 = vld [vmem:[%s650 + $0x8] sm:$0xff]
        %811 = vrot.lane.b32.xlu0 %v807, 113
        %v812 = vpop.permute.xlu0 %811
        %813 = vrot.lane.b32.xlu0 %v808, 113
        %v814 = vpop.permute.xlu0 %813
        %v815 = vsel %vm466, %v812, %v814
        %817 = vst [vmem:[#allocation3 + $0xf8] sm:$0xff] %v815
        %v818 = vld [vmem:[%s650] sm:$0xff]
        %v819 = vld [vmem:[%s650 + $0x8] sm:$0xff]
        %822 = vrot.lane.b32.xlu0 %v818, 112
        %v823 = vpop.permute.xlu0 %822
        %824 = vrot.lane.b32.xlu0 %v819, 112
        %v825 = vpop.permute.xlu0 %824
        %v826 = vsel %vm478, %v823, %v825
        %828 = vst [vmem:[#allocation3 + $0x108] sm:$0xff] %v826
        %v829 = vld [vmem:[%s650] sm:$0xff]
        %v830 = vld [vmem:[%s650 + $0x8] sm:$0xff]
        %833 = vrot.lane.b32.xlu0 %v829, 111
        %v834 = vpop.permute.xlu0 %833
        %835 = vrot.lane.b32.xlu0 %v830, 111
        %v836 = vpop.permute.xlu0 %835
        %v837 = vsel %vm490, %v834, %v836
        %839 = vst [vmem:[#allocation3 + $0x118] sm:$0xff] %v837
        %v840 = vld [vmem:[%s650] sm:$0xff]
        %v841 = vld [vmem:[%s650 + $0x8] sm:$0xff]
        %844 = vrot.lane.b32.xlu0 %v840, 110
        %v845 = vpop.permute.xlu0 %844
        %846 = vrot.lane.b32.xlu0 %v841, 110
        %v847 = vpop.permute.xlu0 %846
        %v848 = vsel %vm502, %v845, %v847
        %850 = vst [vmem:[#allocation3 + $0x128] sm:$0xff] %v848
        %v851 = vld [vmem:[%s650] sm:$0xff]
        %v852 = vld [vmem:[%s650 + $0x8] sm:$0xff]
        %855 = vrot.lane.b32.xlu0 %v851, 109
        %v856 = vpop.permute.xlu0 %855
        %857 = vrot.lane.b32.xlu0 %v852, 109
        %v858 = vpop.permute.xlu0 %857
        %v859 = vsel %vm514, %v856, %v858
        %861 = vst [vmem:[#allocation3 + $0x138] sm:$0xff] %v859
        %v862 = vld [vmem:[%s650] sm:$0xff]
        %v863 = vld [vmem:[%s650 + $0x8] sm:$0xff]
        %866 = vrot.lane.b32.xlu0 %v862, 108
        %v867 = vpop.permute.xlu0 %866
        %868 = vrot.lane.b32.xlu0 %v863, 108
        %v869 = vpop.permute.xlu0 %868
        %v870 = vsel %vm526, %v867, %v869
        %872 = vst [vmem:[#allocation3 + $0x148] sm:$0xff] %v870
        %v873 = vld [vmem:[%s650] sm:$0xff]
        %v874 = vld [vmem:[%s650 + $0x8] sm:$0xff]
        %877 = vrot.lane.b32.xlu0 %v873, 107
        %v878 = vpop.permute.xlu0 %877
        %879 = vrot.lane.b32.xlu0 %v874, 107
        %v880 = vpop.permute.xlu0 %879
        %v881 = vsel %vm538, %v878, %v880
        %883 = vst [vmem:[#allocation3 + $0x158] sm:$0xff] %v881
        %v884 = vld [vmem:[%s650] sm:$0xff]
        %v885 = vld [vmem:[%s650 + $0x8] sm:$0xff]
        %888 = vrot.lane.b32.xlu0 %v884, 106
        %v889 = vpop.permute.xlu0 %888
        %890 = vrot.lane.b32.xlu0 %v885, 106
        %v891 = vpop.permute.xlu0 %890
        %v892 = vsel %vm550, %v889, %v891
        %894 = vst [vmem:[#allocation3 + $0x168] sm:$0xff] %v892
        %v895 = vld [vmem:[%s650] sm:$0xff]
        %v896 = vld [vmem:[%s650 + $0x8] sm:$0xff]
        %899 = vrot.lane.b32.xlu0 %v895, 105
        %v900 = vpop.permute.xlu0 %899
        %901 = vrot.lane.b32.xlu0 %v896, 105
        %v902 = vpop.permute.xlu0 %901
        %v903 = vsel %vm562, %v900, %v902
        %905 = vst [vmem:[#allocation3 + $0x178] sm:$0xff] %v903
        %v906 = vld [vmem:[%s650] sm:$0xff]
        %v907 = vld [vmem:[%s650 + $0x8] sm:$0xff]
        %910 = vrot.lane.b32.xlu0 %v906, 104
        %v911 = vpop.permute.xlu0 %910
        %912 = vrot.lane.b32.xlu0 %v907, 104
        %v913 = vpop.permute.xlu0 %912
        %v914 = vsel %vm574, %v911, %v913
        %916 = vst [vmem:[#allocation3 + $0x188] sm:$0xff] %v914
        %v917 = vld [vmem:[%s650] sm:$0xff]
        %v918 = vld [vmem:[%s650 + $0x8] sm:$0xff]
        %921 = vrot.lane.b32.xlu0 %v917, 103
        %v922 = vpop.permute.xlu0 %921
        %923 = vrot.lane.b32.xlu0 %v918, 103
        %v924 = vpop.permute.xlu0 %923
        %v925 = vsel %vm586, %v922, %v924
        %927 = vst [vmem:[#allocation3 + $0x198] sm:$0xff] %v925
        %v928 = vld [vmem:[%s650] sm:$0xff]
        %v929 = vld [vmem:[%s650 + $0x8] sm:$0xff]
        %932 = vrot.lane.b32.xlu0 %v928, 102
        %v933 = vpop.permute.xlu0 %932
        %934 = vrot.lane.b32.xlu0 %v929, 102
        %v935 = vpop.permute.xlu0 %934
        %v936 = vsel %vm598, %v933, %v935
        %938 = vst [vmem:[#allocation3 + $0x1a8] sm:$0xff] %v936
        %v939 = vld [vmem:[%s650] sm:$0xff]
        %v940 = vld [vmem:[%s650 + $0x8] sm:$0xff]
        %943 = vrot.lane.b32.xlu0 %v939, 101
        %v944 = vpop.permute.xlu0 %943
        %945 = vrot.lane.b32.xlu0 %v940, 101
        %v946 = vpop.permute.xlu0 %945
        %v947 = vsel %vm610, %v944, %v946
        %949 = vst [vmem:[#allocation3 + $0x1b8] sm:$0xff] %v947
        %v950 = vld [vmem:[%s650] sm:$0xff]
        %v951 = vld [vmem:[%s650 + $0x8] sm:$0xff]
        %954 = vrot.lane.b32.xlu0 %v950, 100
        %v955 = vpop.permute.xlu0 %954
        %956 = vrot.lane.b32.xlu0 %v951, 100
        %v957 = vpop.permute.xlu0 %956
        %v958 = vsel %vm622, %v955, %v957
        %960 = vst [vmem:[#allocation3 + $0x1c8] sm:$0xff] %v958
        %v961 = vld [vmem:[%s650] sm:$0xff]
        %v962 = vld [vmem:[%s650 + $0x8] sm:$0xff]
        %965 = vrot.lane.b32.xlu0 %v961, 99
        %v966 = vpop.permute.xlu0 %965
        %967 = vrot.lane.b32.xlu0 %v962, 99
        %v968 = vpop.permute.xlu0 %967
        %v969 = vsel %vm634, %v966, %v968
        %971 = vst [vmem:[#allocation3 + $0x1d8] sm:$0xff] %v969
        %v972 = vld [vmem:[%s650] sm:$0xff]
        %v973 = vld [vmem:[%s650 + $0x8] sm:$0xff]
        %976 = vrot.lane.b32.xlu0 %v972, 98
        %v977 = vpop.permute.xlu0 %976
        %978 = vrot.lane.b32.xlu0 %v973, 98
        %v979 = vpop.permute.xlu0 %978
        %v980 = vsel %vm646, %v977, %v979
        %982 = vst [vmem:[#allocation3 + $0x1e8] sm:$0xff] %v980
        %v983 = vld [vmem:[#allocation7] sm:$0xff]
        %v984 = vld [vmem:[#allocation7 + $0x8] sm:$0xff]
        %v985 = vld [vmem:[#allocation3] sm:$0xff]
        %v986 = vld [vmem:[#allocation3 + $0x8] sm:$0xff]
        %v987 = vld [vmem:[#allocation3 + $0x10] sm:$0xff]
        %v988 = vld [vmem:[#allocation3 + $0x18] sm:$0xff]
        %v989 = vld [vmem:[#allocation3 + $0x20] sm:$0xff]
        %v990 = vld [vmem:[#allocation3 + $0x28] sm:$0xff]
        %v991 = vld [vmem:[#allocation3 + $0x30] sm:$0xff]
        %v992 = vld [vmem:[#allocation3 + $0x38] sm:$0xff]
        %v993 = vld [vmem:[#allocation3 + $0x40] sm:$0xff]
        %v994 = vld [vmem:[#allocation3 + $0x48] sm:$0xff]
        %v995 = vld [vmem:[#allocation3 + $0x50] sm:$0xff]
        %v996 = vld [vmem:[#allocation3 + $0x58] sm:$0xff]
        %v997 = vld [vmem:[#allocation3 + $0x60] sm:$0xff]
        %v998 = vld [vmem:[#allocation3 + $0x68] sm:$0xff]
        %v999 = vld [vmem:[#allocation3 + $0x70] sm:$0xff]
        %v1000 = vld [vmem:[#allocation3 + $0x78] sm:$0xff]
        %v1001 = vld [vmem:[#allocation3 + $0x80] sm:$0xff]
        %v1002 = vld [vmem:[#allocation3 + $0x88] sm:$0xff]
        %v1003 = vld [vmem:[#allocation3 + $0x90] sm:$0xff]
        %v1004 = vld [vmem:[#allocation3 + $0x98] sm:$0xff]
        %v1005 = vld [vmem:[#allocation3 + $0xa0] sm:$0xff]
        %v1006 = vld [vmem:[#allocation3 + $0xa8] sm:$0xff]
        %v1007 = vld [vmem:[#allocation3 + $0xb0] sm:$0xff]
        %v1008 = vld [vmem:[#allocation3 + $0xb8] sm:$0xff]
        %v1009 = vld [vmem:[#allocation3 + $0xc0] sm:$0xff]
        %v1010 = vld [vmem:[#allocation3 + $0xc8] sm:$0xff]
        %v1011 = vld [vmem:[#allocation3 + $0xd0] sm:$0xff]
        %v1012 = vld [vmem:[#allocation3 + $0xd8] sm:$0xff]
        %v1013 = vld [vmem:[#allocation3 + $0xe0] sm:$0xff]
        %v1014 = vld [vmem:[#allocation3 + $0xe8] sm:$0xff]
        %v1015 = vld [vmem:[#allocation3 + $0xf0] sm:$0xff]
        %v1016 = vld [vmem:[#allocation3 + $0xf8] sm:$0xff]
        %v1017 = vld [vmem:[#allocation3 + $0x100] sm:$0xff]
        %v1018 = vld [vmem:[#allocation3 + $0x108] sm:$0xff]
        %v1019 = vld [vmem:[#allocation3 + $0x110] sm:$0xff]
        %v1020 = vld [vmem:[#allocation3 + $0x118] sm:$0xff]
        %v1021 = vld [vmem:[#allocation3 + $0x120] sm:$0xff]
        %v1022 = vld [vmem:[#allocation3 + $0x128] sm:$0xff]
        %v1023 = vld [vmem:[#allocation3 + $0x130] sm:$0xff]
        %v1024 = vld [vmem:[#allocation3 + $0x138] sm:$0xff]
        %v1025 = vld [vmem:[#allocation3 + $0x140] sm:$0xff]
        %v1026 = vld [vmem:[#allocation3 + $0x148] sm:$0xff]
        %v1027 = vld [vmem:[#allocation3 + $0x150] sm:$0xff]
        %v1028 = vld [vmem:[#allocation3 + $0x158] sm:$0xff]
        %v1029 = vld [vmem:[#allocation3 + $0x160] sm:$0xff]
        %v1030 = vld [vmem:[#allocation3 + $0x168] sm:$0xff]
        %v1031 = vld [vmem:[#allocation3 + $0x170] sm:$0xff]
        %v1032 = vld [vmem:[#allocation3 + $0x178] sm:$0xff]
        %v1033 = vld [vmem:[#allocation3 + $0x180] sm:$0xff]
        %v1034 = vld [vmem:[#allocation3 + $0x188] sm:$0xff]
        %v1035 = vld [vmem:[#allocation3 + $0x190] sm:$0xff]
        %v1036 = vld [vmem:[#allocation3 + $0x198] sm:$0xff]
        %v1037 = vld [vmem:[#allocation3 + $0x1a0] sm:$0xff]
        %v1038 = vld [vmem:[#allocation3 + $0x1a8] sm:$0xff]
        %v1039 = vld [vmem:[#allocation3 + $0x1b0] sm:$0xff]
        %v1040 = vld [vmem:[#allocation3 + $0x1b8] sm:$0xff]
        %v1041 = vld [vmem:[#allocation3 + $0x1c0] sm:$0xff]
        %v1042 = vld [vmem:[#allocation3 + $0x1c8] sm:$0xff]
        %v1043 = vld [vmem:[#allocation3 + $0x1d0] sm:$0xff]
        %v1044 = vld [vmem:[#allocation3 + $0x1d8] sm:$0xff]
        %v1045 = vld [vmem:[#allocation3 + $0x1e0] sm:$0xff]
        %v1046 = vld [vmem:[#allocation3 + $0x1e8] sm:$0xff]
        %v1047 = vld [vmem:[#allocation3 + $0x1f0] sm:$0xff]
        %v1048 = vld [vmem:[#allocation3 + $0x1f8] sm:$0xff]
        %1049 = vmatpush.msra.mxu0 %v1015
        %1050 = vmatpush.msra.mxu0 %v1013
        %1051 = vmatpush.msra.mxu0 %v1011
        %1052 = vmatpush.msra.mxu0 %v1009
        %1053 = vmatpush.msra.mxu0 %v1007
        %1054 = vmatpush.msra.mxu0 %v1005
        %1055 = vmatpush.msra.mxu0 %v1003
        %1056 = vmatpush.msra.mxu0 %v1001
        %1057 = vmatpush.msra.mxu0 %v999
        %1058 = vmatpush.msra.mxu0 %v997
        %1059 = vmatpush.msra.mxu0 %v995
        %1060 = vmatpush.msra.mxu0 %v993
        %1061 = vmatpush.msra.mxu0 %v991
        %1062 = vmatpush.msra.mxu0 %v989
        %1063 = vmatpush.msra.mxu0 %v987
        %1064 = vmatpush.msra.mxu0 %v985
        %1065 = vmatmul.f32.gmra.mxu0 %v983
        %v1066 = vpop.f32.mrf.mxu0
        %v1067 = vadd.f32 0.0, %v1066
        %1068 = vdwg.mxu0
        %1069 = vmatpush.msra.mxu0 %v1047
        %1070 = vmatpush.msra.mxu0 %v1045
        %1071 = vmatpush.msra.mxu0 %v1043
        %1072 = vmatpush.msra.mxu0 %v1041
        %1073 = vmatpush.msra.mxu0 %v1039
        %1074 = vmatpush.msra.mxu0 %v1037
        %1075 = vmatpush.msra.mxu0 %v1035
        %1076 = vmatpush.msra.mxu0 %v1033
        %1077 = vmatpush.msra.mxu0 %v1031
        %1078 = vmatpush.msra.mxu0 %v1029
        %1079 = vmatpush.msra.mxu0 %v1027
        %1080 = vmatpush.msra.mxu0 %v1025
        %1081 = vmatpush.msra.mxu0 %v1023
        %1082 = vmatpush.msra.mxu0 %v1021
        %1083 = vmatpush.msra.mxu0 %v1019
        %1084 = vmatpush.msra.mxu0 %v1017
        %1085 = vmatmul.f32.gmra.mxu0 %v984
        %v1086 = vpop.f32.mrf.mxu0
        %v1087 = vadd.f32 %v1067, %v1086
        %1088 = vdwg.mxu0
        %1089 = vmatpush.msra.mxu0 %v1016
        %1090 = vmatpush.msra.mxu0 %v1014
        %1091 = vmatpush.msra.mxu0 %v1012
        %1092 = vmatpush.msra.mxu0 %v1010
        %1093 = vmatpush.msra.mxu0 %v1008
        %1094 = vmatpush.msra.mxu0 %v1006
        %1095 = vmatpush.msra.mxu0 %v1004
        %1096 = vmatpush.msra.mxu0 %v1002
        %1097 = vmatpush.msra.mxu0 %v1000
        %1098 = vmatpush.msra.mxu0 %v998
        %1099 = vmatpush.msra.mxu0 %v996
        %1100 = vmatpush.msra.mxu0 %v994
        %1101 = vmatpush.msra.mxu0 %v992
        %1102 = vmatpush.msra.mxu0 %v990
        %1103 = vmatpush.msra.mxu0 %v988
        %1104 = vmatpush.msra.mxu0 %v986
        %1105 = vmatmul.f32.gmra.mxu0 %v983
        %v1106 = vpop.f32.mrf.mxu0
        %v1107 = vadd.f32 0.0, %v1106
        %1108 = vdwg.mxu0
        %1109 = vmatpush.msra.mxu0 %v1048
        %1110 = vmatpush.msra.mxu0 %v1046
        %1111 = vmatpush.msra.mxu0 %v1044
        %1112 = vmatpush.msra.mxu0 %v1042
        %1113 = vmatpush.msra.mxu0 %v1040
        %1114 = vmatpush.msra.mxu0 %v1038
        %1115 = vmatpush.msra.mxu0 %v1036
        %1116 = vmatpush.msra.mxu0 %v1034
        %1117 = vmatpush.msra.mxu0 %v1032
        %1118 = vmatpush.msra.mxu0 %v1030
        %1119 = vmatpush.msra.mxu0 %v1028
        %1120 = vmatpush.msra.mxu0 %v1026
        %1121 = vmatpush.msra.mxu0 %v1024
        %1122 = vmatpush.msra.mxu0 %v1022
        %1123 = vmatpush.msra.mxu0 %v1020
        %1124 = vmatpush.msra.mxu0 %v1018
        %1125 = vmatmul.f32.gmra.mxu0 %v984
        %v1126 = vpop.f32.mrf.mxu0
        %v1127 = vadd.f32 %v1107, %v1126
        %1128 = vdwg.mxu0
        %1129 = vadd.xlane.f32.xlu0 %v1087
        %v1130 = vpop.xlane.xlu0 %1129
        %v1131 = vmul.f32 %v1087, %v1087
        %1132 = vadd.xlane.f32.xlu0 %v1131
        %v1133 = vpop.xlane.xlu0 %1132
        %v1134 = vmul.f32 %v1130, 0.0078125
        %v1135 = vmul.f32 %v1133, 0.0078125
        %v1136 = vmul.f32 %v1134, %v1134
        %v1137 = vsub.f32 %v1135, %v1136
        %v1138 = vsub.f32 %v1087, %v1134
        %v1139 = vadd.f32 %v1137, 1e-05
        %v1140 = vrsqrt.pop %v1139
        %v1141 = vmul.f32 %v1140, %v1139
        %v1142 = vmul.f32 %v1141, %v1140
        %v1143 = vmul.f32 0.5, %v1142
        %v1144 = vsub.f32 1.5, %v1143
        %v1145 = vmul.f32 %v1140, %v1144
        %vm1146 = vweird.f32 %v1139
        %vm1147 = vweird.f32 %v1140
        %vm1148 = vmor %vm1146, %vm1147
        %v1149 = vsel %vm1148, %v1140, %v1145
        %v1150 = vmul.f32 %v1138, %v1149
        %1152 = vset.pattern.permute.xlu0 0
        %1153 = vperm.xlu0 %1152, %v272
        %v1154 = vpop.permute.xlu0 %1153
        %v1156 = vmul.f32 %v1150, %v1154
        %1157 = vset.pattern.permute.xlu0 1
        %1158 = vperm.xlu0 %1157, %v272
        %v1159 = vpop.permute.xlu0 %1158
        %v1161 = vadd.f32 %v1156, %v1159
        %v1162 = vmax.f32 %v1161, 0.0
        %1164 = vrot.lane.b32.xlu0 %v1162, 15
        %v1165 = vpop.permute.xlu0 %1164
        %1167 = vst.msk [vmem:[#allocation2] sm:$0xff] %vm283, %v1165
        %1168 = vst.msk [vmem:[#allocation2 + $0x8] sm:$0xff] %vm264, %v1165
        %1169 = vadd.xlane.f32.xlu0 %v1127
        %v1170 = vpop.xlane.xlu0 %1169
        %v1171 = vmul.f32 %v1127, %v1127
        %1172 = vadd.xlane.f32.xlu0 %v1171
        %v1173 = vpop.xlane.xlu0 %1172
        %v1174 = vmul.f32 %v1170, 0.0078125
        %v1175 = vmul.f32 %v1173, 0.0078125
        %v1176 = vmul.f32 %v1174, %v1174
        %v1177 = vsub.f32 %v1175, %v1176
        %v1178 = vsub.f32 %v1127, %v1174
        %v1179 = vadd.f32 %v1177, 1e-05
        %v1180 = vrsqrt.pop %v1179
        %v1181 = vmul.f32 %v1180, %v1179
        %v1182 = vmul.f32 %v1181, %v1180
        %v1183 = vmul.f32 0.5, %v1182
        %v1184 = vsub.f32 1.5, %v1183
        %v1185 = vmul.f32 %v1180, %v1184
        %vm1186 = vweird.f32 %v1179
        %vm1187 = vweird.f32 %v1180
        %vm1188 = vmor %vm1186, %vm1187
        %v1189 = vsel %vm1188, %v1180, %v1185
        %v1190 = vmul.f32 %v1178, %v1189
        %v1191 = vmul.f32 %v1190, %v1154
        %v1192 = vadd.f32 %v1191, %v1159
        %v1193 = vmax.f32 %v1192, 0.0
        %1195 = vrot.lane.b32.xlu0 %v1193, 15
        %v1196 = vpop.permute.xlu0 %1195
        %1198 = vst.msk [vmem:[%s650] sm:$0xff] %vm283, %v1196
        %1199 = vst.msk [vmem:[%s650 + $0x8] sm:$0xff] %vm264, %v1196
        %v1200 = vld [vmem:[#allocation2] sm:$0xff]
        %1201 = vst [vmem:[#allocation3] sm:$0xff] %v1200
        %v1202 = vld [vmem:[#allocation2] sm:$0xff]
        %v1203 = vld [vmem:[#allocation2 + $0x8] sm:$0xff]
        %1206 = vrot.lane.b32.xlu0 %v1202, 127
        %v1207 = vpop.permute.xlu0 %1206
        %1208 = vrot.lane.b32.xlu0 %v1203, 127
        %v1209 = vpop.permute.xlu0 %1208
        %v1210 = vsel %vm298, %v1207, %v1209
        %1212 = vst [vmem:[#allocation3 + $0x10] sm:$0xff] %v1210
        %v1213 = vld [vmem:[#allocation2] sm:$0xff]
        %v1214 = vld [vmem:[#allocation2 + $0x8] sm:$0xff]
        %1217 = vrot.lane.b32.xlu0 %v1213, 126
        %v1218 = vpop.permute.xlu0 %1217
        %1219 = vrot.lane.b32.xlu0 %v1214, 126
        %v1220 = vpop.permute.xlu0 %1219
        %v1221 = vsel %vm310, %v1218, %v1220
        %1223 = vst [vmem:[#allocation3 + $0x20] sm:$0xff] %v1221
        %v1224 = vld [vmem:[#allocation2] sm:$0xff]
        %v1225 = vld [vmem:[#allocation2 + $0x8] sm:$0xff]
        %1228 = vrot.lane.b32.xlu0 %v1224, 125
        %v1229 = vpop.permute.xlu0 %1228
        %1230 = vrot.lane.b32.xlu0 %v1225, 125
        %v1231 = vpop.permute.xlu0 %1230
        %v1232 = vsel %vm322, %v1229, %v1231
        %1234 = vst [vmem:[#allocation3 + $0x30] sm:$0xff] %v1232
        %v1235 = vld [vmem:[#allocation2] sm:$0xff]
        %v1236 = vld [vmem:[#allocation2 + $0x8] sm:$0xff]
        %1239 = vrot.lane.b32.xlu0 %v1235, 124
        %v1240 = vpop.permute.xlu0 %1239
        %1241 = vrot.lane.b32.xlu0 %v1236, 124
        %v1242 = vpop.permute.xlu0 %1241
        %v1243 = vsel %vm334, %v1240, %v1242
        %1245 = vst [vmem:[#allocation3 + $0x40] sm:$0xff] %v1243
        %v1246 = vld [vmem:[#allocation2] sm:$0xff]
        %v1247 = vld [vmem:[#allocation2 + $0x8] sm:$0xff]
        %1250 = vrot.lane.b32.xlu0 %v1246, 123
        %v1251 = vpop.permute.xlu0 %1250
        %1252 = vrot.lane.b32.xlu0 %v1247, 123
        %v1253 = vpop.permute.xlu0 %1252
        %v1254 = vsel %vm346, %v1251, %v1253
        %1256 = vst [vmem:[#allocation3 + $0x50] sm:$0xff] %v1254
        %v1257 = vld [vmem:[#allocation2] sm:$0xff]
        %v1258 = vld [vmem:[#allocation2 + $0x8] sm:$0xff]
        %1261 = vrot.lane.b32.xlu0 %v1257, 122
        %v1262 = vpop.permute.xlu0 %1261
        %1263 = vrot.lane.b32.xlu0 %v1258, 122
        %v1264 = vpop.permute.xlu0 %1263
        %v1265 = vsel %vm358, %v1262, %v1264
        %1267 = vst [vmem:[#allocation3 + $0x60] sm:$0xff] %v1265
        %v1268 = vld [vmem:[#allocation2] sm:$0xff]
        %v1269 = vld [vmem:[#allocation2 + $0x8] sm:$0xff]
        %1272 = vrot.lane.b32.xlu0 %v1268, 121
        %v1273 = vpop.permute.xlu0 %1272
        %1274 = vrot.lane.b32.xlu0 %v1269, 121
        %v1275 = vpop.permute.xlu0 %1274
        %v1276 = vsel %vm370, %v1273, %v1275
        %1278 = vst [vmem:[#allocation3 + $0x70] sm:$0xff] %v1276
        %v1279 = vld [vmem:[#allocation2] sm:$0xff]
        %v1280 = vld [vmem:[#allocation2 + $0x8] sm:$0xff]
        %1283 = vrot.lane.b32.xlu0 %v1279, 120
        %v1284 = vpop.permute.xlu0 %1283
        %1285 = vrot.lane.b32.xlu0 %v1280, 120
        %v1286 = vpop.permute.xlu0 %1285
        %v1287 = vsel %vm382, %v1284, %v1286
        %1289 = vst [vmem:[#allocation3 + $0x80] sm:$0xff] %v1287
        %v1290 = vld [vmem:[#allocation2] sm:$0xff]
        %v1291 = vld [vmem:[#allocation2 + $0x8] sm:$0xff]
        %1294 = vrot.lane.b32.xlu0 %v1290, 119
        %v1295 = vpop.permute.xlu0 %1294
        %1296 = vrot.lane.b32.xlu0 %v1291, 119
        %v1297 = vpop.permute.xlu0 %1296
        %v1298 = vsel %vm394, %v1295, %v1297
        %1300 = vst [vmem:[#allocation3 + $0x90] sm:$0xff] %v1298
        %v1301 = vld [vmem:[#allocation2] sm:$0xff]
        %v1302 = vld [vmem:[#allocation2 + $0x8] sm:$0xff]
        %1305 = vrot.lane.b32.xlu0 %v1301, 118
        %v1306 = vpop.permute.xlu0 %1305
        %1307 = vrot.lane.b32.xlu0 %v1302, 118
        %v1308 = vpop.permute.xlu0 %1307
        %v1309 = vsel %vm406, %v1306, %v1308
        %1311 = vst [vmem:[#allocation3 + $0xa0] sm:$0xff] %v1309
        %v1312 = vld [vmem:[#allocation2] sm:$0xff]
        %v1313 = vld [vmem:[#allocation2 + $0x8] sm:$0xff]
        %1316 = vrot.lane.b32.xlu0 %v1312, 117
        %v1317 = vpop.permute.xlu0 %1316
        %1318 = vrot.lane.b32.xlu0 %v1313, 117
        %v1319 = vpop.permute.xlu0 %1318
        %v1320 = vsel %vm418, %v1317, %v1319
        %1322 = vst [vmem:[#allocation3 + $0xb0] sm:$0xff] %v1320
        %v1323 = vld [vmem:[#allocation2] sm:$0xff]
        %v1324 = vld [vmem:[#allocation2 + $0x8] sm:$0xff]
        %1327 = vrot.lane.b32.xlu0 %v1323, 116
        %v1328 = vpop.permute.xlu0 %1327
        %1329 = vrot.lane.b32.xlu0 %v1324, 116
        %v1330 = vpop.permute.xlu0 %1329
        %v1331 = vsel %vm430, %v1328, %v1330
        %1333 = vst [vmem:[#allocation3 + $0xc0] sm:$0xff] %v1331
        %v1334 = vld [vmem:[#allocation2] sm:$0xff]
        %v1335 = vld [vmem:[#allocation2 + $0x8] sm:$0xff]
        %1338 = vrot.lane.b32.xlu0 %v1334, 115
        %v1339 = vpop.permute.xlu0 %1338
        %1340 = vrot.lane.b32.xlu0 %v1335, 115
        %v1341 = vpop.permute.xlu0 %1340
        %v1342 = vsel %vm442, %v1339, %v1341
        %1344 = vst [vmem:[#allocation3 + $0xd0] sm:$0xff] %v1342
        %v1345 = vld [vmem:[#allocation2] sm:$0xff]
        %v1346 = vld [vmem:[#allocation2 + $0x8] sm:$0xff]
        %1349 = vrot.lane.b32.xlu0 %v1345, 114
        %v1350 = vpop.permute.xlu0 %1349
        %1351 = vrot.lane.b32.xlu0 %v1346, 114
        %v1352 = vpop.permute.xlu0 %1351
        %v1353 = vsel %vm454, %v1350, %v1352
        %1355 = vst [vmem:[#allocation3 + $0xe0] sm:$0xff] %v1353
        %v1356 = vld [vmem:[#allocation2] sm:$0xff]
        %v1357 = vld [vmem:[#allocation2 + $0x8] sm:$0xff]
        %1360 = vrot.lane.b32.xlu0 %v1356, 113
        %v1361 = vpop.permute.xlu0 %1360
        %1362 = vrot.lane.b32.xlu0 %v1357, 113
        %v1363 = vpop.permute.xlu0 %1362
        %v1364 = vsel %vm466, %v1361, %v1363
        %1366 = vst [vmem:[#allocation3 + $0xf0] sm:$0xff] %v1364
        %v1367 = vld [vmem:[#allocation2] sm:$0xff]
        %v1368 = vld [vmem:[#allocation2 + $0x8] sm:$0xff]
        %1371 = vrot.lane.b32.xlu0 %v1367, 112
        %v1372 = vpop.permute.xlu0 %1371
        %1373 = vrot.lane.b32.xlu0 %v1368, 112
        %v1374 = vpop.permute.xlu0 %1373
        %v1375 = vsel %vm478, %v1372, %v1374
        %1377 = vst [vmem:[#allocation3 + $0x100] sm:$0xff] %v1375
        %v1378 = vld [vmem:[#allocation2] sm:$0xff]
        %v1379 = vld [vmem:[#allocation2 + $0x8] sm:$0xff]
        %1382 = vrot.lane.b32.xlu0 %v1378, 111
        %v1383 = vpop.permute.xlu0 %1382
        %1384 = vrot.lane.b32.xlu0 %v1379, 111
        %v1385 = vpop.permute.xlu0 %1384
        %v1386 = vsel %vm490, %v1383, %v1385
        %1388 = vst [vmem:[#allocation3 + $0x110] sm:$0xff] %v1386
        %v1389 = vld [vmem:[#allocation2] sm:$0xff]
        %v1390 = vld [vmem:[#allocation2 + $0x8] sm:$0xff]
        %1393 = vrot.lane.b32.xlu0 %v1389, 110
        %v1394 = vpop.permute.xlu0 %1393
        %1395 = vrot.lane.b32.xlu0 %v1390, 110
        %v1396 = vpop.permute.xlu0 %1395
        %v1397 = vsel %vm502, %v1394, %v1396
        %1399 = vst [vmem:[#allocation3 + $0x120] sm:$0xff] %v1397
        %v1400 = vld [vmem:[#allocation2] sm:$0xff]
        %v1401 = vld [vmem:[#allocation2 + $0x8] sm:$0xff]
        %1404 = vrot.lane.b32.xlu0 %v1400, 109
        %v1405 = vpop.permute.xlu0 %1404
        %1406 = vrot.lane.b32.xlu0 %v1401, 109
        %v1407 = vpop.permute.xlu0 %1406
        %v1408 = vsel %vm514, %v1405, %v1407
        %1410 = vst [vmem:[#allocation3 + $0x130] sm:$0xff] %v1408
        %v1411 = vld [vmem:[#allocation2] sm:$0xff]
        %v1412 = vld [vmem:[#allocation2 + $0x8] sm:$0xff]
        %1415 = vrot.lane.b32.xlu0 %v1411, 108
        %v1416 = vpop.permute.xlu0 %1415
        %1417 = vrot.lane.b32.xlu0 %v1412, 108
        %v1418 = vpop.permute.xlu0 %1417
        %v1419 = vsel %vm526, %v1416, %v1418
        %1421 = vst [vmem:[#allocation3 + $0x140] sm:$0xff] %v1419
        %v1422 = vld [vmem:[#allocation2] sm:$0xff]
        %v1423 = vld [vmem:[#allocation2 + $0x8] sm:$0xff]
        %1426 = vrot.lane.b32.xlu0 %v1422, 107
        %v1427 = vpop.permute.xlu0 %1426
        %1428 = vrot.lane.b32.xlu0 %v1423, 107
        %v1429 = vpop.permute.xlu0 %1428
        %v1430 = vsel %vm538, %v1427, %v1429
        %1432 = vst [vmem:[#allocation3 + $0x150] sm:$0xff] %v1430
        %v1433 = vld [vmem:[#allocation2] sm:$0xff]
        %v1434 = vld [vmem:[#allocation2 + $0x8] sm:$0xff]
        %1437 = vrot.lane.b32.xlu0 %v1433, 106
        %v1438 = vpop.permute.xlu0 %1437
        %1439 = vrot.lane.b32.xlu0 %v1434, 106
        %v1440 = vpop.permute.xlu0 %1439
        %v1441 = vsel %vm550, %v1438, %v1440
        %1443 = vst [vmem:[#allocation3 + $0x160] sm:$0xff] %v1441
        %v1444 = vld [vmem:[#allocation2] sm:$0xff]
        %v1445 = vld [vmem:[#allocation2 + $0x8] sm:$0xff]
        %1448 = vrot.lane.b32.xlu0 %v1444, 105
        %v1449 = vpop.permute.xlu0 %1448
        %1450 = vrot.lane.b32.xlu0 %v1445, 105
        %v1451 = vpop.permute.xlu0 %1450
        %v1452 = vsel %vm562, %v1449, %v1451
        %1454 = vst [vmem:[#allocation3 + $0x170] sm:$0xff] %v1452
        %v1455 = vld [vmem:[#allocation2] sm:$0xff]
        %v1456 = vld [vmem:[#allocation2 + $0x8] sm:$0xff]
        %1459 = vrot.lane.b32.xlu0 %v1455, 104
        %v1460 = vpop.permute.xlu0 %1459
        %1461 = vrot.lane.b32.xlu0 %v1456, 104
        %v1462 = vpop.permute.xlu0 %1461
        %v1463 = vsel %vm574, %v1460, %v1462
        %1465 = vst [vmem:[#allocation3 + $0x180] sm:$0xff] %v1463
        %v1466 = vld [vmem:[#allocation2] sm:$0xff]
        %v1467 = vld [vmem:[#allocation2 + $0x8] sm:$0xff]
        %1470 = vrot.lane.b32.xlu0 %v1466, 103
        %v1471 = vpop.permute.xlu0 %1470
        %1472 = vrot.lane.b32.xlu0 %v1467, 103
        %v1473 = vpop.permute.xlu0 %1472
        %v1474 = vsel %vm586, %v1471, %v1473
        %1476 = vst [vmem:[#allocation3 + $0x190] sm:$0xff] %v1474
        %v1477 = vld [vmem:[#allocation2] sm:$0xff]
        %v1478 = vld [vmem:[#allocation2 + $0x8] sm:$0xff]
        %1481 = vrot.lane.b32.xlu0 %v1477, 102
        %v1482 = vpop.permute.xlu0 %1481
        %1483 = vrot.lane.b32.xlu0 %v1478, 102
        %v1484 = vpop.permute.xlu0 %1483
        %v1485 = vsel %vm598, %v1482, %v1484
        %1487 = vst [vmem:[#allocation3 + $0x1a0] sm:$0xff] %v1485
        %v1488 = vld [vmem:[#allocation2] sm:$0xff]
        %v1489 = vld [vmem:[#allocation2 + $0x8] sm:$0xff]
        %1492 = vrot.lane.b32.xlu0 %v1488, 101
        %v1493 = vpop.permute.xlu0 %1492
        %1494 = vrot.lane.b32.xlu0 %v1489, 101
        %v1495 = vpop.permute.xlu0 %1494
        %v1496 = vsel %vm610, %v1493, %v1495
        %1498 = vst [vmem:[#allocation3 + $0x1b0] sm:$0xff] %v1496
        %v1499 = vld [vmem:[#allocation2] sm:$0xff]
        %v1500 = vld [vmem:[#allocation2 + $0x8] sm:$0xff]
        %1503 = vrot.lane.b32.xlu0 %v1499, 100
        %v1504 = vpop.permute.xlu0 %1503
        %1505 = vrot.lane.b32.xlu0 %v1500, 100
        %v1506 = vpop.permute.xlu0 %1505
        %v1507 = vsel %vm622, %v1504, %v1506
        %1509 = vst [vmem:[#allocation3 + $0x1c0] sm:$0xff] %v1507
        %v1510 = vld [vmem:[#allocation2] sm:$0xff]
        %v1511 = vld [vmem:[#allocation2 + $0x8] sm:$0xff]
        %1514 = vrot.lane.b32.xlu0 %v1510, 99
        %v1515 = vpop.permute.xlu0 %1514
        %1516 = vrot.lane.b32.xlu0 %v1511, 99
        %v1517 = vpop.permute.xlu0 %1516
        %v1518 = vsel %vm634, %v1515, %v1517
        %1520 = vst [vmem:[#allocation3 + $0x1d0] sm:$0xff] %v1518
        %v1521 = vld [vmem:[#allocation2] sm:$0xff]
        %v1522 = vld [vmem:[#allocation2 + $0x8] sm:$0xff]
        %1525 = vrot.lane.b32.xlu0 %v1521, 98
        %v1526 = vpop.permute.xlu0 %1525
        %1527 = vrot.lane.b32.xlu0 %v1522, 98
        %v1528 = vpop.permute.xlu0 %1527
        %v1529 = vsel %vm646, %v1526, %v1528
        %1531 = vst [vmem:[#allocation3 + $0x1e0] sm:$0xff] %v1529
        %v1532 = vld [vmem:[%s650] sm:$0xff]
        %1533 = vst [vmem:[#allocation3 + $0x8] sm:$0xff] %v1532
        %v1534 = vld [vmem:[%s650] sm:$0xff]
        %v1535 = vld [vmem:[%s650 + $0x8] sm:$0xff]
        %1538 = vrot.lane.b32.xlu0 %v1534, 127
        %v1539 = vpop.permute.xlu0 %1538
        %1540 = vrot.lane.b32.xlu0 %v1535, 127
        %v1541 = vpop.permute.xlu0 %1540
        %v1542 = vsel %vm298, %v1539, %v1541
        %1544 = vst [vmem:[#allocation3 + $0x18] sm:$0xff] %v1542
        %v1545 = vld [vmem:[%s650] sm:$0xff]
        %v1546 = vld [vmem:[%s650 + $0x8] sm:$0xff]
        %1549 = vrot.lane.b32.xlu0 %v1545, 126
        %v1550 = vpop.permute.xlu0 %1549
        %1551 = vrot.lane.b32.xlu0 %v1546, 126
        %v1552 = vpop.permute.xlu0 %1551
        %v1553 = vsel %vm310, %v1550, %v1552
        %1555 = vst [vmem:[#allocation3 + $0x28] sm:$0xff] %v1553
        %v1556 = vld [vmem:[%s650] sm:$0xff]
        %v1557 = vld [vmem:[%s650 + $0x8] sm:$0xff]
        %1560 = vrot.lane.b32.xlu0 %v1556, 125
        %v1561 = vpop.permute.xlu0 %1560
        %1562 = vrot.lane.b32.xlu0 %v1557, 125
        %v1563 = vpop.permute.xlu0 %1562
        %v1564 = vsel %vm322, %v1561, %v1563
        %1566 = vst [vmem:[#allocation3 + $0x38] sm:$0xff] %v1564
        %v1567 = vld [vmem:[%s650] sm:$0xff]
        %v1568 = vld [vmem:[%s650 + $0x8] sm:$0xff]
        %1571 = vrot.lane.b32.xlu0 %v1567, 124
        %v1572 = vpop.permute.xlu0 %1571
        %1573 = vrot.lane.b32.xlu0 %v1568, 124
        %v1574 = vpop.permute.xlu0 %1573
        %v1575 = vsel %vm334, %v1572, %v1574
        %1577 = vst [vmem:[#allocation3 + $0x48] sm:$0xff] %v1575
        %v1578 = vld [vmem:[%s650] sm:$0xff]
        %v1579 = vld [vmem:[%s650 + $0x8] sm:$0xff]
        %1582 = vrot.lane.b32.xlu0 %v1578, 123
        %v1583 = vpop.permute.xlu0 %1582
        %1584 = vrot.lane.b32.xlu0 %v1579, 123
        %v1585 = vpop.permute.xlu0 %1584
        %v1586 = vsel %vm346, %v1583, %v1585
        %1588 = vst [vmem:[#allocation3 + $0x58] sm:$0xff] %v1586
        %v1589 = vld [vmem:[%s650] sm:$0xff]
        %v1590 = vld [vmem:[%s650 + $0x8] sm:$0xff]
        %1593 = vrot.lane.b32.xlu0 %v1589, 122
        %v1594 = vpop.permute.xlu0 %1593
        %1595 = vrot.lane.b32.xlu0 %v1590, 122
        %v1596 = vpop.permute.xlu0 %1595
        %v1597 = vsel %vm358, %v1594, %v1596
        %1599 = vst [vmem:[#allocation3 + $0x68] sm:$0xff] %v1597
        %v1600 = vld [vmem:[%s650] sm:$0xff]
        %v1601 = vld [vmem:[%s650 + $0x8] sm:$0xff]
        %1604 = vrot.lane.b32.xlu0 %v1600, 121
        %v1605 = vpop.permute.xlu0 %1604
        %1606 = vrot.lane.b32.xlu0 %v1601, 121
        %v1607 = vpop.permute.xlu0 %1606
        %v1608 = vsel %vm370, %v1605, %v1607
        %1610 = vst [vmem:[#allocation3 + $0x78] sm:$0xff] %v1608
        %v1611 = vld [vmem:[%s650] sm:$0xff]
        %v1612 = vld [vmem:[%s650 + $0x8] sm:$0xff]
        %1615 = vrot.lane.b32.xlu0 %v1611, 120
        %v1616 = vpop.permute.xlu0 %1615
        %1617 = vrot.lane.b32.xlu0 %v1612, 120
        %v1618 = vpop.permute.xlu0 %1617
        %v1619 = vsel %vm382, %v1616, %v1618
        %1621 = vst [vmem:[#allocation3 + $0x88] sm:$0xff] %v1619
        %v1622 = vld [vmem:[%s650] sm:$0xff]
        %v1623 = vld [vmem:[%s650 + $0x8] sm:$0xff]
        %1626 = vrot.lane.b32.xlu0 %v1622, 119
        %v1627 = vpop.permute.xlu0 %1626
        %1628 = vrot.lane.b32.xlu0 %v1623, 119
        %v1629 = vpop.permute.xlu0 %1628
        %v1630 = vsel %vm394, %v1627, %v1629
        %1632 = vst [vmem:[#allocation3 + $0x98] sm:$0xff] %v1630
        %v1633 = vld [vmem:[%s650] sm:$0xff]
        %v1634 = vld [vmem:[%s650 + $0x8] sm:$0xff]
        %1637 = vrot.lane.b32.xlu0 %v1633, 118
        %v1638 = vpop.permute.xlu0 %1637
        %1639 = vrot.lane.b32.xlu0 %v1634, 118
        %v1640 = vpop.permute.xlu0 %1639
        %v1641 = vsel %vm406, %v1638, %v1640
        %1643 = vst [vmem:[#allocation3 + $0xa8] sm:$0xff] %v1641
        %v1644 = vld [vmem:[%s650] sm:$0xff]
        %v1645 = vld [vmem:[%s650 + $0x8] sm:$0xff]
        %1648 = vrot.lane.b32.xlu0 %v1644, 117
        %v1649 = vpop.permute.xlu0 %1648
        %1650 = vrot.lane.b32.xlu0 %v1645, 117
        %v1651 = vpop.permute.xlu0 %1650
        %v1652 = vsel %vm418, %v1649, %v1651
        %1654 = vst [vmem:[#allocation3 + $0xb8] sm:$0xff] %v1652
        %v1655 = vld [vmem:[%s650] sm:$0xff]
        %v1656 = vld [vmem:[%s650 + $0x8] sm:$0xff]
        %1659 = vrot.lane.b32.xlu0 %v1655, 116
        %v1660 = vpop.permute.xlu0 %1659
        %1661 = vrot.lane.b32.xlu0 %v1656, 116
        %v1662 = vpop.permute.xlu0 %1661
        %v1663 = vsel %vm430, %v1660, %v1662
        %1665 = vst [vmem:[#allocation3 + $0xc8] sm:$0xff] %v1663
        %v1666 = vld [vmem:[%s650] sm:$0xff]
        %v1667 = vld [vmem:[%s650 + $0x8] sm:$0xff]
        %1670 = vrot.lane.b32.xlu0 %v1666, 115
        %v1671 = vpop.permute.xlu0 %1670
        %1672 = vrot.lane.b32.xlu0 %v1667, 115
        %v1673 = vpop.permute.xlu0 %1672
        %v1674 = vsel %vm442, %v1671, %v1673
        %1676 = vst [vmem:[#allocation3 + $0xd8] sm:$0xff] %v1674
        %v1677 = vld [vmem:[%s650] sm:$0xff]
        %v1678 = vld [vmem:[%s650 + $0x8] sm:$0xff]
        %1681 = vrot.lane.b32.xlu0 %v1677, 114
        %v1682 = vpop.permute.xlu0 %1681
        %1683 = vrot.lane.b32.xlu0 %v1678, 114
        %v1684 = vpop.permute.xlu0 %1683
        %v1685 = vsel %vm454, %v1682, %v1684
        %1687 = vst [vmem:[#allocation3 + $0xe8] sm:$0xff] %v1685
        %v1688 = vld [vmem:[%s650] sm:$0xff]
        %v1689 = vld [vmem:[%s650 + $0x8] sm:$0xff]
        %1692 = vrot.lane.b32.xlu0 %v1688, 113
        %v1693 = vpop.permute.xlu0 %1692
        %1694 = vrot.lane.b32.xlu0 %v1689, 113
        %v1695 = vpop.permute.xlu0 %1694
        %v1696 = vsel %vm466, %v1693, %v1695
        %1698 = vst [vmem:[#allocation3 + $0xf8] sm:$0xff] %v1696
        %v1699 = vld [vmem:[%s650] sm:$0xff]
        %v1700 = vld [vmem:[%s650 + $0x8] sm:$0xff]
        %1703 = vrot.lane.b32.xlu0 %v1699, 112
        %v1704 = vpop.permute.xlu0 %1703
        %1705 = vrot.lane.b32.xlu0 %v1700, 112
        %v1706 = vpop.permute.xlu0 %1705
        %v1707 = vsel %vm478, %v1704, %v1706
        %1709 = vst [vmem:[#allocation3 + $0x108] sm:$0xff] %v1707
        %v1710 = vld [vmem:[%s650] sm:$0xff]
        %v1711 = vld [vmem:[%s650 + $0x8] sm:$0xff]
        %1714 = vrot.lane.b32.xlu0 %v1710, 111
        %v1715 = vpop.permute.xlu0 %1714
        %1716 = vrot.lane.b32.xlu0 %v1711, 111
        %v1717 = vpop.permute.xlu0 %1716
        %v1718 = vsel %vm490, %v1715, %v1717
        %1720 = vst [vmem:[#allocation3 + $0x118] sm:$0xff] %v1718
        %v1721 = vld [vmem:[%s650] sm:$0xff]
        %v1722 = vld [vmem:[%s650 + $0x8] sm:$0xff]
        %1725 = vrot.lane.b32.xlu0 %v1721, 110
        %v1726 = vpop.permute.xlu0 %1725
        %1727 = vrot.lane.b32.xlu0 %v1722, 110
        %v1728 = vpop.permute.xlu0 %1727
        %v1729 = vsel %vm502, %v1726, %v1728
        %1731 = vst [vmem:[#allocation3 + $0x128] sm:$0xff] %v1729
        %v1732 = vld [vmem:[%s650] sm:$0xff]
        %v1733 = vld [vmem:[%s650 + $0x8] sm:$0xff]
        %1736 = vrot.lane.b32.xlu0 %v1732, 109
        %v1737 = vpop.permute.xlu0 %1736
        %1738 = vrot.lane.b32.xlu0 %v1733, 109
        %v1739 = vpop.permute.xlu0 %1738
        %v1740 = vsel %vm514, %v1737, %v1739
        %1742 = vst [vmem:[#allocation3 + $0x138] sm:$0xff] %v1740
        %v1743 = vld [vmem:[%s650] sm:$0xff]
        %v1744 = vld [vmem:[%s650 + $0x8] sm:$0xff]
        %1747 = vrot.lane.b32.xlu0 %v1743, 108
        %v1748 = vpop.permute.xlu0 %1747
        %1749 = vrot.lane.b32.xlu0 %v1744, 108
        %v1750 = vpop.permute.xlu0 %1749
        %v1751 = vsel %vm526, %v1748, %v1750
        %1753 = vst [vmem:[#allocation3 + $0x148] sm:$0xff] %v1751
        %v1754 = vld [vmem:[%s650] sm:$0xff]
        %v1755 = vld [vmem:[%s650 + $0x8] sm:$0xff]
        %1758 = vrot.lane.b32.xlu0 %v1754, 107
        %v1759 = vpop.permute.xlu0 %1758
        %1760 = vrot.lane.b32.xlu0 %v1755, 107
        %v1761 = vpop.permute.xlu0 %1760
        %v1762 = vsel %vm538, %v1759, %v1761
        %1764 = vst [vmem:[#allocation3 + $0x158] sm:$0xff] %v1762
        %v1765 = vld [vmem:[%s650] sm:$0xff]
        %v1766 = vld [vmem:[%s650 + $0x8] sm:$0xff]
        %1769 = vrot.lane.b32.xlu0 %v1765, 106
        %v1770 = vpop.permute.xlu0 %1769
        %1771 = vrot.lane.b32.xlu0 %v1766, 106
        %v1772 = vpop.permute.xlu0 %1771
        %v1773 = vsel %vm550, %v1770, %v1772
        %1775 = vst [vmem:[#allocation3 + $0x168] sm:$0xff] %v1773
        %v1776 = vld [vmem:[%s650] sm:$0xff]
        %v1777 = vld [vmem:[%s650 + $0x8] sm:$0xff]
        %1780 = vrot.lane.b32.xlu0 %v1776, 105
        %v1781 = vpop.permute.xlu0 %1780
        %1782 = vrot.lane.b32.xlu0 %v1777, 105
        %v1783 = vpop.permute.xlu0 %1782
        %v1784 = vsel %vm562, %v1781, %v1783
        %1786 = vst [vmem:[#allocation3 + $0x178] sm:$0xff] %v1784
        %v1787 = vld [vmem:[%s650] sm:$0xff]
        %v1788 = vld [vmem:[%s650 + $0x8] sm:$0xff]
        %1791 = vrot.lane.b32.xlu0 %v1787, 104
        %v1792 = vpop.permute.xlu0 %1791
        %1793 = vrot.lane.b32.xlu0 %v1788, 104
        %v1794 = vpop.permute.xlu0 %1793
        %v1795 = vsel %vm574, %v1792, %v1794
        %1797 = vst [vmem:[#allocation3 + $0x188] sm:$0xff] %v1795
        %v1798 = vld [vmem:[%s650] sm:$0xff]
        %v1799 = vld [vmem:[%s650 + $0x8] sm:$0xff]
        %1802 = vrot.lane.b32.xlu0 %v1798, 103
        %v1803 = vpop.permute.xlu0 %1802
        %1804 = vrot.lane.b32.xlu0 %v1799, 103
        %v1805 = vpop.permute.xlu0 %1804
        %v1806 = vsel %vm586, %v1803, %v1805
        %1808 = vst [vmem:[#allocation3 + $0x198] sm:$0xff] %v1806
        %v1809 = vld [vmem:[%s650] sm:$0xff]
        %v1810 = vld [vmem:[%s650 + $0x8] sm:$0xff]
        %1813 = vrot.lane.b32.xlu0 %v1809, 102
        %v1814 = vpop.permute.xlu0 %1813
        %1815 = vrot.lane.b32.xlu0 %v1810, 102
        %v1816 = vpop.permute.xlu0 %1815
        %v1817 = vsel %vm598, %v1814, %v1816
        %1819 = vst [vmem:[#allocation3 + $0x1a8] sm:$0xff] %v1817
        %v1820 = vld [vmem:[%s650] sm:$0xff]
        %v1821 = vld [vmem:[%s650 + $0x8] sm:$0xff]
        %1824 = vrot.lane.b32.xlu0 %v1820, 101
        %v1825 = vpop.permute.xlu0 %1824
        %1826 = vrot.lane.b32.xlu0 %v1821, 101
        %v1827 = vpop.permute.xlu0 %1826
        %v1828 = vsel %vm610, %v1825, %v1827
        %1830 = vst [vmem:[#allocation3 + $0x1b8] sm:$0xff] %v1828
        %v1831 = vld [vmem:[%s650] sm:$0xff]
        %v1832 = vld [vmem:[%s650 + $0x8] sm:$0xff]
        %1835 = vrot.lane.b32.xlu0 %v1831, 100
        %v1836 = vpop.permute.xlu0 %1835
        %1837 = vrot.lane.b32.xlu0 %v1832, 100
        %v1838 = vpop.permute.xlu0 %1837
        %v1839 = vsel %vm622, %v1836, %v1838
        %1841 = vst [vmem:[#allocation3 + $0x1c8] sm:$0xff] %v1839
        %v1842 = vld [vmem:[%s650] sm:$0xff]
        %v1843 = vld [vmem:[%s650 + $0x8] sm:$0xff]
        %1846 = vrot.lane.b32.xlu0 %v1842, 99
        %v1847 = vpop.permute.xlu0 %1846
        %1848 = vrot.lane.b32.xlu0 %v1843, 99
        %v1849 = vpop.permute.xlu0 %1848
        %v1850 = vsel %vm634, %v1847, %v1849
        %1852 = vst [vmem:[#allocation3 + $0x1d8] sm:$0xff] %v1850
        %v1853 = vld [vmem:[%s650] sm:$0xff]
        %v1854 = vld [vmem:[%s650 + $0x8] sm:$0xff]
        %1857 = vrot.lane.b32.xlu0 %v1853, 98
        %v1858 = vpop.permute.xlu0 %1857
        %1859 = vrot.lane.b32.xlu0 %v1854, 98
        %v1860 = vpop.permute.xlu0 %1859
        %v1861 = vsel %vm646, %v1858, %v1860
        %1863 = vst [vmem:[#allocation3 + $0x1e8] sm:$0xff] %v1861
        %v1864 = vld [vmem:[#allocation9] sm:$0xff]
        %v1865 = vld [vmem:[#allocation9 + $0x8] sm:$0xff]
        %v1866 = vld [vmem:[#allocation3] sm:$0xff]
        %v1867 = vld [vmem:[#allocation3 + $0x8] sm:$0xff]
        %v1868 = vld [vmem:[#allocation3 + $0x10] sm:$0xff]
        %v1869 = vld [vmem:[#allocation3 + $0x18] sm:$0xff]
        %v1870 = vld [vmem:[#allocation3 + $0x20] sm:$0xff]
        %v1871 = vld [vmem:[#allocation3 + $0x28] sm:$0xff]
        %v1872 = vld [vmem:[#allocation3 + $0x30] sm:$0xff]
        %v1873 = vld [vmem:[#allocation3 + $0x38] sm:$0xff]
        %v1874 = vld [vmem:[#allocation3 + $0x40] sm:$0xff]
        %v1875 = vld [vmem:[#allocation3 + $0x48] sm:$0xff]
        %v1876 = vld [vmem:[#allocation3 + $0x50] sm:$0xff]
        %v1877 = vld [vmem:[#allocation3 + $0x58] sm:$0xff]
        %v1878 = vld [vmem:[#allocation3 + $0x60] sm:$0xff]
        %v1879 = vld [vmem:[#allocation3 + $0x68] sm:$0xff]
        %v1880 = vld [vmem:[#allocation3 + $0x70] sm:$0xff]
        %v1881 = vld [vmem:[#allocation3 + $0x78] sm:$0xff]
        %v1882 = vld [vmem:[#allocation3 + $0x80] sm:$0xff]
        %v1883 = vld [vmem:[#allocation3 + $0x88] sm:$0xff]
        %v1884 = vld [vmem:[#allocation3 + $0x90] sm:$0xff]
        %v1885 = vld [vmem:[#allocation3 + $0x98] sm:$0xff]
        %v1886 = vld [vmem:[#allocation3 + $0xa0] sm:$0xff]
        %v1887 = vld [vmem:[#allocation3 + $0xa8] sm:$0xff]
        %v1888 = vld [vmem:[#allocation3 + $0xb0] sm:$0xff]
        %v1889 = vld [vmem:[#allocation3 + $0xb8] sm:$0xff]
        %v1890 = vld [vmem:[#allocation3 + $0xc0] sm:$0xff]
        %v1891 = vld [vmem:[#allocation3 + $0xc8] sm:$0xff]
        %v1892 = vld [vmem:[#allocation3 + $0xd0] sm:$0xff]
        %v1893 = vld [vmem:[#allocation3 + $0xd8] sm:$0xff]
        %v1894 = vld [vmem:[#allocation3 + $0xe0] sm:$0xff]
        %v1895 = vld [vmem:[#allocation3 + $0xe8] sm:$0xff]
        %v1896 = vld [vmem:[#allocation3 + $0xf0] sm:$0xff]
        %v1897 = vld [vmem:[#allocation3 + $0xf8] sm:$0xff]
        %v1898 = vld [vmem:[#allocation3 + $0x100] sm:$0xff]
        %v1899 = vld [vmem:[#allocation3 + $0x108] sm:$0xff]
        %v1900 = vld [vmem:[#allocation3 + $0x110] sm:$0xff]
        %v1901 = vld [vmem:[#allocation3 + $0x118] sm:$0xff]
        %v1902 = vld [vmem:[#allocation3 + $0x120] sm:$0xff]
        %v1903 = vld [vmem:[#allocation3 + $0x128] sm:$0xff]
        %v1904 = vld [vmem:[#allocation3 + $0x130] sm:$0xff]
        %v1905 = vld [vmem:[#allocation3 + $0x138] sm:$0xff]
        %v1906 = vld [vmem:[#allocation3 + $0x140] sm:$0xff]
        %v1907 = vld [vmem:[#allocation3 + $0x148] sm:$0xff]
        %v1908 = vld [vmem:[#allocation3 + $0x150] sm:$0xff]
        %v1909 = vld [vmem:[#allocation3 + $0x158] sm:$0xff]
        %v1910 = vld [vmem:[#allocation3 + $0x160] sm:$0xff]
        %v1911 = vld [vmem:[#allocation3 + $0x168] sm:$0xff]
        %v1912 = vld [vmem:[#allocation3 + $0x170] sm:$0xff]
        %v1913 = vld [vmem:[#allocation3 + $0x178] sm:$0xff]
        %v1914 = vld [vmem:[#allocation3 + $0x180] sm:$0xff]
        %v1915 = vld [vmem:[#allocation3 + $0x188] sm:$0xff]
        %v1916 = vld [vmem:[#allocation3 + $0x190] sm:$0xff]
        %v1917 = vld [vmem:[#allocation3 + $0x198] sm:$0xff]
        %v1918 = vld [vmem:[#allocation3 + $0x1a0] sm:$0xff]
        %v1919 = vld [vmem:[#allocation3 + $0x1a8] sm:$0xff]
        %v1920 = vld [vmem:[#allocation3 + $0x1b0] sm:$0xff]
        %v1921 = vld [vmem:[#allocation3 + $0x1b8] sm:$0xff]
        %v1922 = vld [vmem:[#allocation3 + $0x1c0] sm:$0xff]
        %v1923 = vld [vmem:[#allocation3 + $0x1c8] sm:$0xff]
        %v1924 = vld [vmem:[#allocation3 + $0x1d0] sm:$0xff]
        %v1925 = vld [vmem:[#allocation3 + $0x1d8] sm:$0xff]
        %v1926 = vld [vmem:[#allocation3 + $0x1e0] sm:$0xff]
        %v1927 = vld [vmem:[#allocation3 + $0x1e8] sm:$0xff]
        %v1928 = vld [vmem:[#allocation3 + $0x1f0] sm:$0xff]
        %v1929 = vld [vmem:[#allocation3 + $0x1f8] sm:$0xff]
        %1930 = vmatpush.msra.mxu0 %v1896
        %1931 = vmatpush.msra.mxu0 %v1894
        %1932 = vmatpush.msra.mxu0 %v1892
        %1933 = vmatpush.msra.mxu0 %v1890
        %1934 = vmatpush.msra.mxu0 %v1888
        %1935 = vmatpush.msra.mxu0 %v1886
        %1936 = vmatpush.msra.mxu0 %v1884
        %1937 = vmatpush.msra.mxu0 %v1882
        %1938 = vmatpush.msra.mxu0 %v1880
        %1939 = vmatpush.msra.mxu0 %v1878
        %1940 = vmatpush.msra.mxu0 %v1876
        %1941 = vmatpush.msra.mxu0 %v1874
        %1942 = vmatpush.msra.mxu0 %v1872
        %1943 = vmatpush.msra.mxu0 %v1870
        %1944 = vmatpush.msra.mxu0 %v1868
        %1945 = vmatpush.msra.mxu0 %v1866
        %1946 = vmatmul.f32.gmra.mxu0 %v1864
        %v1947 = vpop.f32.mrf.mxu0
        %v1948 = vadd.f32 0.0, %v1947
        %1949 = vdwg.mxu0
        %1950 = vmatpush.msra.mxu0 %v1928
        %1951 = vmatpush.msra.mxu0 %v1926
        %1952 = vmatpush.msra.mxu0 %v1924
        %1953 = vmatpush.msra.mxu0 %v1922
        %1954 = vmatpush.msra.mxu0 %v1920
        %1955 = vmatpush.msra.mxu0 %v1918
        %1956 = vmatpush.msra.mxu0 %v1916
        %1957 = vmatpush.msra.mxu0 %v1914
        %1958 = vmatpush.msra.mxu0 %v1912
        %1959 = vmatpush.msra.mxu0 %v1910
        %1960 = vmatpush.msra.mxu0 %v1908
        %1961 = vmatpush.msra.mxu0 %v1906
        %1962 = vmatpush.msra.mxu0 %v1904
        %1963 = vmatpush.msra.mxu0 %v1902
        %1964 = vmatpush.msra.mxu0 %v1900
        %1965 = vmatpush.msra.mxu0 %v1898
        %1966 = vmatmul.f32.gmra.mxu0 %v1865
        %v1967 = vpop.f32.mrf.mxu0
        %v1968 = vadd.f32 %v1948, %v1967
        %1969 = vdwg.mxu0
        %1970 = vmatpush.msra.mxu0 %v1897
        %1971 = vmatpush.msra.mxu0 %v1895
        %1972 = vmatpush.msra.mxu0 %v1893
        %1973 = vmatpush.msra.mxu0 %v1891
        %1974 = vmatpush.msra.mxu0 %v1889
        %1975 = vmatpush.msra.mxu0 %v1887
        %1976 = vmatpush.msra.mxu0 %v1885
        %1977 = vmatpush.msra.mxu0 %v1883
        %1978 = vmatpush.msra.mxu0 %v1881
        %1979 = vmatpush.msra.mxu0 %v1879
        %1980 = vmatpush.msra.mxu0 %v1877
        %1981 = vmatpush.msra.mxu0 %v1875
        %1982 = vmatpush.msra.mxu0 %v1873
        %1983 = vmatpush.msra.mxu0 %v1871
        %1984 = vmatpush.msra.mxu0 %v1869
        %1985 = vmatpush.msra.mxu0 %v1867
        %1986 = vmatmul.f32.gmra.mxu0 %v1864
        %v1987 = vpop.f32.mrf.mxu0
        %v1988 = vadd.f32 0.0, %v1987
        %1989 = vdwg.mxu0
        %1990 = vmatpush.msra.mxu0 %v1929
        %1991 = vmatpush.msra.mxu0 %v1927
        %1992 = vmatpush.msra.mxu0 %v1925
        %1993 = vmatpush.msra.mxu0 %v1923
        %1994 = vmatpush.msra.mxu0 %v1921
        %1995 = vmatpush.msra.mxu0 %v1919
        %1996 = vmatpush.msra.mxu0 %v1917
        %1997 = vmatpush.msra.mxu0 %v1915
        %1998 = vmatpush.msra.mxu0 %v1913
        %1999 = vmatpush.msra.mxu0 %v1911
        %2000 = vmatpush.msra.mxu0 %v1909
        %2001 = vmatpush.msra.mxu0 %v1907
        %2002 = vmatpush.msra.mxu0 %v1905
        %2003 = vmatpush.msra.mxu0 %v1903
        %2004 = vmatpush.msra.mxu0 %v1901
        %2005 = vmatpush.msra.mxu0 %v1899
        %2006 = vmatmul.f32.gmra.mxu0 %v1865
        %v2007 = vpop.f32.mrf.mxu0
        %v2008 = vadd.f32 %v1988, %v2007
        %2009 = vdwg.mxu0
        %2010 = vadd.xlane.f32.xlu0 %v1968
        %v2011 = vpop.xlane.xlu0 %2010
        %v2012 = vmul.f32 %v1968, %v1968
        %2013 = vadd.xlane.f32.xlu0 %v2012
        %v2014 = vpop.xlane.xlu0 %2013
        %v2015 = vmul.f32 %v2011, 0.0078125
        %v2016 = vmul.f32 %v2014, 0.0078125
        %v2017 = vmul.f32 %v2015, %v2015
        %v2018 = vsub.f32 %v2016, %v2017
        %v2019 = vsub.f32 %v1968, %v2015
        %v2020 = vadd.f32 %v2018, 1e-05
        %v2021 = vrsqrt.pop %v2020
        %v2022 = vmul.f32 %v2021, %v2020
        %v2023 = vmul.f32 %v2022, %v2021
        %v2024 = vmul.f32 0.5, %v2023
        %v2025 = vsub.f32 1.5, %v2024
        %v2026 = vmul.f32 %v2021, %v2025
        %vm2027 = vweird.f32 %v2020
        %vm2028 = vweird.f32 %v2021
        %vm2029 = vmor %vm2027, %vm2028
        %v2030 = vsel %vm2029, %v2021, %v2026
        %v2031 = vmul.f32 %v2019, %v2030
        %2032 = vset.pattern.permute.xlu0 2
        %2033 = vperm.xlu0 %2032, %v272
        %v2034 = vpop.permute.xlu0 %2033
        %v2036 = vmul.f32 %v2031, %v2034
        %2037 = vset.pattern.permute.xlu0 3
        %2038 = vperm.xlu0 %2037, %v272
        %v2039 = vpop.permute.xlu0 %2038
        %v2041 = vadd.f32 %v2036, %v2039
        %v2042 = vadd.f32 %v2041, %v273
        %2043 = vst [vmem:[%s261] sm:$0xff] %v2042
        %2044 = vadd.xlane.f32.xlu0 %v2008
        %v2045 = vpop.xlane.xlu0 %2044
        %v2046 = vmul.f32 %v2008, %v2008
        %2047 = vadd.xlane.f32.xlu0 %v2046
        %v2048 = vpop.xlane.xlu0 %2047
        %v2049 = vmul.f32 %v2045, 0.0078125
        %v2050 = vmul.f32 %v2048, 0.0078125
        %v2051 = vmul.f32 %v2049, %v2049
        %v2052 = vsub.f32 %v2050, %v2051
        %v2053 = vsub.f32 %v2008, %v2049
        %v2054 = vadd.f32 %v2052, 1e-05
        %v2055 = vrsqrt.pop %v2054
        %v2056 = vmul.f32 %v2055, %v2054
        %v2057 = vmul.f32 %v2056, %v2055
        %v2058 = vmul.f32 0.5, %v2057
        %v2059 = vsub.f32 1.5, %v2058
        %v2060 = vmul.f32 %v2055, %v2059
        %vm2061 = vweird.f32 %v2054
        %vm2062 = vweird.f32 %v2055
        %vm2063 = vmor %vm2061, %vm2062
        %v2064 = vsel %vm2063, %v2055, %v2060
        %v2065 = vmul.f32 %v2053, %v2064
        %v2066 = vmul.f32 %v2065, %v2034
        %v2067 = vadd.f32 %v2066, %v2039
        %v2068 = vadd.f32 %v2067, %v274
        %s2069 = scalar_lea.vmem %s261, 8 [#allocation12]
        %2070 = vst [vmem:[%s2069] sm:$0xff] %v2068
        %s2071 = sand.u32 %s120, 1
        %s2072 = scalar_lea.sflag [#allocation6], %s2071
        %s2073 = sand.u32 %s120, 1
        %s2074 = smul.addr %s2073, 16
        %s2075 = scalar_lea.vmem [#allocation12], %s2074
        // Predicated region
        $region53: #{tpu_custom_call.1} parent=35 // pred_check
          %p2076 = pneg %p130
        $region54: #{tpu_custom_call.1} parent=35 // pred_check_branch
          %2078 = sbr.rel (%p2076) target = $region56
        $region55: #{tpu_custom_call.1} parent=35 // pred_region
          %s2079 = smul.u32 2, %s23
          %2081 = vsyncadd %s2072, 0
          %s2082 = smul.addr %s2079, 8
          %s2083 = scalar_lea.hbm %s4, %s2082
          %s2084 = sshll.u32 %s2075, 4
          %s2085 = int_to_ptr.vmem [resolvable:$true] %s2084
          %s2086 = sshll.u32 %s2083, 4
          %s2087 = int_to_ptr.hbm [resolvable:$true] %s2086
          %2092 = dma.vmem_to_hbm [thread:$0]  %s2085, 256, %s2087, %s2072, 128, 128, 8
        $region56: #{tpu_custom_call.1} parent=35 // pred_fallthru
          _
      $region36: #{tpu_custom_call.1} parent=5 // pred_fallthru
        _
      %p2093 = scmp.le.s32.totalorder 2, %s18
      // Predicated region
      $region57: #{tpu_custom_call.1} parent=5 // pred_check
        %p2094 = pneg %p2093
      $region58: #{tpu_custom_call.1} parent=5 // pred_check_branch
        %2096 = sbr.rel (%p2094) target = $region60
      $region59: #{tpu_custom_call.1} parent=5 // pred_region
        %s2097 = ssub.s32 %s18, 2
        // Predicated region
        $region61: #{tpu_custom_call.1} parent=59 // pred_check
          %p2098 = pneg %p136
        $region62: #{tpu_custom_call.1} parent=59 // pred_check_branch
          %2100 = sbr.rel (%p2098) target = $region64
        $region63: #{tpu_custom_call.1} parent=59 // pred_region
          %s2101 = sand.u32 %s121, 1
          %s2102 = scalar_lea.sflag [#allocation6], %s2101
          %s2103 = sand.u32 %s121, 1
          %s2104 = smul.addr %s2103, 16
          %s2105 = scalar_lea.vmem [#allocation12], %s2104
          %2107 = dma.done %s2102, 256
        $region64: #{tpu_custom_call.1} parent=59 // pred_fallthru
          _
      $region60: #{tpu_custom_call.1} parent=5 // pred_fallthru
        _
    $region6: #{tpu_custom_call.1} parent=1 // loop_footer
      %s22 = sadd.s32 1, %s18
    $region7: #{tpu_custom_call.1} parent=1 // loop_footer_branch
      %17 = sbr.rel target = $region3
    $region8: #{tpu_custom_call.1} parent=1 // loop_exit
      _
    %2108 = vsyncpa [#allocation5], 1
    %s2109 = scalar_lea.sflag [#allocation5], 1
    %2110 = vsyncpa %s2109, 1
    %2111 = vsyncpa [#allocation8], 1
    %2112 = vsyncpa [#allocation11], 1
    %2113 = vsyncpa [#allocation6], 1
    %s2114 = scalar_lea.sflag [#allocation6], 1
    %2115 = vsyncpa %s2114, 1

</llo_original>
